<compile_context>
chip_gen: v5e
topology: v5e:2x2
jax: 0.10.0
libtpu: 0.0.40
codegen_flags: <defaults>
</compile_context>

<pallas_src>
import functools

import jax
import jax.numpy as jnp
from jax.experimental import pallas as pl
from jax.experimental.pallas import tpu as pltpu

LANE = 128
BN_EPS = 1e-5


def _round_up(x, m):
    return (x + m - 1) // m * m


# --------------------------------------------------------------------------
# Fused HG_Block kernel (one image per grid step)
# --------------------------------------------------------------------------
def _hg_block_kernel(x_ref, w1_ref, b1_ref, w2_ref, b2_ref,
                     wsq_ref, bsq_ref, wex_ref, bex_ref,
                     o_ref, yp_ref, *,
                     H, W, K, layer_num, c_in, start_col, identity):
    p = (K - 1) // 2
    _, _, WA, CP = x_ref.shape          # (1, H, WA, 128); real cols at [start_col, start_col+W)
    Wq = o_ref.shape[2]

    # Zero the depthwise scratch once per image: provides the zero row-halo (rows [0,p) and
    # [p+H, H+2p)) and keeps every unwritten column zero.  Re-done every grid step so the
    # kernel has no cross-step scratch state (safe with "parallel"/megacore).
    yp_ref[...] = jnp.zeros_like(yp_ref)

    # Column-index iota, computed once and reused by every layer's interior mask.
    col = jax.lax.broadcasted_iota(jnp.int32, (1, WA, 1), 1)

    x_val = x_ref[0]                    # (H, WA, 128) f32
    cur = x_val                         # chain activation, current column frame offset `a`
    a = start_col
    # Packed aggregation buffer in frame 0 (real cols [0, W)): input occupies lanes [0, c_in).
    p_agg = x_val[:, start_col:start_col + Wq, :]

    for i in range(layer_num):
        # ---- 1x1 conv (+folded BN, no act): one (H*WA,128)@(128,128) MXU matmul ----------
        y1 = jnp.dot(cur.reshape(H * WA, CP), w1_ref[i],
                     preferred_element_type=jnp.float32) + b1_ref[i]
        y1 = y1.reshape(H, WA, CP)
        # Zero everything outside the valid columns: provides the W-direction 'same' padding
        # for the depthwise and kills bias/garbage in stale columns.
        y1 = jnp.where((col >= a) & (col < a + W), y1, 0.0)

        # ---- depthwise KxK conv (+folded BN) + ReLU --------------------------------------
        # Store the (masked) 1x1 result into the scratch interior rows; halo rows stay zero.
        yp_ref[pl.ds(p, H), pl.ds(0, WA), :] = y1
        win = yp_ref[...]                                   # (H+2p, WY, 128)
        acc = jnp.zeros((H, WA, CP), jnp.float32)
        for dx in range(K):                                 # column shift: extraction slice,
            sh = win[:, dx:dx + WA, :]                      # reused across the dy taps
            for dy in range(K):                             # row shift: leading-axis slice
                acc = acc + sh[dy:dy + H, :, :] * w2_ref[i, dy * K + dx]
        z = jnp.maximum(acc + b2_ref[i], 0.0)               # (H, WA, 128)

        # The output frame drifted left by p.  Pack this layer's output (its lanes are
        # disjoint from everything already in p_agg) into the aggregation buffer.
        a = a - p
        p_agg = p_agg + z[:, a:a + Wq, :]
        cur = z

    # ---- aggregation: squeeze 1x1 -> ReLU -> excitation 1x1 -> ReLU (-> +identity) -------
    m2 = p_agg.reshape(H * Wq, CP)
    sq = jnp.maximum(
        jnp.dot(m2, wsq_ref[...], preferred_element_type=jnp.float32) + bsq_ref[...], 0.0)
    ex = jnp.maximum(
        jnp.dot(sq, wex_ref[...], preferred_element_type=jnp.float32) + bex_ref[...], 0.0)
    if identity:
        lane = jax.lax.broadcasted_iota(jnp.int32, (1, CP), 1)
        ex = ex + jnp.where(lane < c_in, m2, 0.0)           # original input lives at lanes [0,c_in)
    o_ref[...] = ex.reshape(1, H, Wq, ex.shape[-1]).astype(o_ref.dtype)


# --------------------------------------------------------------------------
# Wrapper
# --------------------------------------------------------------------------
def hg_block_forward(x_nhwc, packed, *, kernel_size, layer_num, in_channels,
                     mid_channels, out_channels, identity=False):
    del mid_channels  # weights are already packed per layer
    K = kernel_size
    p = (K - 1) // 2
    N, H, W, cx = x_nhwc.shape
    assert cx == in_channels
    if identity and in_channels != out_channels:             # compare REAL channel counts
        raise ValueError("identity=True requires in_channels == out_channels")

    CP = packed["w1"].shape[-1]
    CSQP = packed["w_sq"].shape[-1]
    COUTP = packed["w_ex"].shape[-1]

    start_col = layer_num * p                                 # initial column-frame offset
    Wq = _round_up(W, 8)                                      # aggregation / output width
    WA = _round_up(max(start_col + Wq, start_col + W + p), 8)  # activation width
    WY = _round_up(WA + 2 * p, 8)                             # depthwise scratch width

    # Place the real image at cols [start_col, start_col+W), lanes [0, in_channels).
    x_prep = jnp.zeros((N, H, WA, CP), jnp.float32)
    x_prep = x_prep.at[:, :, start_col:start_col + W, :in_channels].set(
        x_nhwc.astype(jnp.float32))

    w_bytes = 4 * sum(int(packed[k].size)
                      for k in ("w1", "b1", "w2", "b2", "w_sq", "b_sq", "w_ex", "b_ex"))
    flops = N * (layer_num * (2 * H * WA * CP * CP + 2 * K * K * H * WA * CP)
                 + 2 * H * Wq * CP * CSQP + 2 * H * Wq * CSQP * COUTP)
    bytes_accessed = 4 * int(x_prep.size) + w_bytes + 4 * N * H * Wq * COUTP

    out = pl.pallas_call(
        functools.partial(_hg_block_kernel, H=H, W=W, K=K, layer_num=layer_num,
                          c_in=in_channels, start_col=start_col, identity=identity),
        out_shape=jax.ShapeDtypeStruct((N, H, Wq, COUTP), x_nhwc.dtype),
        grid=(N,),
        in_specs=[
            pl.BlockSpec((1, H, WA, CP), lambda n: (n, 0, 0, 0)),
            pl.BlockSpec(packed["w1"].shape, lambda n: (0, 0, 0)),
            pl.BlockSpec(packed["b1"].shape, lambda n: (0, 0, 0)),
            pl.BlockSpec(packed["w2"].shape, lambda n: (0, 0, 0)),
            pl.BlockSpec(packed["b2"].shape, lambda n: (0, 0, 0)),
            pl.BlockSpec(packed["w_sq"].shape, lambda n: (0, 0)),
            pl.BlockSpec(packed["b_sq"].shape, lambda n: (0, 0)),
            pl.BlockSpec(packed["w_ex"].shape, lambda n: (0, 0)),
            pl.BlockSpec(packed["b_ex"].shape, lambda n: (0, 0)),
        ],
        out_specs=pl.BlockSpec((1, H, Wq, COUTP), lambda n: (n, 0, 0, 0)),
        scratch_shapes=[pltpu.VMEM((H + 2 * p, WY, CP), jnp.float32)],
        compiler_params=pltpu.CompilerParams(dimension_semantics=("parallel",)),
        cost_estimate=pl.CostEstimate(flops=flops, transcendentals=0,
                                      bytes_accessed=bytes_accessed),
    )(x_prep, packed["w1"], packed["b1"], packed["w2"], packed["b2"],
      packed["w_sq"], packed["b_sq"], packed["w_ex"], packed["b_ex"])
    return out[:, :, :W, :out_channels]


# --------------------------------------------------------------------------
# Parameter init (deterministic; BN folded; weights packed into the 128-lane layout)
# --------------------------------------------------------------------------
def _fold_bn(key, c):
    kg, kb, km, kv = jax.random.split(key, 4)
    gamma = jax.random.uniform(kg, (c,), jnp.float32, 0.5, 1.5)
    beta = 0.1 * jax.random.normal(kb, (c,), jnp.float32)
    mean = 0.1 * jax.random.normal(km, (c,), jnp.float32)
    var = jax.random.uniform(kv, (c,), jnp.float32, 0.5, 1.5)
    scale = gamma / jnp.sqrt(var + BN_EPS)
    bias = beta - mean * scale
    return scale, bias


def init_hg_block_params(key, in_channels, mid_channels, out_channels, kernel_size, layer_num):
    K = kernel_size
    total = in_channels + layer_num * mid_channels
    assert total <= LANE, "packed-lane fusion requires in + layer_num*mid <= 128"
    csq = out_channels // 2
    CP = LANE
    CSQP = _round_up(csq, LANE)
    COUTP = _round_up(out_channels, LANE)

    real_layers = []
    w1_p, b1_p, w2_p, b2_p = [], [], [], []
    for i in range(layer_num):
        cin = in_channels if i == 0 else mid_channels
        src = 0 if i == 0 else in_channels + (i - 1) * mid_channels
        dst = in_channels + i * mid_channels
        key, k1, k2, kb1, kb2 = jax.random.split(key, 5)
        w1 = 0.1 * jax.random.normal(k1, (cin, mid_channels), jnp.float32)      # 1x1 conv
        s1, b1 = _fold_bn(kb1, mid_channels)
        w1f = w1 * s1[None, :]
        w2 = 0.1 * jax.random.normal(k2, (K * K, mid_channels), jnp.float32)    # depthwise
        s2, b2 = _fold_bn(kb2, mid_channels)
        w2f = w2 * s2[None, :]
        real_layers.append((w1f, b1, w2f, b2))
        w1_p.append(jnp.zeros((CP, CP), jnp.float32)
                    .at[src:src + cin, dst:dst + mid_channels].set(w1f))
        b1_p.append(jnp.zeros((1, CP), jnp.float32).at[0, dst:dst + mid_channels].set(b1))
        w2_p.append(jnp.zeros((K * K, CP), jnp.float32)
                    .at[:, dst:dst + mid_channels].set(w2f))
        b2_p.append(jnp.zeros((1, CP), jnp.float32).at[0, dst:dst + mid_channels].set(b2))

    key, ksq, kex, kbsq, kbex = jax.random.split(key, 5)
    w_sq = 0.1 * jax.random.normal(ksq, (total, csq), jnp.float32)
    s_sq, b_sq = _fold_bn(kbsq, csq)
    w_sqf = w_sq * s_sq[None, :]
    w_ex = 0.1 * jax.random.normal(kex, (csq, out_channels), jnp.float32)
    s_ex, b_ex = _fold_bn(kbex, out_channels)
    w_exf = w_ex * s_ex[None, :]

    packed = {
        "w1": jnp.stack(w1_p),                                   # (L, 128, 128)
        "b1": jnp.stack(b1_p),                                   # (L, 1, 128)
        "w2": jnp.stack(w2_p),                                   # (L, K*K, 128)
        "b2": jnp.stack(b2_p),                                   # (L, 1, 128)
        "w_sq": jnp.zeros((CP, CSQP), jnp.float32).at[:total, :csq].set(w_sqf),
        "b_sq": jnp.zeros((1, CSQP), jnp.float32).at[0, :csq].set(b_sq),
        "w_ex": jnp.zeros((CSQP, COUTP), jnp.float32).at[:csq, :out_channels].set(w_exf),
        "b_ex": jnp.zeros((1, COUTP), jnp.float32).at[0, :out_channels].set(b_ex),
    }
    real = {"layers": real_layers, "w_sq": w_sqf, "b_sq": b_sq, "w_ex": w_exf, "b_ex": b_ex}
    return packed, real


# --------------------------------------------------------------------------
# Pure-JAX reference (mirrors the PyTorch module, no Pallas) for the parity check
# --------------------------------------------------------------------------
def hg_block_reference(x_nhwc, real, kernel_size, identity=False):
    K = kernel_size
    p = (K - 1) // 2
    cur = x_nhwc
    outs = [x_nhwc]
    for (w1, b1, w2, b2) in real["layers"]:
        y = jnp.einsum("nhwc,cd->nhwd", cur, w1) + b1
        N, H, W, _ = y.shape
        yp = jnp.pad(y, ((0, 0), (p, p), (p, p), (0, 0)))
        acc = jnp.zeros_like(y)
        for dx in range(K):
            for dy in range(K):
                acc = acc + yp[:, dy:dy + H, dx:dx + W, :] * w2[dy * K + dx]
        cur = jnp.maximum(acc + b2, 0.0)
        outs.append(cur)
    cat = jnp.concatenate(outs, axis=-1)
    sq = jnp.maximum(jnp.einsum("nhwc,cd->nhwd", cat, real["w_sq"]) + real["b_sq"], 0.0)
    ex = jnp.maximum(jnp.einsum("nhwc,cd->nhwd", sq, real["w_ex"]) + real["b_ex"], 0.0)
    if identity:
        ex = ex + x_nhwc
    return ex


if __name__ == "__main__":
    # Small deterministic config (PyTorch HG_Block: light_block=True, use_lab=False)
    N, C_IN, H, W = 2, 16, 8, 8
    MID, C_OUT = 16, 32
    K, LAYER_NUM = 3, 4
    IDENTITY = False

    key = jax.random.PRNGKey(0)
    key, kx = jax.random.split(key)
    x_nchw = jax.random.normal(kx, (N, C_IN, H, W), jnp.float32)   # PyTorch NCHW input
    x_nhwc = jnp.transpose(x_nchw, (0, 2, 3, 1))                   # kernel layout NHWC

    packed, real = init_hg_block_params(key, C_IN, MID, C_OUT, K, LAYER_NUM)

    fwd = jax.jit(functools.partial(
        hg_block_forward, kernel_size=K, layer_num=LAYER_NUM, in_channels=C_IN,
        mid_channels=MID, out_channels=C_OUT, identity=IDENTITY))
    out_nhwc = fwd(x_nhwc, packed)
    out_nchw = jnp.transpose(out_nhwc, (0, 3, 1, 2))               # back to NCHW
    jax.block_until_ready(out_nchw)

    # Cross-check against the pure-JAX reference
    ref_nhwc = hg_block_reference(x_nhwc, real, K, identity=IDENTITY)
    assert out_nchw.shape == (N, C_OUT, H, W)
    err = float(jnp.max(jnp.abs(out_nhwc - ref_nhwc)))
    assert jnp.allclose(out_nhwc, ref_nhwc, rtol=1e-4, atol=1e-4), f"mismatch vs ref: {err}"

    print("KERNEL_OK")
</pallas_src>

<mosaic_0001>
module attributes {stable_mosaic.version = 11 : i64} {
  func.func @_hg_block_kernel(%arg0: i32, %arg1: memref<1x8x16x128xf32, #tpu.memory_space<vmem>>, %arg2: memref<4x128x128xf32, #tpu.memory_space<vmem>>, %arg3: memref<4x1x128xf32, #tpu.memory_space<vmem>>, %arg4: memref<4x9x128xf32, #tpu.memory_space<vmem>>, %arg5: memref<4x1x128xf32, #tpu.memory_space<vmem>>, %arg6: memref<128x128xf32, #tpu.memory_space<vmem>>, %arg7: memref<1x128xf32, #tpu.memory_space<vmem>>, %arg8: memref<128x128xf32, #tpu.memory_space<vmem>>, %arg9: memref<1x128xf32, #tpu.memory_space<vmem>>, %arg10: memref<1x8x8x128xf32, #tpu.memory_space<vmem>>, %arg11: memref<10x24x128xf32, #tpu.memory_space<vmem>>) attributes {dimension_semantics = [#tpu.dimension_semantics<parallel>], iteration_bounds = array<i64: 2>, scalar_prefetch = 0 : i64, scratch_operands = 1 : i64, tpu.core_type = #tpu.core_type<tc>, window_params = [{transform_indices = @transform_0, window_bounds = array<i64: 1, 8, 16, 128>}, {pipeline_mode = #tpu.pipeline_mode<synchronous>, transform_indices = @transform_1, window_bounds = array<i64: 4, 128, 128>}, {pipeline_mode = #tpu.pipeline_mode<synchronous>, transform_indices = @transform_2, window_bounds = array<i64: 4, 1, 128>}, {pipeline_mode = #tpu.pipeline_mode<synchronous>, transform_indices = @transform_3, window_bounds = array<i64: 4, 9, 128>}, {pipeline_mode = #tpu.pipeline_mode<synchronous>, transform_indices = @transform_4, window_bounds = array<i64: 4, 1, 128>}, {pipeline_mode = #tpu.pipeline_mode<synchronous>, transform_indices = @transform_5, window_bounds = array<i64: 128, 128>}, {pipeline_mode = #tpu.pipeline_mode<synchronous>, transform_indices = @transform_6, window_bounds = array<i64: 1, 128>}, {pipeline_mode = #tpu.pipeline_mode<synchronous>, transform_indices = @transform_7, window_bounds = array<i64: 128, 128>}, {pipeline_mode = #tpu.pipeline_mode<synchronous>, transform_indices = @transform_8, window_bounds = array<i64: 1, 128>}, {transform_indices = @transform_9, window_bounds = array<i64: 1, 8, 8, 128>}]} {
    %cst = arith.constant 0.000000e+00 : f32
    %0 = vector.broadcast %cst : f32 to vector<10x24x128xf32>
    %c0 = arith.constant 0 : index
    %c0_0 = arith.constant 0 : index
    %c0_1 = arith.constant 0 : index
    %1 = vector.load %arg11[%c0, %c0_0, %c0_1] : memref<10x24x128xf32, #tpu.memory_space<vmem>>, vector<10x24x128xf32>
    tpu.vector_store %arg11[%c0, %c0_0, %c0_1], %0 {strides = array<i32>} : memref<10x24x128xf32, #tpu.memory_space<vmem>>, vector<10x24x128xf32>,
    %2 = tpu.iota {dimensions = array<i32: 1>} : vector<1x16x1xi32>
    %c0_2 = arith.constant 0 : index
    %c0_3 = arith.constant 0 : index
    %c0_4 = arith.constant 0 : index
    %c0_5 = arith.constant 0 : index
    %3 = vector.load %arg1[%c0_2, %c0_3, %c0_4, %c0_5] : memref<1x8x16x128xf32, #tpu.memory_space<vmem>>, vector<1x8x16x128xf32>
    %4 = vector.shape_cast %3 : vector<1x8x16x128xf32> to vector<8x16x128xf32>
    %5 = vector.extract_strided_slice %4 {offsets = [0, 4, 0], sizes = [8, 8, 128], strides = [1, 1, 1]} : vector<8x16x128xf32> to vector<8x8x128xf32>
    %6 = vector.shape_cast %4 : vector<8x16x128xf32> to vector<128x128xf32>
    %c0_6 = arith.constant 0 : index
    %c0_7 = arith.constant 0 : index
    %c0_8 = arith.constant 0 : index
    %7 = vector.load %arg2[%c0_6, %c0_7, %c0_8] : memref<4x128x128xf32, #tpu.memory_space<vmem>>, vector<1x128x128xf32>
    %8 = vector.shape_cast %7 : vector<1x128x128xf32> to vector<128x128xf32>
    %cst_9 = arith.constant dense<0.000000e+00> : vector<128x128xf32>
    %9 = tpu.matmul %6, %8, %cst_9 {dimension_numbers = #tpu.dot_dimension_numbers<[1], [0], [0], [1], [0, 0, 1, 1], [], []>} : vector<128x128xf32>, vector<128x128xf32>, vector<128x128xf32> -> vector<128x128xf32>
    %c0_10 = arith.constant 0 : index
    %c0_11 = arith.constant 0 : index
    %c0_12 = arith.constant 0 : index
    %10 = vector.load %arg3[%c0_10, %c0_11, %c0_12] : memref<4x1x128xf32, #tpu.memory_space<vmem>>, vector<1x1x128xf32>
    %11 = vector.shape_cast %10 : vector<1x1x128xf32> to vector<1x128xf32>
    %12 = vector.broadcast %11 : vector<1x128xf32> to vector<128x128xf32>
    %13 = arith.addf %9, %12 : vector<128x128xf32>
    %14 = vector.shape_cast %13 : vector<128x128xf32> to vector<8x16x128xf32>
    %c4_i32 = arith.constant 4 : i32
    %15 = vector.broadcast %c4_i32 : i32 to vector<1x16x1xi32>
    %16 = arith.cmpi sge, %2, %15 : vector<1x16x1xi32>
    %c12_i32 = arith.constant 12 : i32
    %17 = vector.broadcast %c12_i32 : i32 to vector<1x16x1xi32>
    %18 = arith.cmpi slt, %2, %17 : vector<1x16x1xi32>
    %19 = arith.andi %16, %18 : vector<1x16x1xi1>
    %cst_13 = arith.constant 0.000000e+00 : f32
    %20 = vector.shape_cast %19 : vector<1x16x1xi1> to vector<1x16x1xi1>
    %21 = vector.broadcast %20 : vector<1x16x1xi1> to vector<8x16x128xi1>
    %22 = vector.broadcast %cst_13 : f32 to vector<8x16x128xf32>
    %23 = arith.select %21, %14, %22 : vector<8x16x128xi1>, vector<8x16x128xf32>
    %c1 = arith.constant 1 : index
    %c0_14 = arith.constant 0 : index
    %c0_15 = arith.constant 0 : index
    %24 = vector.load %arg11[%c1, %c0_14, %c0_15] : memref<10x24x128xf32, #tpu.memory_space<vmem>>, vector<8x16x128xf32>
    tpu.vector_store %arg11[%c1, %c0_14, %c0_15], %23 {strides = array<i32>} : memref<10x24x128xf32, #tpu.memory_space<vmem>>, vector<8x16x128xf32>,
    %c0_16 = arith.constant 0 : index
    %c0_17 = arith.constant 0 : index
    %c0_18 = arith.constant 0 : index
    %25 = vector.load %arg11[%c0_16, %c0_17, %c0_18] : memref<10x24x128xf32, #tpu.memory_space<vmem>>, vector<10x24x128xf32>
    %cst_19 = arith.constant 0.000000e+00 : f32
    %26 = vector.broadcast %cst_19 : f32 to vector<8x16x128xf32>
    %27 = vector.extract_strided_slice %25 {offsets = [0, 0, 0], sizes = [10, 16, 128], strides = [1, 1, 1]} : vector<10x24x128xf32> to vector<10x16x128xf32>
    %28 = vector.extract_strided_slice %27 {offsets = [0, 0, 0], sizes = [8, 16, 128], strides = [1, 1, 1]} : vector<10x16x128xf32> to vector<8x16x128xf32>
    %c0_20 = arith.constant 0 : index
    %c0_21 = arith.constant 0 : index
    %c0_22 = arith.constant 0 : index
    %29 = vector.load %arg4[%c0_20, %c0_21, %c0_22] : memref<4x9x128xf32, #tpu.memory_space<vmem>>, vector<1x1x128xf32>
    %30 = vector.shape_cast %29 : vector<1x1x128xf32> to vector<128xf32>
    %31 = vector.shape_cast %30 : vector<128xf32> to vector<1x1x128xf32>
    %32 = vector.broadcast %31 : vector<1x1x128xf32> to vector<8x16x128xf32>
    %33 = arith.mulf %28, %32 : vector<8x16x128xf32>
    %34 = arith.addf %26, %33 : vector<8x16x128xf32>
    %35 = vector.extract_strided_slice %27 {offsets = [1, 0, 0], sizes = [8, 16, 128], strides = [1, 1, 1]} : vector<10x16x128xf32> to vector<8x16x128xf32>
    %c0_23 = arith.constant 0 : index
    %c3 = arith.constant 3 : index
    %c0_24 = arith.constant 0 : index
    %36 = vector.load %arg4[%c0_23, %c3, %c0_24] : memref<4x9x128xf32, #tpu.memory_space<vmem>>, vector<1x1x128xf32>
    %37 = vector.shape_cast %36 : vector<1x1x128xf32> to vector<128xf32>
    %38 = vector.shape_cast %37 : vector<128xf32> to vector<1x1x128xf32>
    %39 = vector.broadcast %38 : vector<1x1x128xf32> to vector<8x16x128xf32>
    %40 = arith.mulf %35, %39 : vector<8x16x128xf32>
    %41 = arith.addf %34, %40 : vector<8x16x128xf32>
    %42 = vector.extract_strided_slice %27 {offsets = [2, 0, 0], sizes = [8, 16, 128], strides = [1, 1, 1]} : vector<10x16x128xf32> to vector<8x16x128xf32>
    %c0_25 = arith.constant 0 : index
    %c6 = arith.constant 6 : index
    %c0_26 = arith.constant 0 : index
    %43 = vector.load %arg4[%c0_25, %c6, %c0_26] : memref<4x9x128xf32, #tpu.memory_space<vmem>>, vector<1x1x128xf32>
    %44 = vector.shape_cast %43 : vector<1x1x128xf32> to vector<128xf32>
    %45 = vector.shape_cast %44 : vector<128xf32> to vector<1x1x128xf32>
    %46 = vector.broadcast %45 : vector<1x1x128xf32> to vector<8x16x128xf32>
    %47 = arith.mulf %42, %46 : vector<8x16x128xf32>
    %48 = arith.addf %41, %47 : vector<8x16x128xf32>
    %49 = vector.extract_strided_slice %25 {offsets = [0, 1, 0], sizes = [10, 16, 128], strides = [1, 1, 1]} : vector<10x24x128xf32> to vector<10x16x128xf32>
    %50 = vector.extract_strided_slice %49 {offsets = [0, 0, 0], sizes = [8, 16, 128], strides = [1, 1, 1]} : vector<10x16x128xf32> to vector<8x16x128xf32>
    %c0_27 = arith.constant 0 : index
    %c1_28 = arith.constant 1 : index
    %c0_29 = arith.constant 0 : index
    %51 = vector.load %arg4[%c0_27, %c1_28, %c0_29] : memref<4x9x128xf32, #tpu.memory_space<vmem>>, vector<1x1x128xf32>
    %52 = vector.shape_cast %51 : vector<1x1x128xf32> to vector<128xf32>
    %53 = vector.shape_cast %52 : vector<128xf32> to vector<1x1x128xf32>
    %54 = vector.broadcast %53 : vector<1x1x128xf32> to vector<8x16x128xf32>
    %55 = arith.mulf %50, %54 : vector<8x16x128xf32>
    %56 = arith.addf %48, %55 : vector<8x16x128xf32>
    %57 = vector.extract_strided_slice %49 {offsets = [1, 0, 0], sizes = [8, 16, 128], strides = [1, 1, 1]} : vector<10x16x128xf32> to vector<8x16x128xf32>
    %c0_30 = arith.constant 0 : index
    %c4 = arith.constant 4 : index
    %c0_31 = arith.constant 0 : index
    %58 = vector.load %arg4[%c0_30, %c4, %c0_31] : memref<4x9x128xf32, #tpu.memory_space<vmem>>, vector<1x1x128xf32>
    %59 = vector.shape_cast %58 : vector<1x1x128xf32> to vector<128xf32>
    %60 = vector.shape_cast %59 : vector<128xf32> to vector<1x1x128xf32>
    %61 = vector.broadcast %60 : vector<1x1x128xf32> to vector<8x16x128xf32>
    %62 = arith.mulf %57, %61 : vector<8x16x128xf32>
    %63 = arith.addf %56, %62 : vector<8x16x128xf32>
    %64 = vector.extract_strided_slice %49 {offsets = [2, 0, 0], sizes = [8, 16, 128], strides = [1, 1, 1]} : vector<10x16x128xf32> to vector<8x16x128xf32>
    %c0_32 = arith.constant 0 : index
    %c7 = arith.constant 7 : index
    %c0_33 = arith.constant 0 : index
    %65 = vector.load %arg4[%c0_32, %c7, %c0_33] : memref<4x9x128xf32, #tpu.memory_space<vmem>>, vector<1x1x128xf32>
    %66 = vector.shape_cast %65 : vector<1x1x128xf32> to vector<128xf32>
    %67 = vector.shape_cast %66 : vector<128xf32> to vector<1x1x128xf32>
    %68 = vector.broadcast %67 : vector<1x1x128xf32> to vector<8x16x128xf32>
    %69 = arith.mulf %64, %68 : vector<8x16x128xf32>
    %70 = arith.addf %63, %69 : vector<8x16x128xf32>
    %71 = vector.extract_strided_slice %25 {offsets = [0, 2, 0], sizes = [10, 16, 128], strides = [1, 1, 1]} : vector<10x24x128xf32> to vector<10x16x128xf32>
    %72 = vector.extract_strided_slice %71 {offsets = [0, 0, 0], sizes = [8, 16, 128], strides = [1, 1, 1]} : vector<10x16x128xf32> to vector<8x16x128xf32>
    %c0_34 = arith.constant 0 : index
    %c2 = arith.constant 2 : index
    %c0_35 = arith.constant 0 : index
    %73 = vector.load %arg4[%c0_34, %c2, %c0_35] : memref<4x9x128xf32, #tpu.memory_space<vmem>>, vector<1x1x128xf32>
    %74 = vector.shape_cast %73 : vector<1x1x128xf32> to vector<128xf32>
    %75 = vector.shape_cast %74 : vector<128xf32> to vector<1x1x128xf32>
    %76 = vector.broadcast %75 : vector<1x1x128xf32> to vector<8x16x128xf32>
    %77 = arith.mulf %72, %76 : vector<8x16x128xf32>
    %78 = arith.addf %70, %77 : vector<8x16x128xf32>
    %79 = vector.extract_strided_slice %71 {offsets = [1, 0, 0], sizes = [8, 16, 128], strides = [1, 1, 1]} : vector<10x16x128xf32> to vector<8x16x128xf32>
    %c0_36 = arith.constant 0 : index
    %c5 = arith.constant 5 : index
    %c0_37 = arith.constant 0 : index
    %80 = vector.load %arg4[%c0_36, %c5, %c0_37] : memref<4x9x128xf32, #tpu.memory_space<vmem>>, vector<1x1x128xf32>
    %81 = vector.shape_cast %80 : vector<1x1x128xf32> to vector<128xf32>
    %82 = vector.shape_cast %81 : vector<128xf32> to vector<1x1x128xf32>
    %83 = vector.broadcast %82 : vector<1x1x128xf32> to vector<8x16x128xf32>
    %84 = arith.mulf %79, %83 : vector<8x16x128xf32>
    %85 = arith.addf %78, %84 : vector<8x16x128xf32>
    %86 = vector.extract_strided_slice %71 {offsets = [2, 0, 0], sizes = [8, 16, 128], strides = [1, 1, 1]} : vector<10x16x128xf32> to vector<8x16x128xf32>
    %c0_38 = arith.constant 0 : index
    %c8 = arith.constant 8 : index
    %c0_39 = arith.constant 0 : index
    %87 = vector.load %arg4[%c0_38, %c8, %c0_39] : memref<4x9x128xf32, #tpu.memory_space<vmem>>, vector<1x1x128xf32>
    %88 = vector.shape_cast %87 : vector<1x1x128xf32> to vector<128xf32>
    %89 = vector.shape_cast %88 : vector<128xf32> to vector<1x1x128xf32>
    %90 = vector.broadcast %89 : vector<1x1x128xf32> to vector<8x16x128xf32>
    %91 = arith.mulf %86, %90 : vector<8x16x128xf32>
    %92 = arith.addf %85, %91 : vector<8x16x128xf32>
    %c0_40 = arith.constant 0 : index
    %c0_41 = arith.constant 0 : index
    %c0_42 = arith.constant 0 : index
    %93 = vector.load %arg5[%c0_40, %c0_41, %c0_42] : memref<4x1x128xf32, #tpu.memory_space<vmem>>, vector<1x1x128xf32>
    %94 = vector.shape_cast %93 : vector<1x1x128xf32> to vector<1x128xf32>
    %95 = vector.shape_cast %94 : vector<1x128xf32> to vector<1x1x128xf32>
    %96 = vector.broadcast %95 : vector<1x1x128xf32> to vector<8x16x128xf32>
    %97 = arith.addf %92, %96 : vector<8x16x128xf32>
    %cst_43 = arith.constant 0.000000e+00 : f32
    %98 = vector.broadcast %cst_43 : f32 to vector<8x16x128xf32>
    %99 = arith.maximumf %97, %98 : vector<8x16x128xf32>
    %100 = vector.extract_strided_slice %99 {offsets = [0, 3, 0], sizes = [8, 8, 128], strides = [1, 1, 1]} : vector<8x16x128xf32> to vector<8x8x128xf32>
    %101 = arith.addf %5, %100 : vector<8x8x128xf32>
    %102 = vector.shape_cast %99 : vector<8x16x128xf32> to vector<128x128xf32>
    %c1_44 = arith.constant 1 : index
    %c0_45 = arith.constant 0 : index
    %c0_46 = arith.constant 0 : index
    %103 = vector.load %arg2[%c1_44, %c0_45, %c0_46] : memref<4x128x128xf32, #tpu.memory_space<vmem>>, vector<1x128x128xf32>
    %104 = vector.shape_cast %103 : vector<1x128x128xf32> to vector<128x128xf32>
    %cst_47 = arith.constant dense<0.000000e+00> : vector<128x128xf32>
    %105 = tpu.matmul %102, %104, %cst_47 {dimension_numbers = #tpu.dot_dimension_numbers<[1], [0], [0], [1], [0, 0, 1, 1], [], []>} : vector<128x128xf32>, vector<128x128xf32>, vector<128x128xf32> -> vector<128x128xf32>
    %c1_48 = arith.constant 1 : index
    %c0_49 = arith.constant 0 : index
    %c0_50 = arith.constant 0 : index
    %106 = vector.load %arg3[%c1_48, %c0_49, %c0_50] : memref<4x1x128xf32, #tpu.memory_space<vmem>>, vector<1x1x128xf32>
    %107 = vector.shape_cast %106 : vector<1x1x128xf32> to vector<1x128xf32>
    %108 = vector.broadcast %107 : vector<1x128xf32> to vector<128x128xf32>
    %109 = arith.addf %105, %108 : vector<128x128xf32>
    %110 = vector.shape_cast %109 : vector<128x128xf32> to vector<8x16x128xf32>
    %c3_i32 = arith.constant 3 : i32
    %111 = vector.broadcast %c3_i32 : i32 to vector<1x16x1xi32>
    %112 = arith.cmpi sge, %2, %111 : vector<1x16x1xi32>
    %c11_i32 = arith.constant 11 : i32
    %113 = vector.broadcast %c11_i32 : i32 to vector<1x16x1xi32>
    %114 = arith.cmpi slt, %2, %113 : vector<1x16x1xi32>
    %115 = arith.andi %112, %114 : vector<1x16x1xi1>
    %cst_51 = arith.constant 0.000000e+00 : f32
    %116 = vector.shape_cast %115 : vector<1x16x1xi1> to vector<1x16x1xi1>
    %117 = vector.broadcast %116 : vector<1x16x1xi1> to vector<8x16x128xi1>
    %118 = vector.broadcast %cst_51 : f32 to vector<8x16x128xf32>
    %119 = arith.select %117, %110, %118 : vector<8x16x128xi1>, vector<8x16x128xf32>
    %c1_52 = arith.constant 1 : index
    %c0_53 = arith.constant 0 : index
    %c0_54 = arith.constant 0 : index
    %120 = vector.load %arg11[%c1_52, %c0_53, %c0_54] : memref<10x24x128xf32, #tpu.memory_space<vmem>>, vector<8x16x128xf32>
    tpu.vector_store %arg11[%c1_52, %c0_53, %c0_54], %119 {strides = array<i32>} : memref<10x24x128xf32, #tpu.memory_space<vmem>>, vector<8x16x128xf32>,
    %c0_55 = arith.constant 0 : index
    %c0_56 = arith.constant 0 : index
    %c0_57 = arith.constant 0 : index
    %121 = vector.load %arg11[%c0_55, %c0_56, %c0_57] : memref<10x24x128xf32, #tpu.memory_space<vmem>>, vector<10x24x128xf32>
    %cst_58 = arith.constant 0.000000e+00 : f32
    %122 = vector.broadcast %cst_58 : f32 to vector<8x16x128xf32>
    %123 = vector.extract_strided_slice %121 {offsets = [0, 0, 0], sizes = [10, 16, 128], strides = [1, 1, 1]} : vector<10x24x128xf32> to vector<10x16x128xf32>
    %124 = vector.extract_strided_slice %123 {offsets = [0, 0, 0], sizes = [8, 16, 128], strides = [1, 1, 1]} : vector<10x16x128xf32> to vector<8x16x128xf32>
    %c1_59 = arith.constant 1 : index
    %c0_60 = arith.constant 0 : index
    %c0_61 = arith.constant 0 : index
    %125 = vector.load %arg4[%c1_59, %c0_60, %c0_61] : memref<4x9x128xf32, #tpu.memory_space<vmem>>, vector<1x1x128xf32>
    %126 = vector.shape_cast %125 : vector<1x1x128xf32> to vector<128xf32>
    %127 = vector.shape_cast %126 : vector<128xf32> to vector<1x1x128xf32>
    %128 = vector.broadcast %127 : vector<1x1x128xf32> to vector<8x16x128xf32>
    %129 = arith.mulf %124, %128 : vector<8x16x128xf32>
    %130 = arith.addf %122, %129 : vector<8x16x128xf32>
    %131 = vector.extract_strided_slice %123 {offsets = [1, 0, 0], sizes = [8, 16, 128], strides = [1, 1, 1]} : vector<10x16x128xf32> to vector<8x16x128xf32>
    %c1_62 = arith.constant 1 : index
    %c3_63 = arith.constant 3 : index
    %c0_64 = arith.constant 0 : index
    %132 = vector.load %arg4[%c1_62, %c3_63, %c0_64] : memref<4x9x128xf32, #tpu.memory_space<vmem>>, vector<1x1x128xf32>
    %133 = vector.shape_cast %132 : vector<1x1x128xf32> to vector<128xf32>
    %134 = vector.shape_cast %133 : vector<128xf32> to vector<1x1x128xf32>
    %135 = vector.broadcast %134 : vector<1x1x128xf32> to vector<8x16x128xf32>
    %136 = arith.mulf %131, %135 : vector<8x16x128xf32>
    %137 = arith.addf %130, %136 : vector<8x16x128xf32>
    %138 = vector.extract_strided_slice %123 {offsets = [2, 0, 0], sizes = [8, 16, 128], strides = [1, 1, 1]} : vector<10x16x128xf32> to vector<8x16x128xf32>
    %c1_65 = arith.constant 1 : index
    %c6_66 = arith.constant 6 : index
    %c0_67 = arith.constant 0 : index
    %139 = vector.load %arg4[%c1_65, %c6_66, %c0_67] : memref<4x9x128xf32, #tpu.memory_space<vmem>>, vector<1x1x128xf32>
    %140 = vector.shape_cast %139 : vector<1x1x128xf32> to vector<128xf32>
    %141 = vector.shape_cast %140 : vector<128xf32> to vector<1x1x128xf32>
    %142 = vector.broadcast %141 : vector<1x1x128xf32> to vector<8x16x128xf32>
    %143 = arith.mulf %138, %142 : vector<8x16x128xf32>
    %144 = arith.addf %137, %143 : vector<8x16x128xf32>
    %145 = vector.extract_strided_slice %121 {offsets = [0, 1, 0], sizes = [10, 16, 128], strides = [1, 1, 1]} : vector<10x24x128xf32> to vector<10x16x128xf32>
    %146 = vector.extract_strided_slice %145 {offsets = [0, 0, 0], sizes = [8, 16, 128], strides = [1, 1, 1]} : vector<10x16x128xf32> to vector<8x16x128xf32>
    %c1_68 = arith.constant 1 : index
    %c1_69 = arith.constant 1 : index
    %c0_70 = arith.constant 0 : index
    %147 = vector.load %arg4[%c1_68, %c1_69, %c0_70] : memref<4x9x128xf32, #tpu.memory_space<vmem>>, vector<1x1x128xf32>
    %148 = vector.shape_cast %147 : vector<1x1x128xf32> to vector<128xf32>
    %149 = vector.shape_cast %148 : vector<128xf32> to vector<1x1x128xf32>
    %150 = vector.broadcast %149 : vector<1x1x128xf32> to vector<8x16x128xf32>
    %151 = arith.mulf %146, %150 : vector<8x16x128xf32>
    %152 = arith.addf %144, %151 : vector<8x16x128xf32>
    %153 = vector.extract_strided_slice %145 {offsets = [1, 0, 0], sizes = [8, 16, 128], strides = [1, 1, 1]} : vector<10x16x128xf32> to vector<8x16x128xf32>
    %c1_71 = arith.constant 1 : index
    %c4_72 = arith.constant 4 : index
    %c0_73 = arith.constant 0 : index
    %154 = vector.load %arg4[%c1_71, %c4_72, %c0_73] : memref<4x9x128xf32, #tpu.memory_space<vmem>>, vector<1x1x128xf32>
    %155 = vector.shape_cast %154 : vector<1x1x128xf32> to vector<128xf32>
    %156 = vector.shape_cast %155 : vector<128xf32> to vector<1x1x128xf32>
    %157 = vector.broadcast %156 : vector<1x1x128xf32> to vector<8x16x128xf32>
    %158 = arith.mulf %153, %157 : vector<8x16x128xf32>
    %159 = arith.addf %152, %158 : vector<8x16x128xf32>
    %160 = vector.extract_strided_slice %145 {offsets = [2, 0, 0], sizes = [8, 16, 128], strides = [1, 1, 1]} : vector<10x16x128xf32> to vector<8x16x128xf32>
    %c1_74 = arith.constant 1 : index
    %c7_75 = arith.constant 7 : index
    %c0_76 = arith.constant 0 : index
    %161 = vector.load %arg4[%c1_74, %c7_75, %c0_76] : memref<4x9x128xf32, #tpu.memory_space<vmem>>, vector<1x1x128xf32>
    %162 = vector.shape_cast %161 : vector<1x1x128xf32> to vector<128xf32>
    %163 = vector.shape_cast %162 : vector<128xf32> to vector<1x1x128xf32>
    %164 = vector.broadcast %163 : vector<1x1x128xf32> to vector<8x16x128xf32>
    %165 = arith.mulf %160, %164 : vector<8x16x128xf32>
    %166 = arith.addf %159, %165 : vector<8x16x128xf32>
    %167 = vector.extract_strided_slice %121 {offsets = [0, 2, 0], sizes = [10, 16, 128], strides = [1, 1, 1]} : vector<10x24x128xf32> to vector<10x16x128xf32>
    %168 = vector.extract_strided_slice %167 {offsets = [0, 0, 0], sizes = [8, 16, 128], strides = [1, 1, 1]} : vector<10x16x128xf32> to vector<8x16x128xf32>
    %c1_77 = arith.constant 1 : index
    %c2_78 = arith.constant 2 : index
    %c0_79 = arith.constant 0 : index
    %169 = vector.load %arg4[%c1_77, %c2_78, %c0_79] : memref<4x9x128xf32, #tpu.memory_space<vmem>>, vector<1x1x128xf32>
    %170 = vector.shape_cast %169 : vector<1x1x128xf32> to vector<128xf32>
    %171 = vector.shape_cast %170 : vector<128xf32> to vector<1x1x128xf32>
    %172 = vector.broadcast %171 : vector<1x1x128xf32> to vector<8x16x128xf32>
    %173 = arith.mulf %168, %172 : vector<8x16x128xf32>
    %174 = arith.addf %166, %173 : vector<8x16x128xf32>
    %175 = vector.extract_strided_slice %167 {offsets = [1, 0, 0], sizes = [8, 16, 128], strides = [1, 1, 1]} : vector<10x16x128xf32> to vector<8x16x128xf32>
    %c1_80 = arith.constant 1 : index
    %c5_81 = arith.constant 5 : index
    %c0_82 = arith.constant 0 : index
    %176 = vector.load %arg4[%c1_80, %c5_81, %c0_82] : memref<4x9x128xf32, #tpu.memory_space<vmem>>, vector<1x1x128xf32>
    %177 = vector.shape_cast %176 : vector<1x1x128xf32> to vector<128xf32>
    %178 = vector.shape_cast %177 : vector<128xf32> to vector<1x1x128xf32>
    %179 = vector.broadcast %178 : vector<1x1x128xf32> to vector<8x16x128xf32>
    %180 = arith.mulf %175, %179 : vector<8x16x128xf32>
    %181 = arith.addf %174, %180 : vector<8x16x128xf32>
    %182 = vector.extract_strided_slice %167 {offsets = [2, 0, 0], sizes = [8, 16, 128], strides = [1, 1, 1]} : vector<10x16x128xf32> to vector<8x16x128xf32>
    %c1_83 = arith.constant 1 : index
    %c8_84 = arith.constant 8 : index
    %c0_85 = arith.constant 0 : index
    %183 = vector.load %arg4[%c1_83, %c8_84, %c0_85] : memref<4x9x128xf32, #tpu.memory_space<vmem>>, vector<1x1x128xf32>
    %184 = vector.shape_cast %183 : vector<1x1x128xf32> to vector<128xf32>
    %185 = vector.shape_cast %184 : vector<128xf32> to vector<1x1x128xf32>
    %186 = vector.broadcast %185 : vector<1x1x128xf32> to vector<8x16x128xf32>
    %187 = arith.mulf %182, %186 : vector<8x16x128xf32>
    %188 = arith.addf %181, %187 : vector<8x16x128xf32>
    %c1_86 = arith.constant 1 : index
    %c0_87 = arith.constant 0 : index
    %c0_88 = arith.constant 0 : index
    %189 = vector.load %arg5[%c1_86, %c0_87, %c0_88] : memref<4x1x128xf32, #tpu.memory_space<vmem>>, vector<1x1x128xf32>
    %190 = vector.shape_cast %189 : vector<1x1x128xf32> to vector<1x128xf32>
    %191 = vector.shape_cast %190 : vector<1x128xf32> to vector<1x1x128xf32>
    %192 = vector.broadcast %191 : vector<1x1x128xf32> to vector<8x16x128xf32>
    %193 = arith.addf %188, %192 : vector<8x16x128xf32>
    %cst_89 = arith.constant 0.000000e+00 : f32
    %194 = vector.broadcast %cst_89 : f32 to vector<8x16x128xf32>
    %195 = arith.maximumf %193, %194 : vector<8x16x128xf32>
    %196 = vector.extract_strided_slice %195 {offsets = [0, 2, 0], sizes = [8, 8, 128], strides = [1, 1, 1]} : vector<8x16x128xf32> to vector<8x8x128xf32>
    %197 = arith.addf %101, %196 : vector<8x8x128xf32>
    %198 = vector.shape_cast %195 : vector<8x16x128xf32> to vector<128x128xf32>
    %c2_90 = arith.constant 2 : index
    %c0_91 = arith.constant 0 : index
    %c0_92 = arith.constant 0 : index
    %199 = vector.load %arg2[%c2_90, %c0_91, %c0_92] : memref<4x128x128xf32, #tpu.memory_space<vmem>>, vector<1x128x128xf32>
    %200 = vector.shape_cast %199 : vector<1x128x128xf32> to vector<128x128xf32>
    %cst_93 = arith.constant dense<0.000000e+00> : vector<128x128xf32>
    %201 = tpu.matmul %198, %200, %cst_93 {dimension_numbers = #tpu.dot_dimension_numbers<[1], [0], [0], [1], [0, 0, 1, 1], [], []>} : vector<128x128xf32>, vector<128x128xf32>, vector<128x128xf32> -> vector<128x128xf32>
    %c2_94 = arith.constant 2 : index
    %c0_95 = arith.constant 0 : index
    %c0_96 = arith.constant 0 : index
    %202 = vector.load %arg3[%c2_94, %c0_95, %c0_96] : memref<4x1x128xf32, #tpu.memory_space<vmem>>, vector<1x1x128xf32>
    %203 = vector.shape_cast %202 : vector<1x1x128xf32> to vector<1x128xf32>
    %204 = vector.broadcast %203 : vector<1x128xf32> to vector<128x128xf32>
    %205 = arith.addf %201, %204 : vector<128x128xf32>
    %206 = vector.shape_cast %205 : vector<128x128xf32> to vector<8x16x128xf32>
    %c2_i32 = arith.constant 2 : i32
    %207 = vector.broadcast %c2_i32 : i32 to vector<1x16x1xi32>
    %208 = arith.cmpi sge, %2, %207 : vector<1x16x1xi32>
    %c10_i32 = arith.constant 10 : i32
    %209 = vector.broadcast %c10_i32 : i32 to vector<1x16x1xi32>
    %210 = arith.cmpi slt, %2, %209 : vector<1x16x1xi32>
    %211 = arith.andi %208, %210 : vector<1x16x1xi1>
    %cst_97 = arith.constant 0.000000e+00 : f32
    %212 = vector.shape_cast %211 : vector<1x16x1xi1> to vector<1x16x1xi1>
    %213 = vector.broadcast %212 : vector<1x16x1xi1> to vector<8x16x128xi1>
    %214 = vector.broadcast %cst_97 : f32 to vector<8x16x128xf32>
    %215 = arith.select %213, %206, %214 : vector<8x16x128xi1>, vector<8x16x128xf32>
    %c1_98 = arith.constant 1 : index
    %c0_99 = arith.constant 0 : index
    %c0_100 = arith.constant 0 : index
    %216 = vector.load %arg11[%c1_98, %c0_99, %c0_100] : memref<10x24x128xf32, #tpu.memory_space<vmem>>, vector<8x16x128xf32>
    tpu.vector_store %arg11[%c1_98, %c0_99, %c0_100], %215 {strides = array<i32>} : memref<10x24x128xf32, #tpu.memory_space<vmem>>, vector<8x16x128xf32>,
    %c0_101 = arith.constant 0 : index
    %c0_102 = arith.constant 0 : index
    %c0_103 = arith.constant 0 : index
    %217 = vector.load %arg11[%c0_101, %c0_102, %c0_103] : memref<10x24x128xf32, #tpu.memory_space<vmem>>, vector<10x24x128xf32>
    %cst_104 = arith.constant 0.000000e+00 : f32
    %218 = vector.broadcast %cst_104 : f32 to vector<8x16x128xf32>
    %219 = vector.extract_strided_slice %217 {offsets = [0, 0, 0], sizes = [10, 16, 128], strides = [1, 1, 1]} : vector<10x24x128xf32> to vector<10x16x128xf32>
    %220 = vector.extract_strided_slice %219 {offsets = [0, 0, 0], sizes = [8, 16, 128], strides = [1, 1, 1]} : vector<10x16x128xf32> to vector<8x16x128xf32>
    %c2_105 = arith.constant 2 : index
    %c0_106 = arith.constant 0 : index
    %c0_107 = arith.constant 0 : index
    %221 = vector.load %arg4[%c2_105, %c0_106, %c0_107] : memref<4x9x128xf32, #tpu.memory_space<vmem>>, vector<1x1x128xf32>
    %222 = vector.shape_cast %221 : vector<1x1x128xf32> to vector<128xf32>
    %223 = vector.shape_cast %222 : vector<128xf32> to vector<1x1x128xf32>
    %224 = vector.broadcast %223 : vector<1x1x128xf32> to vector<8x16x128xf32>
    %225 = arith.mulf %220, %224 : vector<8x16x128xf32>
    %226 = arith.addf %218, %225 : vector<8x16x128xf32>
    %227 = vector.extract_strided_slice %219 {offsets = [1, 0, 0], sizes = [8, 16, 128], strides = [1, 1, 1]} : vector<10x16x128xf32> to vector<8x16x128xf32>
    %c2_108 = arith.constant 2 : index
    %c3_109 = arith.constant 3 : index
    %c0_110 = arith.constant 0 : index
    %228 = vector.load %arg4[%c2_108, %c3_109, %c0_110] : memref<4x9x128xf32, #tpu.memory_space<vmem>>, vector<1x1x128xf32>
    %229 = vector.shape_cast %228 : vector<1x1x128xf32> to vector<128xf32>
    %230 = vector.shape_cast %229 : vector<128xf32> to vector<1x1x128xf32>
    %231 = vector.broadcast %230 : vector<1x1x128xf32> to vector<8x16x128xf32>
    %232 = arith.mulf %227, %231 : vector<8x16x128xf32>
    %233 = arith.addf %226, %232 : vector<8x16x128xf32>
    %234 = vector.extract_strided_slice %219 {offsets = [2, 0, 0], sizes = [8, 16, 128], strides = [1, 1, 1]} : vector<10x16x128xf32> to vector<8x16x128xf32>
    %c2_111 = arith.constant 2 : index
    %c6_112 = arith.constant 6 : index
    %c0_113 = arith.constant 0 : index
    %235 = vector.load %arg4[%c2_111, %c6_112, %c0_113] : memref<4x9x128xf32, #tpu.memory_space<vmem>>, vector<1x1x128xf32>
    %236 = vector.shape_cast %235 : vector<1x1x128xf32> to vector<128xf32>
    %237 = vector.shape_cast %236 : vector<128xf32> to vector<1x1x128xf32>
    %238 = vector.broadcast %237 : vector<1x1x128xf32> to vector<8x16x128xf32>
    %239 = arith.mulf %234, %238 : vector<8x16x128xf32>
    %240 = arith.addf %233, %239 : vector<8x16x128xf32>
    %241 = vector.extract_strided_slice %217 {offsets = [0, 1, 0], sizes = [10, 16, 128], strides = [1, 1, 1]} : vector<10x24x128xf32> to vector<10x16x128xf32>
    %242 = vector.extract_strided_slice %241 {offsets = [0, 0, 0], sizes = [8, 16, 128], strides = [1, 1, 1]} : vector<10x16x128xf32> to vector<8x16x128xf32>
    %c2_114 = arith.constant 2 : index
    %c1_115 = arith.constant 1 : index
    %c0_116 = arith.constant 0 : index
    %243 = vector.load %arg4[%c2_114, %c1_115, %c0_116] : memref<4x9x128xf32, #tpu.memory_space<vmem>>, vector<1x1x128xf32>
    %244 = vector.shape_cast %243 : vector<1x1x128xf32> to vector<128xf32>
    %245 = vector.shape_cast %244 : vector<128xf32> to vector<1x1x128xf32>
    %246 = vector.broadcast %245 : vector<1x1x128xf32> to vector<8x16x128xf32>
    %247 = arith.mulf %242, %246 : vector<8x16x128xf32>
    %248 = arith.addf %240, %247 : vector<8x16x128xf32>
    %249 = vector.extract_strided_slice %241 {offsets = [1, 0, 0], sizes = [8, 16, 128], strides = [1, 1, 1]} : vector<10x16x128xf32> to vector<8x16x128xf32>
    %c2_117 = arith.constant 2 : index
    %c4_118 = arith.constant 4 : index
    %c0_119 = arith.constant 0 : index
    %250 = vector.load %arg4[%c2_117, %c4_118, %c0_119] : memref<4x9x128xf32, #tpu.memory_space<vmem>>, vector<1x1x128xf32>
    %251 = vector.shape_cast %250 : vector<1x1x128xf32> to vector<128xf32>
    %252 = vector.shape_cast %251 : vector<128xf32> to vector<1x1x128xf32>
    %253 = vector.broadcast %252 : vector<1x1x128xf32> to vector<8x16x128xf32>
    %254 = arith.mulf %249, %253 : vector<8x16x128xf32>
    %255 = arith.addf %248, %254 : vector<8x16x128xf32>
    %256 = vector.extract_strided_slice %241 {offsets = [2, 0, 0], sizes = [8, 16, 128], strides = [1, 1, 1]} : vector<10x16x128xf32> to vector<8x16x128xf32>
    %c2_120 = arith.constant 2 : index
    %c7_121 = arith.constant 7 : index
    %c0_122 = arith.constant 0 : index
    %257 = vector.load %arg4[%c2_120, %c7_121, %c0_122] : memref<4x9x128xf32, #tpu.memory_space<vmem>>, vector<1x1x128xf32>
    %258 = vector.shape_cast %257 : vector<1x1x128xf32> to vector<128xf32>
    %259 = vector.shape_cast %258 : vector<128xf32> to vector<1x1x128xf32>
    %260 = vector.broadcast %259 : vector<1x1x128xf32> to vector<8x16x128xf32>
    %261 = arith.mulf %256, %260 : vector<8x16x128xf32>
    %262 = arith.addf %255, %261 : vector<8x16x128xf32>
    %263 = vector.extract_strided_slice %217 {offsets = [0, 2, 0], sizes = [10, 16, 128], strides = [1, 1, 1]} : vector<10x24x128xf32> to vector<10x16x128xf32>
    %264 = vector.extract_strided_slice %263 {offsets = [0, 0, 0], sizes = [8, 16, 128], strides = [1, 1, 1]} : vector<10x16x128xf32> to vector<8x16x128xf32>
    %c2_123 = arith.constant 2 : index
    %c2_124 = arith.constant 2 : index
    %c0_125 = arith.constant 0 : index
    %265 = vector.load %arg4[%c2_123, %c2_124, %c0_125] : memref<4x9x128xf32, #tpu.memory_space<vmem>>, vector<1x1x128xf32>
    %266 = vector.shape_cast %265 : vector<1x1x128xf32> to vector<128xf32>
    %267 = vector.shape_cast %266 : vector<128xf32> to vector<1x1x128xf32>
    %268 = vector.broadcast %267 : vector<1x1x128xf32> to vector<8x16x128xf32>
    %269 = arith.mulf %264, %268 : vector<8x16x128xf32>
    %270 = arith.addf %262, %269 : vector<8x16x128xf32>
    %271 = vector.extract_strided_slice %263 {offsets = [1, 0, 0], sizes = [8, 16, 128], strides = [1, 1, 1]} : vector<10x16x128xf32> to vector<8x16x128xf32>
    %c2_126 = arith.constant 2 : index
    %c5_127 = arith.constant 5 : index
    %c0_128 = arith.constant 0 : index
    %272 = vector.load %arg4[%c2_126, %c5_127, %c0_128] : memref<4x9x128xf32, #tpu.memory_space<vmem>>, vector<1x1x128xf32>
    %273 = vector.shape_cast %272 : vector<1x1x128xf32> to vector<128xf32>
    %274 = vector.shape_cast %273 : vector<128xf32> to vector<1x1x128xf32>
    %275 = vector.broadcast %274 : vector<1x1x128xf32> to vector<8x16x128xf32>
    %276 = arith.mulf %271, %275 : vector<8x16x128xf32>
    %277 = arith.addf %270, %276 : vector<8x16x128xf32>
    %278 = vector.extract_strided_slice %263 {offsets = [2, 0, 0], sizes = [8, 16, 128], strides = [1, 1, 1]} : vector<10x16x128xf32> to vector<8x16x128xf32>
    %c2_129 = arith.constant 2 : index
    %c8_130 = arith.constant 8 : index
    %c0_131 = arith.constant 0 : index
    %279 = vector.load %arg4[%c2_129, %c8_130, %c0_131] : memref<4x9x128xf32, #tpu.memory_space<vmem>>, vector<1x1x128xf32>
    %280 = vector.shape_cast %279 : vector<1x1x128xf32> to vector<128xf32>
    %281 = vector.shape_cast %280 : vector<128xf32> to vector<1x1x128xf32>
    %282 = vector.broadcast %281 : vector<1x1x128xf32> to vector<8x16x128xf32>
    %283 = arith.mulf %278, %282 : vector<8x16x128xf32>
    %284 = arith.addf %277, %283 : vector<8x16x128xf32>
    %c2_132 = arith.constant 2 : index
    %c0_133 = arith.constant 0 : index
    %c0_134 = arith.constant 0 : index
    %285 = vector.load %arg5[%c2_132, %c0_133, %c0_134] : memref<4x1x128xf32, #tpu.memory_space<vmem>>, vector<1x1x128xf32>
    %286 = vector.shape_cast %285 : vector<1x1x128xf32> to vector<1x128xf32>
    %287 = vector.shape_cast %286 : vector<1x128xf32> to vector<1x1x128xf32>
    %288 = vector.broadcast %287 : vector<1x1x128xf32> to vector<8x16x128xf32>
    %289 = arith.addf %284, %288 : vector<8x16x128xf32>
    %cst_135 = arith.constant 0.000000e+00 : f32
    %290 = vector.broadcast %cst_135 : f32 to vector<8x16x128xf32>
    %291 = arith.maximumf %289, %290 : vector<8x16x128xf32>
    %292 = vector.extract_strided_slice %291 {offsets = [0, 1, 0], sizes = [8, 8, 128], strides = [1, 1, 1]} : vector<8x16x128xf32> to vector<8x8x128xf32>
    %293 = arith.addf %197, %292 : vector<8x8x128xf32>
    %294 = vector.shape_cast %291 : vector<8x16x128xf32> to vector<128x128xf32>
    %c3_136 = arith.constant 3 : index
    %c0_137 = arith.constant 0 : index
    %c0_138 = arith.constant 0 : index
    %295 = vector.load %arg2[%c3_136, %c0_137, %c0_138] : memref<4x128x128xf32, #tpu.memory_space<vmem>>, vector<1x128x128xf32>
    %296 = vector.shape_cast %295 : vector<1x128x128xf32> to vector<128x128xf32>
    %cst_139 = arith.constant dense<0.000000e+00> : vector<128x128xf32>
    %297 = tpu.matmul %294, %296, %cst_139 {dimension_numbers = #tpu.dot_dimension_numbers<[1], [0], [0], [1], [0, 0, 1, 1], [], []>} : vector<128x128xf32>, vector<128x128xf32>, vector<128x128xf32> -> vector<128x128xf32>
    %c3_140 = arith.constant 3 : index
    %c0_141 = arith.constant 0 : index
    %c0_142 = arith.constant 0 : index
    %298 = vector.load %arg3[%c3_140, %c0_141, %c0_142] : memref<4x1x128xf32, #tpu.memory_space<vmem>>, vector<1x1x128xf32>
    %299 = vector.shape_cast %298 : vector<1x1x128xf32> to vector<1x128xf32>
    %300 = vector.broadcast %299 : vector<1x128xf32> to vector<128x128xf32>
    %301 = arith.addf %297, %300 : vector<128x128xf32>
    %302 = vector.shape_cast %301 : vector<128x128xf32> to vector<8x16x128xf32>
    %c1_i32 = arith.constant 1 : i32
    %303 = vector.broadcast %c1_i32 : i32 to vector<1x16x1xi32>
    %304 = arith.cmpi sge, %2, %303 : vector<1x16x1xi32>
    %c9_i32 = arith.constant 9 : i32
    %305 = vector.broadcast %c9_i32 : i32 to vector<1x16x1xi32>
    %306 = arith.cmpi slt, %2, %305 : vector<1x16x1xi32>
    %307 = arith.andi %304, %306 : vector<1x16x1xi1>
    %cst_143 = arith.constant 0.000000e+00 : f32
    %308 = vector.shape_cast %307 : vector<1x16x1xi1> to vector<1x16x1xi1>
    %309 = vector.broadcast %308 : vector<1x16x1xi1> to vector<8x16x128xi1>
    %310 = vector.broadcast %cst_143 : f32 to vector<8x16x128xf32>
    %311 = arith.select %309, %302, %310 : vector<8x16x128xi1>, vector<8x16x128xf32>
    %c1_144 = arith.constant 1 : index
    %c0_145 = arith.constant 0 : index
    %c0_146 = arith.constant 0 : index
    %312 = vector.load %arg11[%c1_144, %c0_145, %c0_146] : memref<10x24x128xf32, #tpu.memory_space<vmem>>, vector<8x16x128xf32>
    tpu.vector_store %arg11[%c1_144, %c0_145, %c0_146], %311 {strides = array<i32>} : memref<10x24x128xf32, #tpu.memory_space<vmem>>, vector<8x16x128xf32>,
    %c0_147 = arith.constant 0 : index
    %c0_148 = arith.constant 0 : index
    %c0_149 = arith.constant 0 : index
    %313 = vector.load %arg11[%c0_147, %c0_148, %c0_149] : memref<10x24x128xf32, #tpu.memory_space<vmem>>, vector<10x24x128xf32>
    %cst_150 = arith.constant 0.000000e+00 : f32
    %314 = vector.broadcast %cst_150 : f32 to vector<8x16x128xf32>
    %315 = vector.extract_strided_slice %313 {offsets = [0, 0, 0], sizes = [10, 16, 128], strides = [1, 1, 1]} : vector<10x24x128xf32> to vector<10x16x128xf32>
    %316 = vector.extract_strided_slice %315 {offsets = [0, 0, 0], sizes = [8, 16, 128], strides = [1, 1, 1]} : vector<10x16x128xf32> to vector<8x16x128xf32>
    %c3_151 = arith.constant 3 : index
    %c0_152 = arith.constant 0 : index
    %c0_153 = arith.constant 0 : index
    %317 = vector.load %arg4[%c3_151, %c0_152, %c0_153] : memref<4x9x128xf32, #tpu.memory_space<vmem>>, vector<1x1x128xf32>
    %318 = vector.shape_cast %317 : vector<1x1x128xf32> to vector<128xf32>
    %319 = vector.shape_cast %318 : vector<128xf32> to vector<1x1x128xf32>
    %320 = vector.broadcast %319 : vector<1x1x128xf32> to vector<8x16x128xf32>
    %321 = arith.mulf %316, %320 : vector<8x16x128xf32>
    %322 = arith.addf %314, %321 : vector<8x16x128xf32>
    %323 = vector.extract_strided_slice %315 {offsets = [1, 0, 0], sizes = [8, 16, 128], strides = [1, 1, 1]} : vector<10x16x128xf32> to vector<8x16x128xf32>
    %c3_154 = arith.constant 3 : index
    %c3_155 = arith.constant 3 : index
    %c0_156 = arith.constant 0 : index
    %324 = vector.load %arg4[%c3_154, %c3_155, %c0_156] : memref<4x9x128xf32, #tpu.memory_space<vmem>>, vector<1x1x128xf32>
    %325 = vector.shape_cast %324 : vector<1x1x128xf32> to vector<128xf32>
    %326 = vector.shape_cast %325 : vector<128xf32> to vector<1x1x128xf32>
    %327 = vector.broadcast %326 : vector<1x1x128xf32> to vector<8x16x128xf32>
    %328 = arith.mulf %323, %327 : vector<8x16x128xf32>
    %329 = arith.addf %322, %328 : vector<8x16x128xf32>
    %330 = vector.extract_strided_slice %315 {offsets = [2, 0, 0], sizes = [8, 16, 128], strides = [1, 1, 1]} : vector<10x16x128xf32> to vector<8x16x128xf32>
    %c3_157 = arith.constant 3 : index
    %c6_158 = arith.constant 6 : index
    %c0_159 = arith.constant 0 : index
    %331 = vector.load %arg4[%c3_157, %c6_158, %c0_159] : memref<4x9x128xf32, #tpu.memory_space<vmem>>, vector<1x1x128xf32>
    %332 = vector.shape_cast %331 : vector<1x1x128xf32> to vector<128xf32>
    %333 = vector.shape_cast %332 : vector<128xf32> to vector<1x1x128xf32>
    %334 = vector.broadcast %333 : vector<1x1x128xf32> to vector<8x16x128xf32>
    %335 = arith.mulf %330, %334 : vector<8x16x128xf32>
    %336 = arith.addf %329, %335 : vector<8x16x128xf32>
    %337 = vector.extract_strided_slice %313 {offsets = [0, 1, 0], sizes = [10, 16, 128], strides = [1, 1, 1]} : vector<10x24x128xf32> to vector<10x16x128xf32>
    %338 = vector.extract_strided_slice %337 {offsets = [0, 0, 0], sizes = [8, 16, 128], strides = [1, 1, 1]} : vector<10x16x128xf32> to vector<8x16x128xf32>
    %c3_160 = arith.constant 3 : index
    %c1_161 = arith.constant 1 : index
    %c0_162 = arith.constant 0 : index
    %339 = vector.load %arg4[%c3_160, %c1_161, %c0_162] : memref<4x9x128xf32, #tpu.memory_space<vmem>>, vector<1x1x128xf32>
    %340 = vector.shape_cast %339 : vector<1x1x128xf32> to vector<128xf32>
    %341 = vector.shape_cast %340 : vector<128xf32> to vector<1x1x128xf32>
    %342 = vector.broadcast %341 : vector<1x1x128xf32> to vector<8x16x128xf32>
    %343 = arith.mulf %338, %342 : vector<8x16x128xf32>
    %344 = arith.addf %336, %343 : vector<8x16x128xf32>
    %345 = vector.extract_strided_slice %337 {offsets = [1, 0, 0], sizes = [8, 16, 128], strides = [1, 1, 1]} : vector<10x16x128xf32> to vector<8x16x128xf32>
    %c3_163 = arith.constant 3 : index
    %c4_164 = arith.constant 4 : index
    %c0_165 = arith.constant 0 : index
    %346 = vector.load %arg4[%c3_163, %c4_164, %c0_165] : memref<4x9x128xf32, #tpu.memory_space<vmem>>, vector<1x1x128xf32>
    %347 = vector.shape_cast %346 : vector<1x1x128xf32> to vector<128xf32>
    %348 = vector.shape_cast %347 : vector<128xf32> to vector<1x1x128xf32>
    %349 = vector.broadcast %348 : vector<1x1x128xf32> to vector<8x16x128xf32>
    %350 = arith.mulf %345, %349 : vector<8x16x128xf32>
    %351 = arith.addf %344, %350 : vector<8x16x128xf32>
    %352 = vector.extract_strided_slice %337 {offsets = [2, 0, 0], sizes = [8, 16, 128], strides = [1, 1, 1]} : vector<10x16x128xf32> to vector<8x16x128xf32>
    %c3_166 = arith.constant 3 : index
    %c7_167 = arith.constant 7 : index
    %c0_168 = arith.constant 0 : index
    %353 = vector.load %arg4[%c3_166, %c7_167, %c0_168] : memref<4x9x128xf32, #tpu.memory_space<vmem>>, vector<1x1x128xf32>
    %354 = vector.shape_cast %353 : vector<1x1x128xf32> to vector<128xf32>
    %355 = vector.shape_cast %354 : vector<128xf32> to vector<1x1x128xf32>
    %356 = vector.broadcast %355 : vector<1x1x128xf32> to vector<8x16x128xf32>
    %357 = arith.mulf %352, %356 : vector<8x16x128xf32>
    %358 = arith.addf %351, %357 : vector<8x16x128xf32>
    %359 = vector.extract_strided_slice %313 {offsets = [0, 2, 0], sizes = [10, 16, 128], strides = [1, 1, 1]} : vector<10x24x128xf32> to vector<10x16x128xf32>
    %360 = vector.extract_strided_slice %359 {offsets = [0, 0, 0], sizes = [8, 16, 128], strides = [1, 1, 1]} : vector<10x16x128xf32> to vector<8x16x128xf32>
    %c3_169 = arith.constant 3 : index
    %c2_170 = arith.constant 2 : index
    %c0_171 = arith.constant 0 : index
    %361 = vector.load %arg4[%c3_169, %c2_170, %c0_171] : memref<4x9x128xf32, #tpu.memory_space<vmem>>, vector<1x1x128xf32>
    %362 = vector.shape_cast %361 : vector<1x1x128xf32> to vector<128xf32>
    %363 = vector.shape_cast %362 : vector<128xf32> to vector<1x1x128xf32>
    %364 = vector.broadcast %363 : vector<1x1x128xf32> to vector<8x16x128xf32>
    %365 = arith.mulf %360, %364 : vector<8x16x128xf32>
    %366 = arith.addf %358, %365 : vector<8x16x128xf32>
    %367 = vector.extract_strided_slice %359 {offsets = [1, 0, 0], sizes = [8, 16, 128], strides = [1, 1, 1]} : vector<10x16x128xf32> to vector<8x16x128xf32>
    %c3_172 = arith.constant 3 : index
    %c5_173 = arith.constant 5 : index
    %c0_174 = arith.constant 0 : index
    %368 = vector.load %arg4[%c3_172, %c5_173, %c0_174] : memref<4x9x128xf32, #tpu.memory_space<vmem>>, vector<1x1x128xf32>
    %369 = vector.shape_cast %368 : vector<1x1x128xf32> to vector<128xf32>
    %370 = vector.shape_cast %369 : vector<128xf32> to vector<1x1x128xf32>
    %371 = vector.broadcast %370 : vector<1x1x128xf32> to vector<8x16x128xf32>
    %372 = arith.mulf %367, %371 : vector<8x16x128xf32>
    %373 = arith.addf %366, %372 : vector<8x16x128xf32>
    %374 = vector.extract_strided_slice %359 {offsets = [2, 0, 0], sizes = [8, 16, 128], strides = [1, 1, 1]} : vector<10x16x128xf32> to vector<8x16x128xf32>
    %c3_175 = arith.constant 3 : index
    %c8_176 = arith.constant 8 : index
    %c0_177 = arith.constant 0 : index
    %375 = vector.load %arg4[%c3_175, %c8_176, %c0_177] : memref<4x9x128xf32, #tpu.memory_space<vmem>>, vector<1x1x128xf32>
    %376 = vector.shape_cast %375 : vector<1x1x128xf32> to vector<128xf32>
    %377 = vector.shape_cast %376 : vector<128xf32> to vector<1x1x128xf32>
    %378 = vector.broadcast %377 : vector<1x1x128xf32> to vector<8x16x128xf32>
    %379 = arith.mulf %374, %378 : vector<8x16x128xf32>
    %380 = arith.addf %373, %379 : vector<8x16x128xf32>
    %c3_178 = arith.constant 3 : index
    %c0_179 = arith.constant 0 : index
    %c0_180 = arith.constant 0 : index
    %381 = vector.load %arg5[%c3_178, %c0_179, %c0_180] : memref<4x1x128xf32, #tpu.memory_space<vmem>>, vector<1x1x128xf32>
    %382 = vector.shape_cast %381 : vector<1x1x128xf32> to vector<1x128xf32>
    %383 = vector.shape_cast %382 : vector<1x128xf32> to vector<1x1x128xf32>
    %384 = vector.broadcast %383 : vector<1x1x128xf32> to vector<8x16x128xf32>
    %385 = arith.addf %380, %384 : vector<8x16x128xf32>
    %cst_181 = arith.constant 0.000000e+00 : f32
    %386 = vector.broadcast %cst_181 : f32 to vector<8x16x128xf32>
    %387 = arith.maximumf %385, %386 : vector<8x16x128xf32>
    %388 = vector.extract_strided_slice %387 {offsets = [0, 0, 0], sizes = [8, 8, 128], strides = [1, 1, 1]} : vector<8x16x128xf32> to vector<8x8x128xf32>
    %389 = arith.addf %293, %388 : vector<8x8x128xf32>
    %390 = vector.shape_cast %389 : vector<8x8x128xf32> to vector<64x128xf32>
    %c0_182 = arith.constant 0 : index
    %c0_183 = arith.constant 0 : index
    %391 = vector.load %arg6[%c0_182, %c0_183] : memref<128x128xf32, #tpu.memory_space<vmem>>, vector<128x128xf32>
    %cst_184 = arith.constant dense<0.000000e+00> : vector<64x128xf32>
    %392 = tpu.matmul %390, %391, %cst_184 {dimension_numbers = #tpu.dot_dimension_numbers<[1], [0], [0], [1], [0, 0, 1, 1], [], []>} : vector<64x128xf32>, vector<128x128xf32>, vector<64x128xf32> -> vector<64x128xf32>
    %c0_185 = arith.constant 0 : index
    %c0_186 = arith.constant 0 : index
    %393 = vector.load %arg7[%c0_185, %c0_186] : memref<1x128xf32, #tpu.memory_space<vmem>>, vector<1x128xf32>
    %394 = vector.broadcast %393 : vector<1x128xf32> to vector<64x128xf32>
    %395 = arith.addf %392, %394 : vector<64x128xf32>
    %cst_187 = arith.constant 0.000000e+00 : f32
    %396 = vector.broadcast %cst_187 : f32 to vector<64x128xf32>
    %397 = arith.maximumf %395, %396 : vector<64x128xf32>
    %c0_188 = arith.constant 0 : index
    %c0_189 = arith.constant 0 : index
    %398 = vector.load %arg8[%c0_188, %c0_189] : memref<128x128xf32, #tpu.memory_space<vmem>>, vector<128x128xf32>
    %cst_190 = arith.constant dense<0.000000e+00> : vector<64x128xf32>
    %399 = tpu.matmul %397, %398, %cst_190 {dimension_numbers = #tpu.dot_dimension_numbers<[1], [0], [0], [1], [0, 0, 1, 1], [], []>} : vector<64x128xf32>, vector<128x128xf32>, vector<64x128xf32> -> vector<64x128xf32>
    %c0_191 = arith.constant 0 : index
    %c0_192 = arith.constant 0 : index
    %400 = vector.load %arg9[%c0_191, %c0_192] : memref<1x128xf32, #tpu.memory_space<vmem>>, vector<1x128xf32>
    %401 = vector.broadcast %400 : vector<1x128xf32> to vector<64x128xf32>
    %402 = arith.addf %399, %401 : vector<64x128xf32>
    %cst_193 = arith.constant 0.000000e+00 : f32
    %403 = vector.broadcast %cst_193 : f32 to vector<64x128xf32>
    %404 = arith.maximumf %402, %403 : vector<64x128xf32>
    %405 = vector.shape_cast %404 : vector<64x128xf32> to vector<1x8x8x128xf32>
    %c0_194 = arith.constant 0 : index
    %c0_195 = arith.constant 0 : index
    %c0_196 = arith.constant 0 : index
    %c0_197 = arith.constant 0 : index
    %406 = vector.load %arg10[%c0_194, %c0_195, %c0_196, %c0_197] : memref<1x8x8x128xf32, #tpu.memory_space<vmem>>, vector<1x8x8x128xf32>
    tpu.vector_store %arg10[%c0_194, %c0_195, %c0_196, %c0_197], %405 {strides = array<i32>} : memref<1x8x8x128xf32, #tpu.memory_space<vmem>>, vector<1x8x8x128xf32>,
    return
  }
  func.func @transform_0(%arg0: i32) -> (i32, i32, i32, i32) {
    %c0_i32 = arith.constant 0 : i32
    %c0_i32_0 = arith.constant 0 : i32
    %c0_i32_1 = arith.constant 0 : i32
    %c0_i32_2 = arith.constant 0 : i32
    return %arg0, %c0_i32, %c0_i32_0, %c0_i32_1 : i32, i32, i32, i32
  }
  func.func @transform_1(%arg0: i32) -> (i32, i32, i32) {
    %c0_i32 = arith.constant 0 : i32
    %c0_i32_0 = arith.constant 0 : i32
    %c0_i32_1 = arith.constant 0 : i32
    %c0_i32_2 = arith.constant 0 : i32
    return %c0_i32, %c0_i32_0, %c0_i32_1 : i32, i32, i32
  }
  func.func @transform_2(%arg0: i32) -> (i32, i32, i32) {
    %c0_i32 = arith.constant 0 : i32
    %c0_i32_0 = arith.constant 0 : i32
    %c0_i32_1 = arith.constant 0 : i32
    %c0_i32_2 = arith.constant 0 : i32
    return %c0_i32, %c0_i32_0, %c0_i32_1 : i32, i32, i32
  }
  func.func @transform_3(%arg0: i32) -> (i32, i32, i32) {
    %c0_i32 = arith.constant 0 : i32
    %c0_i32_0 = arith.constant 0 : i32
    %c0_i32_1 = arith.constant 0 : i32
    %c0_i32_2 = arith.constant 0 : i32
    return %c0_i32, %c0_i32_0, %c0_i32_1 : i32, i32, i32
  }
  func.func @transform_4(%arg0: i32) -> (i32, i32, i32) {
    %c0_i32 = arith.constant 0 : i32
    %c0_i32_0 = arith.constant 0 : i32
    %c0_i32_1 = arith.constant 0 : i32
    %c0_i32_2 = arith.constant 0 : i32
    return %c0_i32, %c0_i32_0, %c0_i32_1 : i32, i32, i32
  }
  func.func @transform_5(%arg0: i32) -> (i32, i32) {
    %c0_i32 = arith.constant 0 : i32
    %c0_i32_0 = arith.constant 0 : i32
    %c0_i32_1 = arith.constant 0 : i32
    return %c0_i32, %c0_i32_0 : i32, i32
  }
  func.func @transform_6(%arg0: i32) -> (i32, i32) {
    %c0_i32 = arith.constant 0 : i32
    %c0_i32_0 = arith.constant 0 : i32
    %c0_i32_1 = arith.constant 0 : i32
    return %c0_i32, %c0_i32_0 : i32, i32
  }
  func.func @transform_7(%arg0: i32) -> (i32, i32) {
    %c0_i32 = arith.constant 0 : i32
    %c0_i32_0 = arith.constant 0 : i32
    %c0_i32_1 = arith.constant 0 : i32
    return %c0_i32, %c0_i32_0 : i32, i32
  }
  func.func @transform_8(%arg0: i32) -> (i32, i32) {
    %c0_i32 = arith.constant 0 : i32
    %c0_i32_0 = arith.constant 0 : i32
    %c0_i32_1 = arith.constant 0 : i32
    return %c0_i32, %c0_i32_0 : i32, i32
  }
  func.func @transform_9(%arg0: i32) -> (i32, i32, i32, i32) {
    %c0_i32 = arith.constant 0 : i32
    %c0_i32_0 = arith.constant 0 : i32
    %c0_i32_1 = arith.constant 0 : i32
    %c0_i32_2 = arith.constant 0 : i32
    return %arg0, %c0_i32, %c0_i32_0, %c0_i32_1 : i32, i32, i32, i32
  }
}

</mosaic_0001>

<llo_original>
// kernel: hg_block_forward.1
$region0: #{hg_block_forward.1}
  #allocation0 [shape = 'u32[]', space=smem, size = 0x4, offset = 0x4, fixed_abs, tag = 'smem constant byte address 0x4 - core index']
  #allocation1 [shape = 'u32[72,128]{1,0:T(1,128)}', space=vmem, size = 0x9000, scoped, tag = 'internal scratch']
  #allocation2 [shape = 'f32[10,24,128]{2,1,0:T(8,128)}', space=vmem, size = 0x1e000, scoped, tag = 'scratch operand']
  %s0 = inlined_call_operand.vmem [shape: f32[2,8,16,128], index: 0, kind: input, shape index: {}]
  %s1 = inlined_call_operand.hbm [shape: f32[4,128,128], index: 1, kind: input, shape index: {}]
  %s2 = inlined_call_operand.vmem [shape: f32[4,1,128], index: 2, kind: input, shape index: {}]
  %s3 = inlined_call_operand.vmem [shape: f32[4,9,128], index: 3, kind: input, shape index: {}]
  %s4 = inlined_call_operand.vmem [shape: f32[4,1,128], index: 4, kind: input, shape index: {}]
  %s5 = inlined_call_operand.vmem [shape: f32[128,128], index: 5, kind: input, shape index: {}]
  %s6 = inlined_call_operand.vmem [shape: f32[1,128], index: 6, kind: input, shape index: {}]
  %s7 = inlined_call_operand.vmem [shape: f32[128,128], index: 7, kind: input, shape index: {}]
  %s8 = inlined_call_operand.vmem [shape: f32[1,128], index: 8, kind: input, shape index: {}]
  %s9 = inlined_call_operand.hbm [shape: f32[2,8,8,128], index: 9, kind: output, shape index: {}]
  %s10 = sld [smem:[#allocation0]]
  $region73: #{hg_block_forward.1} parent=0
    _
  %s12 = ssub.s32 1, %s10
  %s13 = scalar_select 0, %s12, %s10
  $region1: #{hg_block_forward.1} parent=0
    #allocation3 [shape = 'u8[262144]{0}', space=vmem, size = 0x40000, scoped, tag = 'input window, operand 1, single buffered']
    #allocation4 [shape = 's32[2]{0}', space=sflag, size = 0x8, scoped, tag = 'scoped memory for hg_block_forward.1']
    #allocation5 [shape = 's32[2]{0}', space=sflag, size = 0x8, scoped, tag = 'scoped memory for hg_block_forward.1']
    #allocation6 [shape = 'u8[65536]{0}', space=vmem, size = 0x10000, scoped, tag = 'output window, operand 0']
    %14 = vsyncpa [#allocation4], 0
    %15 = vsyncpa [#allocation5], 0
    %s16 = scalar_lea.sflag [#allocation5], 1
    %17 = vsyncpa %s16, 0
    loop: start=0, step=1, limit=4
    $region2: #{hg_block_forward.1} parent=1 // loop_pre_header
      _
    $region3: #{hg_block_forward.1} parent=1 // loop_header
      %s19 = sphi 0, %s23
      %p20 = scmp.ge.s32.totalorder %s19, 4
      %s29 = sphi 0, %s31
      %s32 = sphi 0, %s29
      %s33 = sphi 0, %s32
      %s49 = sphi 0, %s33
      %s53 = sphi 0, %s53
      %s55 = sphi 0, %s53
      %s56 = sphi 0, %s55
      %s70 = sphi 0, %s56
      %s74 = sphi 0, %s74
      %s76 = sphi 0, %s74
      %s77 = sphi 0, %s76
      %s91 = sphi 0, %s77
      %s95 = sphi 0, %s95
      %s97 = sphi 0, %s95
      %s98 = sphi 0, %s97
      %s112 = sphi 0, %s98
      %s116 = sphi 0, %s116
      %s118 = sphi 0, %s116
      %s119 = sphi 0, %s118
      %s133 = sphi 0, %s119
      %s137 = sphi 0, %s137
      %s139 = sphi 0, %s137
      %s140 = sphi 0, %s139
      %s154 = sphi 0, %s140
      %s158 = sphi 0, %s158
      %s160 = sphi 0, %s158
      %s161 = sphi 0, %s160
      %s175 = sphi 0, %s161
      %s179 = sphi 0, %s179
      %s181 = sphi 0, %s179
      %s182 = sphi 0, %s181
      %s196 = sphi 0, %s182
      %s200 = sphi 0, %s200
      %s202 = sphi 0, %s200
      %s203 = sphi 0, %s202
      %s217 = sphi 0, %s203
      %s223 = sphi 0, %s225
      %s226 = sphi 0, %s223
      %s227 = sphi 0, %s226
      %s243 = sphi 0, %s227
    $region4: #{hg_block_forward.1} parent=1 // loop_header_branch
      %22 = sbr.rel (%p20) target = $region8
    $region5: #{hg_block_forward.1} parent=1 // loop_body
      %s24 = ssub.s32 %s19, 1
      %s25 = ssub.s32 %s19, 2
      %s26 = sadd.s32 %s19, 1
      %s27 = ssub.s32 %s19, %s26
      %p28 = scmp.eq.s32.totalorder %s27, 0
      %s30 = sadd.s32 %s29, 1
      %s31 = scalar_select %p28, %s29, %s30
      %p34 = pneg %p28
      %p35 = scmp.eq.s32.totalorder %s19, 1
      %p36 = por %p34, %p35
      %p37 = scmp.ne.s32.totalorder %s29, %s32
      %p38 = scmp.eq.s32.totalorder %s19, 0
      %p39 = por %p37, %p38
      %p40 = scmp.ne.s32.totalorder %s29, %s32
      %p41 = scmp.eq.s32.totalorder %s24, 1
      %p42 = por %p40, %p41
      %p43 = scmp.ne.s32.totalorder %s32, %s33
      %p44 = scmp.eq.s32.totalorder %s24, 0
      %p45 = por %p43, %p44
      %p46 = scmp.ne.s32.totalorder %s32, %s33
      %p47 = scmp.eq.s32.totalorder %s25, 1
      %p48 = por %p46, %p47
      %p50 = scmp.ne.s32.totalorder %s33, %s49
      %p51 = scmp.eq.s32.totalorder %s25, 0
      %p52 = por %p50, %p51
      %s54 = sadd.s32 %s53, 1
      %p57 = scmp.eq.s32.totalorder %s19, 1
      %p58 = scmp.ne.s32.totalorder %s53, %s55
      %p59 = scmp.eq.s32.totalorder %s19, 0
      %p60 = por %p58, %p59
      %p61 = scmp.ne.s32.totalorder %s53, %s55
      %p62 = scmp.eq.s32.totalorder %s24, 1
      %p63 = por %p61, %p62
      %p64 = scmp.ne.s32.totalorder %s55, %s56
      %p65 = scmp.eq.s32.totalorder %s24, 0
      %p66 = por %p64, %p65
      %p67 = scmp.ne.s32.totalorder %s55, %s56
      %p68 = scmp.eq.s32.totalorder %s25, 1
      %p69 = por %p67, %p68
      %p71 = scmp.ne.s32.totalorder %s56, %s70
      %p72 = scmp.eq.s32.totalorder %s25, 0
      %p73 = por %p71, %p72
      %s75 = sadd.s32 %s74, 1
      %p78 = scmp.eq.s32.totalorder %s19, 1
      %p79 = scmp.ne.s32.totalorder %s74, %s76
      %p80 = scmp.eq.s32.totalorder %s19, 0
      %p81 = por %p79, %p80
      %p82 = scmp.ne.s32.totalorder %s74, %s76
      %p83 = scmp.eq.s32.totalorder %s24, 1
      %p84 = por %p82, %p83
      %p85 = scmp.ne.s32.totalorder %s76, %s77
      %p86 = scmp.eq.s32.totalorder %s24, 0
      %p87 = por %p85, %p86
      %p88 = scmp.ne.s32.totalorder %s76, %s77
      %p89 = scmp.eq.s32.totalorder %s25, 1
      %p90 = por %p88, %p89
      %p92 = scmp.ne.s32.totalorder %s77, %s91
      %p93 = scmp.eq.s32.totalorder %s25, 0
      %p94 = por %p92, %p93
      %s96 = sadd.s32 %s95, 1
      %p99 = scmp.eq.s32.totalorder %s19, 1
      %p100 = scmp.ne.s32.totalorder %s95, %s97
      %p101 = scmp.eq.s32.totalorder %s19, 0
      %p102 = por %p100, %p101
      %p103 = scmp.ne.s32.totalorder %s95, %s97
      %p104 = scmp.eq.s32.totalorder %s24, 1
      %p105 = por %p103, %p104
      %p106 = scmp.ne.s32.totalorder %s97, %s98
      %p107 = scmp.eq.s32.totalorder %s24, 0
      %p108 = por %p106, %p107
      %p109 = scmp.ne.s32.totalorder %s97, %s98
      %p110 = scmp.eq.s32.totalorder %s25, 1
      %p111 = por %p109, %p110
      %p113 = scmp.ne.s32.totalorder %s98, %s112
      %p114 = scmp.eq.s32.totalorder %s25, 0
      %p115 = por %p113, %p114
      %s117 = sadd.s32 %s116, 1
      %p120 = scmp.eq.s32.totalorder %s19, 1
      %p121 = scmp.ne.s32.totalorder %s116, %s118
      %p122 = scmp.eq.s32.totalorder %s19, 0
      %p123 = por %p121, %p122
      %p124 = scmp.ne.s32.totalorder %s116, %s118
      %p125 = scmp.eq.s32.totalorder %s24, 1
      %p126 = por %p124, %p125
      %p127 = scmp.ne.s32.totalorder %s118, %s119
      %p128 = scmp.eq.s32.totalorder %s24, 0
      %p129 = por %p127, %p128
      %p130 = scmp.ne.s32.totalorder %s118, %s119
      %p131 = scmp.eq.s32.totalorder %s25, 1
      %p132 = por %p130, %p131
      %p134 = scmp.ne.s32.totalorder %s119, %s133
      %p135 = scmp.eq.s32.totalorder %s25, 0
      %p136 = por %p134, %p135
      %s138 = sadd.s32 %s137, 1
      %p141 = scmp.eq.s32.totalorder %s19, 1
      %p142 = scmp.ne.s32.totalorder %s137, %s139
      %p143 = scmp.eq.s32.totalorder %s19, 0
      %p144 = por %p142, %p143
      %p145 = scmp.ne.s32.totalorder %s137, %s139
      %p146 = scmp.eq.s32.totalorder %s24, 1
      %p147 = por %p145, %p146
      %p148 = scmp.ne.s32.totalorder %s139, %s140
      %p149 = scmp.eq.s32.totalorder %s24, 0
      %p150 = por %p148, %p149
      %p151 = scmp.ne.s32.totalorder %s139, %s140
      %p152 = scmp.eq.s32.totalorder %s25, 1
      %p153 = por %p151, %p152
      %p155 = scmp.ne.s32.totalorder %s140, %s154
      %p156 = scmp.eq.s32.totalorder %s25, 0
      %p157 = por %p155, %p156
      %s159 = sadd.s32 %s158, 1
      %p162 = scmp.eq.s32.totalorder %s19, 1
      %p163 = scmp.ne.s32.totalorder %s158, %s160
      %p164 = scmp.eq.s32.totalorder %s19, 0
      %p165 = por %p163, %p164
      %p166 = scmp.ne.s32.totalorder %s158, %s160
      %p167 = scmp.eq.s32.totalorder %s24, 1
      %p168 = por %p166, %p167
      %p169 = scmp.ne.s32.totalorder %s160, %s161
      %p170 = scmp.eq.s32.totalorder %s24, 0
      %p171 = por %p169, %p170
      %p172 = scmp.ne.s32.totalorder %s160, %s161
      %p173 = scmp.eq.s32.totalorder %s25, 1
      %p174 = por %p172, %p173
      %p176 = scmp.ne.s32.totalorder %s161, %s175
      %p177 = scmp.eq.s32.totalorder %s25, 0
      %p178 = por %p176, %p177
      %s180 = sadd.s32 %s179, 1
      %p183 = scmp.eq.s32.totalorder %s19, 1
      %p184 = scmp.ne.s32.totalorder %s179, %s181
      %p185 = scmp.eq.s32.totalorder %s19, 0
      %p186 = por %p184, %p185
      %p187 = scmp.ne.s32.totalorder %s179, %s181
      %p188 = scmp.eq.s32.totalorder %s24, 1
      %p189 = por %p187, %p188
      %p190 = scmp.ne.s32.totalorder %s181, %s182
      %p191 = scmp.eq.s32.totalorder %s24, 0
      %p192 = por %p190, %p191
      %p193 = scmp.ne.s32.totalorder %s181, %s182
      %p194 = scmp.eq.s32.totalorder %s25, 1
      %p195 = por %p193, %p194
      %p197 = scmp.ne.s32.totalorder %s182, %s196
      %p198 = scmp.eq.s32.totalorder %s25, 0
      %p199 = por %p197, %p198
      %s201 = sadd.s32 %s200, 1
      %p204 = scmp.eq.s32.totalorder %s19, 1
      %p205 = scmp.ne.s32.totalorder %s200, %s202
      %p206 = scmp.eq.s32.totalorder %s19, 0
      %p207 = por %p205, %p206
      %p208 = scmp.ne.s32.totalorder %s200, %s202
      %p209 = scmp.eq.s32.totalorder %s24, 1
      %p210 = por %p208, %p209
      %p211 = scmp.ne.s32.totalorder %s202, %s203
      %p212 = scmp.eq.s32.totalorder %s24, 0
      %p213 = por %p211, %p212
      %p214 = scmp.ne.s32.totalorder %s202, %s203
      %p215 = scmp.eq.s32.totalorder %s25, 1
      %p216 = por %p214, %p215
      %p218 = scmp.ne.s32.totalorder %s203, %s217
      %p219 = scmp.eq.s32.totalorder %s25, 0
      %p220 = por %p218, %p219
      %s221 = ssub.s32 %s19, %s26
      %p222 = scmp.eq.s32.totalorder %s221, 0
      %s224 = sadd.s32 %s223, 1
      %s225 = scalar_select %p222, %s223, %s224
      %p228 = pneg %p222
      %p229 = scmp.eq.s32.totalorder %s19, 1
      %p230 = por %p228, %p229
      %p231 = scmp.ne.s32.totalorder %s223, %s226
      %p232 = scmp.eq.s32.totalorder %s19, 0
      %p233 = por %p231, %p232
      %p234 = scmp.ne.s32.totalorder %s223, %s226
      %p235 = scmp.eq.s32.totalorder %s24, 1
      %p236 = por %p234, %p235
      %p237 = scmp.ne.s32.totalorder %s226, %s227
      %p238 = scmp.eq.s32.totalorder %s24, 0
      %p239 = por %p237, %p238
      %p240 = scmp.ne.s32.totalorder %s226, %s227
      %p241 = scmp.eq.s32.totalorder %s25, 1
      %p242 = por %p240, %p241
      %p244 = scmp.ne.s32.totalorder %s227, %s243
      %p245 = scmp.eq.s32.totalorder %s25, 0
      %p246 = por %p244, %p245
      %p247 = scmp.le.s32.totalorder 1, %s19
      %p248 = scmp.lt.s32.totalorder %s19, 3
      %p249 = pnand %p247, %p248
      %p250 = pneg %p249
      // Predicated region
      $region9: #{hg_block_forward.1} parent=5 // pred_check
        _
      $region10: #{hg_block_forward.1} parent=5 // pred_check_branch
        %252 = sbr.rel (%p249) target = $region12
      $region11: #{hg_block_forward.1} parent=5 // pred_region
        %s253 = ssub.s32 %s19, 1
        // Predicated region
        $region13: #{hg_block_forward.1} parent=11 // pred_check
          %p254 = pneg %p66
        $region14: #{hg_block_forward.1} parent=11 // pred_check_branch
          %256 = sbr.rel (%p254) target = $region16
        $region15: #{hg_block_forward.1} parent=11 // pred_region
          %258 = vsyncadd [#allocation4], 0
          %s259 = sshll.u32 %s1, 4
          %s260 = int_to_ptr.hbm [resolvable:$true] %s259
          %s261 = sshll.u32 [#allocation3], 4
          %s262 = int_to_ptr.vmem [resolvable:$true] %s261
          %267 = dma.hbm_to_vmem [thread:$0]  %s260, 8192, %s262, [#allocation4], 128, 128, 8
        $region16: #{hg_block_forward.1} parent=11 // pred_fallthru
          _
        // Predicated region
        $region17: #{hg_block_forward.1} parent=11 // pred_check
          %p268 = pneg %p87
        $region18: #{hg_block_forward.1} parent=11 // pred_check_branch
          %270 = sbr.rel (%p268) target = $region20
        $region19: #{hg_block_forward.1} parent=11 // pred_region
          _
        $region20: #{hg_block_forward.1} parent=11 // pred_fallthru
          _
        // Predicated region
        $region21: #{hg_block_forward.1} parent=11 // pred_check
          %p271 = pneg %p108
        $region22: #{hg_block_forward.1} parent=11 // pred_check_branch
          %273 = sbr.rel (%p271) target = $region24
        $region23: #{hg_block_forward.1} parent=11 // pred_region
          _
        $region24: #{hg_block_forward.1} parent=11 // pred_fallthru
          _
        // Predicated region
        $region25: #{hg_block_forward.1} parent=11 // pred_check
          %p274 = pneg %p129
        $region26: #{hg_block_forward.1} parent=11 // pred_check_branch
          %276 = sbr.rel (%p274) target = $region28
        $region27: #{hg_block_forward.1} parent=11 // pred_region
          _
        $region28: #{hg_block_forward.1} parent=11 // pred_fallthru
          _
        // Predicated region
        $region29: #{hg_block_forward.1} parent=11 // pred_check
          %p277 = pneg %p150
        $region30: #{hg_block_forward.1} parent=11 // pred_check_branch
          %279 = sbr.rel (%p277) target = $region32
        $region31: #{hg_block_forward.1} parent=11 // pred_region
          _
        $region32: #{hg_block_forward.1} parent=11 // pred_fallthru
          _
        // Predicated region
        $region33: #{hg_block_forward.1} parent=11 // pred_check
          %p280 = pneg %p171
        $region34: #{hg_block_forward.1} parent=11 // pred_check_branch
          %282 = sbr.rel (%p280) target = $region36
        $region35: #{hg_block_forward.1} parent=11 // pred_region
          _
        $region36: #{hg_block_forward.1} parent=11 // pred_fallthru
          _
        // Predicated region
        $region37: #{hg_block_forward.1} parent=11 // pred_check
          %p283 = pneg %p192
        $region38: #{hg_block_forward.1} parent=11 // pred_check_branch
          %285 = sbr.rel (%p283) target = $region40
        $region39: #{hg_block_forward.1} parent=11 // pred_region
          _
        $region40: #{hg_block_forward.1} parent=11 // pred_fallthru
          _
        // Predicated region
        $region41: #{hg_block_forward.1} parent=11 // pred_check
          %p286 = pneg %p213
        $region42: #{hg_block_forward.1} parent=11 // pred_check_branch
          %288 = sbr.rel (%p286) target = $region44
        $region43: #{hg_block_forward.1} parent=11 // pred_region
          _
        $region44: #{hg_block_forward.1} parent=11 // pred_fallthru
          _
      $region12: #{hg_block_forward.1} parent=5 // pred_fallthru
        _
      %p289 = scmp.lt.s32.totalorder %s19, 2
      // Predicated region
      $region45: #{hg_block_forward.1} parent=5 // pred_check
        %p290 = pneg %p289
      $region46: #{hg_block_forward.1} parent=5 // pred_check_branch
        %292 = sbr.rel (%p290) target = $region48
      $region47: #{hg_block_forward.1} parent=5 // pred_region
        // Predicated region
        $region49: #{hg_block_forward.1} parent=47 // pred_check
          %p293 = pneg %p39
        $region50: #{hg_block_forward.1} parent=47 // pred_check_branch
          %295 = sbr.rel (%p293) target = $region52
        $region51: #{hg_block_forward.1} parent=47 // pred_region
          %p296 = scmp.lt.s32.totalorder %s19, 1
          %s297 = scalar_select %p296, %s19, 1
          %s298 = smul.addr %s297, 16
          %s299 = smul.addr %s298, 8
          %s300 = scalar_lea.vmem %s0, %s299
        $region52: #{hg_block_forward.1} parent=47 // pred_fallthru
          _
      $region48: #{hg_block_forward.1} parent=5 // pred_fallthru
        _
      %p301 = scmp.le.s32.totalorder 1, %s19
      %p302 = scmp.lt.s32.totalorder %s19, 3
      %p303 = pnand %p301, %p302
      %p304 = pneg %p303
      // Predicated region
      $region53: #{hg_block_forward.1} parent=5 // pred_check
        _
      $region54: #{hg_block_forward.1} parent=5 // pred_check_branch
        %306 = sbr.rel (%p303) target = $region56
      $region55: #{hg_block_forward.1} parent=5 // pred_region
        %s307 = ssub.s32 %s19, 1
        // Predicated region
        $region57: #{hg_block_forward.1} parent=55 // pred_check
          %p308 = pneg %p66
        $region58: #{hg_block_forward.1} parent=55 // pred_check_branch
          %310 = sbr.rel (%p308) target = $region60
        $region59: #{hg_block_forward.1} parent=55 // pred_region
          %312 = dma.done [#allocation4], 8192
        $region60: #{hg_block_forward.1} parent=55 // pred_fallthru
          _
        %p313 = scmp.lt.s32.totalorder %s24, 1
        %s314 = scalar_select %p313, %s24, 1
        %s315 = smul.addr %s314, 16
        %s316 = smul.addr %s315, 8
        %s317 = scalar_lea.vmem %s0, %s316
        %p318 = pneg %p45
        %p319 = pneg %p42
        %p320 = pneg %p66
        %p321 = pneg %p63
        %p322 = pneg %p87
        %p323 = pneg %p84
        %p324 = pneg %p108
        %p325 = pneg %p105
        %p326 = pneg %p129
        %p327 = pneg %p126
        %p328 = pneg %p150
        %p329 = pneg %p147
        %p330 = pneg %p171
        %p331 = pneg %p168
        %p332 = pneg %p192
        %p333 = pneg %p189
        %p334 = pneg %p213
        %p335 = pneg %p210
        %p336 = pneg %p239
        %p337 = pneg %p236
        %s338 = sand.u32 %s226, 1
        %s339 = scalar_lea.sflag [#allocation5], %s338
        %s340 = sand.u32 %s226, 1
        %s341 = smul.addr %s340, 64
        %s342 = scalar_lea.vmem [#allocation6], %s341
        %p343 = scmp.lt.s32.totalorder %s24, 1
        %s344 = scalar_select %p343, %s24, 1
        %s345 = smul.addr %s344, 16
        %s346 = smul.addr %s345, 8
        %s347 = scalar_lea.vmem %s0, %s346
        %348 = vst [vmem:[#allocation2] sm:$0xff] 0.0
        %349 = vst [vmem:[#allocation2 + $0x8] sm:$0xff] 0.0
        %350 = vst [vmem:[#allocation2 + $0x10] sm:$0xff] 0.0
        %351 = vst [vmem:[#allocation2 + $0x18] sm:$0xff] 0.0
        %352 = vst [vmem:[#allocation2 + $0x20] sm:$0xff] 0.0
        %353 = vst [vmem:[#allocation2 + $0x28] sm:$0xff] 0.0
        %354 = vst [vmem:[#allocation2 + $0x30] sm:$0xff] 0.0
        %355 = vst [vmem:[#allocation2 + $0x38] sm:$0xff] 0.0
        %356 = vst [vmem:[#allocation2 + $0x40] sm:$0xff] 0.0
        %357 = vst [vmem:[#allocation2 + $0x48] sm:$0xff] 0.0
        %358 = vst [vmem:[#allocation2 + $0x50] sm:$0xff] 0.0
        %359 = vst [vmem:[#allocation2 + $0x58] sm:$0xff] 0.0
        %360 = vst [vmem:[#allocation2 + $0x60] sm:$0xff] 0.0
        %361 = vst [vmem:[#allocation2 + $0x68] sm:$0xff] 0.0
        %362 = vst [vmem:[#allocation2 + $0x70] sm:$0xff] 0.0
        %363 = vst [vmem:[#allocation2 + $0x78] sm:$0xff] 0.0
        %364 = vst [vmem:[#allocation2 + $0x80] sm:$0xff] 0.0
        %365 = vst [vmem:[#allocation2 + $0x88] sm:$0xff] 0.0
        %366 = vst [vmem:[#allocation2 + $0x90] sm:$0xff] 0.0
        %367 = vst [vmem:[#allocation2 + $0x98] sm:$0xff] 0.0
        %368 = vst [vmem:[#allocation2 + $0xa0] sm:$0xff] 0.0
        %369 = vst [vmem:[#allocation2 + $0xa8] sm:$0xff] 0.0
        %370 = vst [vmem:[#allocation2 + $0xb0] sm:$0xff] 0.0
        %371 = vst [vmem:[#allocation2 + $0xb8] sm:$0xff] 0.0
        %372 = vst [vmem:[#allocation2 + $0xc0] sm:$0xff] 0.0
        %373 = vst [vmem:[#allocation2 + $0xc8] sm:$0xff] 0.0
        %374 = vst [vmem:[#allocation2 + $0xd0] sm:$0xff] 0.0
        %375 = vst [vmem:[#allocation2 + $0xd8] sm:$0xff] 0.0
        %376 = vst [vmem:[#allocation2 + $0xe0] sm:$0xff] 0.0
        %377 = vst [vmem:[#allocation2 + $0xe8] sm:$0xff] 0.0
        %v378 = vlaneseq
        %v379 = vshrl.u32 %v378, 7
        %v380 = vadd.s32 %v379, 8
        %v381 = vld [vmem:[%s347] sm:$0xff]
        %v382 = vld [vmem:[%s347 + $0x8] sm:$0xff]
        %v383 = vld [vmem:[%s347 + $0x10] sm:$0xff]
        %v384 = vld [vmem:[%s347 + $0x18] sm:$0xff]
        %v385 = vld [vmem:[%s347 + $0x20] sm:$0xff]
        %v386 = vld [vmem:[%s347 + $0x28] sm:$0xff]
        %v387 = vld [vmem:[%s347 + $0x30] sm:$0xff]
        %v388 = vld [vmem:[%s347 + $0x38] sm:$0xff]
        %v389 = vld [vmem:[%s347 + $0x40] sm:$0xff]
        %v390 = vld [vmem:[%s347 + $0x48] sm:$0xff]
        %v391 = vld [vmem:[%s347 + $0x50] sm:$0xff]
        %v392 = vld [vmem:[%s347 + $0x58] sm:$0xff]
        %v393 = vld [vmem:[%s347 + $0x60] sm:$0xff]
        %v394 = vld [vmem:[%s347 + $0x68] sm:$0xff]
        %v395 = vld [vmem:[%s347 + $0x70] sm:$0xff]
        %v396 = vld [vmem:[%s347 + $0x78] sm:$0xff]
        %v397 = vld [vmem:[#allocation3] sm:$0xff]
        %v398 = vld [vmem:[#allocation3 + $0x8] sm:$0xff]
        %v399 = vld [vmem:[#allocation3 + $0x10] sm:$0xff]
        %v400 = vld [vmem:[#allocation3 + $0x18] sm:$0xff]
        %v401 = vld [vmem:[#allocation3 + $0x20] sm:$0xff]
        %v402 = vld [vmem:[#allocation3 + $0x28] sm:$0xff]
        %v403 = vld [vmem:[#allocation3 + $0x30] sm:$0xff]
        %v404 = vld [vmem:[#allocation3 + $0x38] sm:$0xff]
        %v405 = vld [vmem:[#allocation3 + $0x40] sm:$0xff]
        %v406 = vld [vmem:[#allocation3 + $0x48] sm:$0xff]
        %v407 = vld [vmem:[#allocation3 + $0x50] sm:$0xff]
        %v408 = vld [vmem:[#allocation3 + $0x58] sm:$0xff]
        %v409 = vld [vmem:[#allocation3 + $0x60] sm:$0xff]
        %v410 = vld [vmem:[#allocation3 + $0x68] sm:$0xff]
        %v411 = vld [vmem:[#allocation3 + $0x70] sm:$0xff]
        %v412 = vld [vmem:[#allocation3 + $0x78] sm:$0xff]
        %v413 = vld [vmem:[%s2] sm:$0x1]
        %v415 = vperm.slane %v413, 0
        %417 = vmatpush.msra.mxu0 %v412
        %418 = vmatpush.msra.mxu0 %v411
        %419 = vmatpush.msra.mxu0 %v410
        %420 = vmatpush.msra.mxu0 %v409
        %421 = vmatpush.msra.mxu0 %v408
        %422 = vmatpush.msra.mxu0 %v407
        %423 = vmatpush.msra.mxu0 %v406
        %424 = vmatpush.msra.mxu0 %v405
        %425 = vmatpush.msra.mxu0 %v404
        %426 = vmatpush.msra.mxu0 %v403
        %427 = vmatpush.msra.mxu0 %v402
        %428 = vmatpush.msra.mxu0 %v401
        %429 = vmatpush.msra.mxu0 %v400
        %430 = vmatpush.msra.mxu0 %v399
        %431 = vmatpush.msra.mxu0 %v398
        %432 = vmatpush.msra.mxu0 %v397
        %433 = vmatmul.f32.gmra.mxu0 %v381
        %v434 = vpop.f32.mrf.mxu0
        %v435 = vadd.f32 %v415, %v434
        %436 = vmatmul.f32.gmra.mxu0 %v382
        %v437 = vpop.f32.mrf.mxu0
        %v438 = vadd.f32 %v415, %v437
        %439 = vmatmul.f32.gmra.mxu0 %v383
        %v440 = vpop.f32.mrf.mxu0
        %v441 = vadd.f32 %v415, %v440
        %442 = vmatmul.f32.gmra.mxu0 %v384
        %v443 = vpop.f32.mrf.mxu0
        %v444 = vadd.f32 %v415, %v443
        %445 = vmatmul.f32.gmra.mxu0 %v385
        %v446 = vpop.f32.mrf.mxu0
        %v447 = vadd.f32 %v415, %v446
        %448 = vmatmul.f32.gmra.mxu0 %v386
        %v449 = vpop.f32.mrf.mxu0
        %v450 = vadd.f32 %v415, %v449
        %451 = vmatmul.f32.gmra.mxu0 %v387
        %v452 = vpop.f32.mrf.mxu0
        %v453 = vadd.f32 %v415, %v452
        %454 = vmatmul.f32.gmra.mxu0 %v388
        %v455 = vpop.f32.mrf.mxu0
        %v456 = vadd.f32 %v415, %v455
        %457 = vmatmul.f32.gmra.mxu0 %v389
        %v458 = vpop.f32.mrf.mxu0
        %v459 = vadd.f32 %v415, %v458
        %460 = vmatmul.f32.gmra.mxu0 %v390
        %v461 = vpop.f32.mrf.mxu0
        %v462 = vadd.f32 %v415, %v461
        %463 = vmatmul.f32.gmra.mxu0 %v391
        %v464 = vpop.f32.mrf.mxu0
        %v465 = vadd.f32 %v415, %v464
        %466 = vmatmul.f32.gmra.mxu0 %v392
        %v467 = vpop.f32.mrf.mxu0
        %v468 = vadd.f32 %v415, %v467
        %469 = vmatmul.f32.gmra.mxu0 %v393
        %v470 = vpop.f32.mrf.mxu0
        %v471 = vadd.f32 %v415, %v470
        %472 = vmatmul.f32.gmra.mxu0 %v394
        %v473 = vpop.f32.mrf.mxu0
        %v474 = vadd.f32 %v415, %v473
        %475 = vmatmul.f32.gmra.mxu0 %v395
        %v476 = vpop.f32.mrf.mxu0
        %v477 = vadd.f32 %v415, %v476
        %478 = vmatmul.f32.gmra.mxu0 %v396
        %v479 = vpop.f32.mrf.mxu0
        %v480 = vadd.f32 %v415, %v479
        %481 = vdwg.mxu0
        %vm482 = vcmp.ge.s32.totalorder %v379, 4
        %vm483 = vcmp.ge.s32.totalorder %v380, 4
        %vm484 = vcmp.lt.s32.totalorder %v379, 12
        %vm485 = vcmp.lt.s32.totalorder %v380, 12
        %vm486 = vmand %vm482, %vm484
        %vm487 = vmand %vm483, %vm485
        %v488 = vsel %vm486, 1, 0
        %v489 = vsel %vm487, 1, 0
        %vm490 = vcmp.eq.s32.totalorder %v488, 1
        %vm491 = vcmp.eq.s32.totalorder %v489, 1
        %v492 = vsel %vm490, %v435, 0.0
        %v493 = vsel %vm491, %v438, 0.0
        %v494 = vsel %vm490, %v441, 0.0
        %v495 = vsel %vm491, %v444, 0.0
        %v496 = vsel %vm490, %v447, 0.0
        %v497 = vsel %vm491, %v450, 0.0
        %v498 = vsel %vm490, %v453, 0.0
        %v499 = vsel %vm491, %v456, 0.0
        %v500 = vsel %vm490, %v459, 0.0
        %v501 = vsel %vm491, %v462, 0.0
        %v502 = vsel %vm490, %v465, 0.0
        %v503 = vsel %vm491, %v468, 0.0
        %v504 = vsel %vm490, %v471, 0.0
        %v505 = vsel %vm491, %v474, 0.0
        %v506 = vsel %vm490, %v477, 0.0
        %v507 = vsel %vm491, %v480, 0.0
        %s508 = scalar_lea.vmem [#allocation2], 24
        %509 = vst [vmem:[%s508] sm:$0xff] %v492
        %510 = vst [vmem:[%s508 + $0x8] sm:$0xff] %v493
        %511 = vst [vmem:[%s508 + $0x18] sm:$0xff] %v494
        %512 = vst [vmem:[%s508 + $0x20] sm:$0xff] %v495
        %513 = vst [vmem:[%s508 + $0x30] sm:$0xff] %v496
        %514 = vst [vmem:[%s508 + $0x38] sm:$0xff] %v497
        %515 = vst [vmem:[%s508 + $0x48] sm:$0xff] %v498
        %516 = vst [vmem:[%s508 + $0x50] sm:$0xff] %v499
        %517 = vst [vmem:[%s508 + $0x60] sm:$0xff] %v500
        %518 = vst [vmem:[%s508 + $0x68] sm:$0xff] %v501
        %519 = vst [vmem:[%s508 + $0x78] sm:$0xff] %v502
        %520 = vst [vmem:[%s508 + $0x80] sm:$0xff] %v503
        %521 = vst [vmem:[%s508 + $0x90] sm:$0xff] %v504
        %522 = vst [vmem:[%s508 + $0x98] sm:$0xff] %v505
        %523 = vst [vmem:[%s508 + $0xa8] sm:$0xff] %v506
        %524 = vst [vmem:[%s508 + $0xb0] sm:$0xff] %v507
        %v525 = vld [vmem:[#allocation2] sm:$0xff]
        %v526 = vld [vmem:[#allocation2 + $0x8] sm:$0xff]
        %v527 = vld [vmem:[#allocation2 + $0x10] sm:$0xff]
        %v528 = vld [vmem:[#allocation2 + $0x18] sm:$0xff]
        %v529 = vld [vmem:[#allocation2 + $0x20] sm:$0xff]
        %v530 = vld [vmem:[#allocation2 + $0x28] sm:$0xff]
        %v531 = vld [vmem:[#allocation2 + $0x30] sm:$0xff]
        %v532 = vld [vmem:[#allocation2 + $0x38] sm:$0xff]
        %v533 = vld [vmem:[#allocation2 + $0x40] sm:$0xff]
        %v534 = vld [vmem:[#allocation2 + $0x48] sm:$0xff]
        %v535 = vld [vmem:[#allocation2 + $0x50] sm:$0xff]
        %v536 = vld [vmem:[#allocation2 + $0x58] sm:$0xff]
        %v537 = vld [vmem:[#allocation2 + $0x60] sm:$0xff]
        %v538 = vld [vmem:[#allocation2 + $0x68] sm:$0xff]
        %v539 = vld [vmem:[#allocation2 + $0x70] sm:$0xff]
        %v540 = vld [vmem:[#allocation2 + $0x78] sm:$0xff]
        %v541 = vld [vmem:[#allocation2 + $0x80] sm:$0xff]
        %v542 = vld [vmem:[#allocation2 + $0x88] sm:$0xff]
        %v543 = vld [vmem:[#allocation2 + $0x90] sm:$0xff]
        %v544 = vld [vmem:[#allocation2 + $0x98] sm:$0xff]
        %v545 = vld [vmem:[#allocation2 + $0xa0] sm:$0xff]
        %v546 = vld [vmem:[#allocation2 + $0xa8] sm:$0xff]
        %v547 = vld [vmem:[#allocation2 + $0xb0] sm:$0xff]
        %v548 = vld [vmem:[#allocation2 + $0xb8] sm:$0xff]
        %v549 = vld [vmem:[#allocation2 + $0xc0] sm:$0xff]
        %v550 = vld [vmem:[#allocation2 + $0xc8] sm:$0xff]
        %v551 = vld [vmem:[#allocation2 + $0xd0] sm:$0xff]
        %v552 = vld [vmem:[#allocation2 + $0xd8] sm:$0xff]
        %v553 = vld [vmem:[#allocation2 + $0xe0] sm:$0xff]
        %v554 = vld [vmem:[#allocation2 + $0xe8] sm:$0xff]
        %v555 = vld [vmem:[%s3] sm:$0x1]
        %v556 = vperm.slane %v555, 0
        %v557 = vmul.f32 %v525, %v556
        %v558 = vmul.f32 %v526, %v556
        %v559 = vmul.f32 %v528, %v556
        %v560 = vmul.f32 %v529, %v556
        %v561 = vmul.f32 %v531, %v556
        %v562 = vmul.f32 %v532, %v556
        %v563 = vmul.f32 %v534, %v556
        %v564 = vmul.f32 %v535, %v556
        %v565 = vmul.f32 %v537, %v556
        %v566 = vmul.f32 %v538, %v556
        %v567 = vmul.f32 %v540, %v556
        %v568 = vmul.f32 %v541, %v556
        %v569 = vmul.f32 %v543, %v556
        %v570 = vmul.f32 %v544, %v556
        %v571 = vmul.f32 %v546, %v556
        %v572 = vmul.f32 %v547, %v556
        %v573 = vadd.f32 %v557, 0.0
        %v574 = vadd.f32 %v558, 0.0
        %v575 = vadd.f32 %v559, 0.0
        %v576 = vadd.f32 %v560, 0.0
        %v577 = vadd.f32 %v561, 0.0
        %v578 = vadd.f32 %v562, 0.0
        %v579 = vadd.f32 %v563, 0.0
        %v580 = vadd.f32 %v564, 0.0
        %v581 = vadd.f32 %v565, 0.0
        %v582 = vadd.f32 %v566, 0.0
        %v583 = vadd.f32 %v567, 0.0
        %v584 = vadd.f32 %v568, 0.0
        %v585 = vadd.f32 %v569, 0.0
        %v586 = vadd.f32 %v570, 0.0
        %v587 = vadd.f32 %v571, 0.0
        %v588 = vadd.f32 %v572, 0.0
        %v589 = vld [vmem:[%s3 + $0x3] sm:$0x1]
        %v590 = vperm.slane %v589, 0
        %v591 = vmul.f32 %v528, %v590
        %v592 = vmul.f32 %v529, %v590
        %v593 = vmul.f32 %v531, %v590
        %v594 = vmul.f32 %v532, %v590
        %v595 = vmul.f32 %v534, %v590
        %v596 = vmul.f32 %v535, %v590
        %v597 = vmul.f32 %v537, %v590
        %v598 = vmul.f32 %v538, %v590
        %v599 = vmul.f32 %v540, %v590
        %v600 = vmul.f32 %v541, %v590
        %v601 = vmul.f32 %v543, %v590
        %v602 = vmul.f32 %v544, %v590
        %v603 = vmul.f32 %v546, %v590
        %v604 = vmul.f32 %v547, %v590
        %v605 = vmul.f32 %v549, %v590
        %v606 = vmul.f32 %v550, %v590
        %v607 = vadd.f32 %v573, %v591
        %v608 = vadd.f32 %v574, %v592
        %v609 = vadd.f32 %v575, %v593
        %v610 = vadd.f32 %v576, %v594
        %v611 = vadd.f32 %v577, %v595
        %v612 = vadd.f32 %v578, %v596
        %v613 = vadd.f32 %v579, %v597
        %v614 = vadd.f32 %v580, %v598
        %v615 = vadd.f32 %v581, %v599
        %v616 = vadd.f32 %v582, %v600
        %v617 = vadd.f32 %v583, %v601
        %v618 = vadd.f32 %v584, %v602
        %v619 = vadd.f32 %v585, %v603
        %v620 = vadd.f32 %v586, %v604
        %v621 = vadd.f32 %v587, %v605
        %v622 = vadd.f32 %v588, %v606
        %v623 = vld [vmem:[%s3 + $0x6] sm:$0x1]
        %v624 = vperm.slane %v623, 0
        %v625 = vmul.f32 %v531, %v624
        %v626 = vmul.f32 %v532, %v624
        %v627 = vmul.f32 %v534, %v624
        %v628 = vmul.f32 %v535, %v624
        %v629 = vmul.f32 %v537, %v624
        %v630 = vmul.f32 %v538, %v624
        %v631 = vmul.f32 %v540, %v624
        %v632 = vmul.f32 %v541, %v624
        %v633 = vmul.f32 %v543, %v624
        %v634 = vmul.f32 %v544, %v624
        %v635 = vmul.f32 %v546, %v624
        %v636 = vmul.f32 %v547, %v624
        %v637 = vmul.f32 %v549, %v624
        %v638 = vmul.f32 %v550, %v624
        %v639 = vmul.f32 %v552, %v624
        %v640 = vmul.f32 %v553, %v624
        %v641 = vadd.f32 %v607, %v625
        %v642 = vadd.f32 %v608, %v626
        %v643 = vadd.f32 %v609, %v627
        %v644 = vadd.f32 %v610, %v628
        %v645 = vadd.f32 %v611, %v629
        %v646 = vadd.f32 %v612, %v630
        %v647 = vadd.f32 %v613, %v631
        %v648 = vadd.f32 %v614, %v632
        %v649 = vadd.f32 %v615, %v633
        %v650 = vadd.f32 %v616, %v634
        %v651 = vadd.f32 %v617, %v635
        %v652 = vadd.f32 %v618, %v636
        %v653 = vadd.f32 %v619, %v637
        %v654 = vadd.f32 %v620, %v638
        %v655 = vadd.f32 %v621, %v639
        %v656 = vadd.f32 %v622, %v640
        %v657 = vld [vmem:[%s3 + $0x1] sm:$0x1]
        %v658 = vperm.slane %v657, 0
        %v659 = vmul.f32 %v525, %v658
        %v660 = vmul.f32 %v526, %v658
        %v661 = vmul.f32 %v527, %v658
        %v662 = vmul.f32 %v528, %v658
        %v663 = vmul.f32 %v529, %v658
        %v664 = vmul.f32 %v530, %v658
        %v665 = vmul.f32 %v531, %v658
        %v666 = vmul.f32 %v532, %v658
        %v667 = vmul.f32 %v533, %v658
        %v668 = vmul.f32 %v534, %v658
        %v669 = vmul.f32 %v535, %v658
        %v670 = vmul.f32 %v536, %v658
        %v671 = vmul.f32 %v537, %v658
        %v672 = vmul.f32 %v538, %v658
        %v673 = vmul.f32 %v539, %v658
        %v674 = vmul.f32 %v540, %v658
        %v675 = vmul.f32 %v541, %v658
        %v676 = vmul.f32 %v542, %v658
        %v677 = vmul.f32 %v543, %v658
        %v678 = vmul.f32 %v544, %v658
        %v679 = vmul.f32 %v545, %v658
        %v680 = vmul.f32 %v546, %v658
        %v681 = vmul.f32 %v547, %v658
        %v682 = vmul.f32 %v548, %v658
        %vm707 = vcmask 1046528
        %v708 = vrot.slane %v659, 1
        %v709 = vrot.slane %v660, 1
        %v710 = vsel %vm707, %v708, %v709
        %v711 = vrot.slane %v661, 1
        %v712 = vsel %vm707, %v709, %v711
        %v713 = vrot.slane %v662, 1
        %v714 = vrot.slane %v663, 1
        %v715 = vsel %vm707, %v713, %v714
        %v716 = vrot.slane %v664, 1
        %v717 = vsel %vm707, %v714, %v716
        %v718 = vrot.slane %v665, 1
        %v719 = vrot.slane %v666, 1
        %v720 = vsel %vm707, %v718, %v719
        %v721 = vrot.slane %v667, 1
        %v722 = vsel %vm707, %v719, %v721
        %v723 = vrot.slane %v668, 1
        %v724 = vrot.slane %v669, 1
        %v725 = vsel %vm707, %v723, %v724
        %v726 = vrot.slane %v670, 1
        %v727 = vsel %vm707, %v724, %v726
        %v728 = vrot.slane %v671, 1
        %v729 = vrot.slane %v672, 1
        %v730 = vsel %vm707, %v728, %v729
        %v731 = vrot.slane %v673, 1
        %v732 = vsel %vm707, %v729, %v731
        %v733 = vrot.slane %v674, 1
        %v734 = vrot.slane %v675, 1
        %v735 = vsel %vm707, %v733, %v734
        %v736 = vrot.slane %v676, 1
        %v737 = vsel %vm707, %v734, %v736
        %v738 = vrot.slane %v677, 1
        %v739 = vrot.slane %v678, 1
        %v740 = vsel %vm707, %v738, %v739
        %v741 = vrot.slane %v679, 1
        %v742 = vsel %vm707, %v739, %v741
        %v743 = vrot.slane %v680, 1
        %v744 = vrot.slane %v681, 1
        %v745 = vsel %vm707, %v743, %v744
        %v746 = vrot.slane %v682, 1
        %v747 = vsel %vm707, %v744, %v746
        %v764 = vadd.f32 %v641, %v710
        %v765 = vadd.f32 %v642, %v712
        %v766 = vadd.f32 %v643, %v715
        %v767 = vadd.f32 %v644, %v717
        %v768 = vadd.f32 %v645, %v720
        %v769 = vadd.f32 %v646, %v722
        %v770 = vadd.f32 %v647, %v725
        %v771 = vadd.f32 %v648, %v727
        %v772 = vadd.f32 %v649, %v730
        %v773 = vadd.f32 %v650, %v732
        %v774 = vadd.f32 %v651, %v735
        %v775 = vadd.f32 %v652, %v737
        %v776 = vadd.f32 %v653, %v740
        %v777 = vadd.f32 %v654, %v742
        %v778 = vadd.f32 %v655, %v745
        %v779 = vadd.f32 %v656, %v747
        %v780 = vld [vmem:[%s3 + $0x4] sm:$0x1]
        %v781 = vperm.slane %v780, 0
        %v782 = vmul.f32 %v528, %v781
        %v783 = vmul.f32 %v529, %v781
        %v784 = vmul.f32 %v530, %v781
        %v785 = vmul.f32 %v531, %v781
        %v786 = vmul.f32 %v532, %v781
        %v787 = vmul.f32 %v533, %v781
        %v788 = vmul.f32 %v534, %v781
        %v789 = vmul.f32 %v535, %v781
        %v790 = vmul.f32 %v536, %v781
        %v791 = vmul.f32 %v537, %v781
        %v792 = vmul.f32 %v538, %v781
        %v793 = vmul.f32 %v539, %v781
        %v794 = vmul.f32 %v540, %v781
        %v795 = vmul.f32 %v541, %v781
        %v796 = vmul.f32 %v542, %v781
        %v797 = vmul.f32 %v543, %v781
        %v798 = vmul.f32 %v544, %v781
        %v799 = vmul.f32 %v545, %v781
        %v800 = vmul.f32 %v546, %v781
        %v801 = vmul.f32 %v547, %v781
        %v802 = vmul.f32 %v548, %v781
        %v803 = vmul.f32 %v549, %v781
        %v804 = vmul.f32 %v550, %v781
        %v805 = vmul.f32 %v551, %v781
        %v830 = vrot.slane %v782, 1
        %v831 = vrot.slane %v783, 1
        %v832 = vsel %vm707, %v830, %v831
        %v833 = vrot.slane %v784, 1
        %v834 = vsel %vm707, %v831, %v833
        %v835 = vrot.slane %v785, 1
        %v836 = vrot.slane %v786, 1
        %v837 = vsel %vm707, %v835, %v836
        %v838 = vrot.slane %v787, 1
        %v839 = vsel %vm707, %v836, %v838
        %v840 = vrot.slane %v788, 1
        %v841 = vrot.slane %v789, 1
        %v842 = vsel %vm707, %v840, %v841
        %v843 = vrot.slane %v790, 1
        %v844 = vsel %vm707, %v841, %v843
        %v845 = vrot.slane %v791, 1
        %v846 = vrot.slane %v792, 1
        %v847 = vsel %vm707, %v845, %v846
        %v848 = vrot.slane %v793, 1
        %v849 = vsel %vm707, %v846, %v848
        %v850 = vrot.slane %v794, 1
        %v851 = vrot.slane %v795, 1
        %v852 = vsel %vm707, %v850, %v851
        %v853 = vrot.slane %v796, 1
        %v854 = vsel %vm707, %v851, %v853
        %v855 = vrot.slane %v797, 1
        %v856 = vrot.slane %v798, 1
        %v857 = vsel %vm707, %v855, %v856
        %v858 = vrot.slane %v799, 1
        %v859 = vsel %vm707, %v856, %v858
        %v860 = vrot.slane %v800, 1
        %v861 = vrot.slane %v801, 1
        %v862 = vsel %vm707, %v860, %v861
        %v863 = vrot.slane %v802, 1
        %v864 = vsel %vm707, %v861, %v863
        %v865 = vrot.slane %v803, 1
        %v866 = vrot.slane %v804, 1
        %v867 = vsel %vm707, %v865, %v866
        %v868 = vrot.slane %v805, 1
        %v869 = vsel %vm707, %v866, %v868
        %v886 = vadd.f32 %v764, %v832
        %v887 = vadd.f32 %v765, %v834
        %v888 = vadd.f32 %v766, %v837
        %v889 = vadd.f32 %v767, %v839
        %v890 = vadd.f32 %v768, %v842
        %v891 = vadd.f32 %v769, %v844
        %v892 = vadd.f32 %v770, %v847
        %v893 = vadd.f32 %v771, %v849
        %v894 = vadd.f32 %v772, %v852
        %v895 = vadd.f32 %v773, %v854
        %v896 = vadd.f32 %v774, %v857
        %v897 = vadd.f32 %v775, %v859
        %v898 = vadd.f32 %v776, %v862
        %v899 = vadd.f32 %v777, %v864
        %v900 = vadd.f32 %v778, %v867
        %v901 = vadd.f32 %v779, %v869
        %v902 = vld [vmem:[%s3 + $0x7] sm:$0x1]
        %v903 = vperm.slane %v902, 0
        %v904 = vmul.f32 %v531, %v903
        %v905 = vmul.f32 %v532, %v903
        %v906 = vmul.f32 %v533, %v903
        %v907 = vmul.f32 %v534, %v903
        %v908 = vmul.f32 %v535, %v903
        %v909 = vmul.f32 %v536, %v903
        %v910 = vmul.f32 %v537, %v903
        %v911 = vmul.f32 %v538, %v903
        %v912 = vmul.f32 %v539, %v903
        %v913 = vmul.f32 %v540, %v903
        %v914 = vmul.f32 %v541, %v903
        %v915 = vmul.f32 %v542, %v903
        %v916 = vmul.f32 %v543, %v903
        %v917 = vmul.f32 %v544, %v903
        %v918 = vmul.f32 %v545, %v903
        %v919 = vmul.f32 %v546, %v903
        %v920 = vmul.f32 %v547, %v903
        %v921 = vmul.f32 %v548, %v903
        %v922 = vmul.f32 %v549, %v903
        %v923 = vmul.f32 %v550, %v903
        %v924 = vmul.f32 %v551, %v903
        %v925 = vmul.f32 %v552, %v903
        %v926 = vmul.f32 %v553, %v903
        %v927 = vmul.f32 %v554, %v903
        %v952 = vrot.slane %v904, 1
        %v953 = vrot.slane %v905, 1
        %v954 = vsel %vm707, %v952, %v953
        %v955 = vrot.slane %v906, 1
        %v956 = vsel %vm707, %v953, %v955
        %v957 = vrot.slane %v907, 1
        %v958 = vrot.slane %v908, 1
        %v959 = vsel %vm707, %v957, %v958
        %v960 = vrot.slane %v909, 1
        %v961 = vsel %vm707, %v958, %v960
        %v962 = vrot.slane %v910, 1
        %v963 = vrot.slane %v911, 1
        %v964 = vsel %vm707, %v962, %v963
        %v965 = vrot.slane %v912, 1
        %v966 = vsel %vm707, %v963, %v965
        %v967 = vrot.slane %v913, 1
        %v968 = vrot.slane %v914, 1
        %v969 = vsel %vm707, %v967, %v968
        %v970 = vrot.slane %v915, 1
        %v971 = vsel %vm707, %v968, %v970
        %v972 = vrot.slane %v916, 1
        %v973 = vrot.slane %v917, 1
        %v974 = vsel %vm707, %v972, %v973
        %v975 = vrot.slane %v918, 1
        %v976 = vsel %vm707, %v973, %v975
        %v977 = vrot.slane %v919, 1
        %v978 = vrot.slane %v920, 1
        %v979 = vsel %vm707, %v977, %v978
        %v980 = vrot.slane %v921, 1
        %v981 = vsel %vm707, %v978, %v980
        %v982 = vrot.slane %v922, 1
        %v983 = vrot.slane %v923, 1
        %v984 = vsel %vm707, %v982, %v983
        %v985 = vrot.slane %v924, 1
        %v986 = vsel %vm707, %v983, %v985
        %v987 = vrot.slane %v925, 1
        %v988 = vrot.slane %v926, 1
        %v989 = vsel %vm707, %v987, %v988
        %v990 = vrot.slane %v927, 1
        %v991 = vsel %vm707, %v988, %v990
        %v1008 = vadd.f32 %v886, %v954
        %v1009 = vadd.f32 %v887, %v956
        %v1010 = vadd.f32 %v888, %v959
        %v1011 = vadd.f32 %v889, %v961
        %v1012 = vadd.f32 %v890, %v964
        %v1013 = vadd.f32 %v891, %v966
        %v1014 = vadd.f32 %v892, %v969
        %v1015 = vadd.f32 %v893, %v971
        %v1016 = vadd.f32 %v894, %v974
        %v1017 = vadd.f32 %v895, %v976
        %v1018 = vadd.f32 %v896, %v979
        %v1019 = vadd.f32 %v897, %v981
        %v1020 = vadd.f32 %v898, %v984
        %v1021 = vadd.f32 %v899, %v986
        %v1022 = vadd.f32 %v900, %v989
        %v1023 = vadd.f32 %v901, %v991
        %v1024 = vld [vmem:[%s3 + $0x2] sm:$0x1]
        %v1025 = vperm.slane %v1024, 0
        %v1026 = vmul.f32 %v525, %v1025
        %v1027 = vmul.f32 %v526, %v1025
        %v1028 = vmul.f32 %v527, %v1025
        %v1029 = vmul.f32 %v528, %v1025
        %v1030 = vmul.f32 %v529, %v1025
        %v1031 = vmul.f32 %v530, %v1025
        %v1032 = vmul.f32 %v531, %v1025
        %v1033 = vmul.f32 %v532, %v1025
        %v1034 = vmul.f32 %v533, %v1025
        %v1035 = vmul.f32 %v534, %v1025
        %v1036 = vmul.f32 %v535, %v1025
        %v1037 = vmul.f32 %v536, %v1025
        %v1038 = vmul.f32 %v537, %v1025
        %v1039 = vmul.f32 %v538, %v1025
        %v1040 = vmul.f32 %v539, %v1025
        %v1041 = vmul.f32 %v540, %v1025
        %v1042 = vmul.f32 %v541, %v1025
        %v1043 = vmul.f32 %v542, %v1025
        %v1044 = vmul.f32 %v543, %v1025
        %v1045 = vmul.f32 %v544, %v1025
        %v1046 = vmul.f32 %v545, %v1025
        %v1047 = vmul.f32 %v546, %v1025
        %v1048 = vmul.f32 %v547, %v1025
        %v1049 = vmul.f32 %v548, %v1025
        %vm1074 = vcmask 1045504
        %v1075 = vrot.slane %v1026, 2
        %v1076 = vrot.slane %v1027, 2
        %v1077 = vsel %vm1074, %v1075, %v1076
        %v1078 = vrot.slane %v1028, 2
        %v1079 = vsel %vm1074, %v1076, %v1078
        %v1080 = vrot.slane %v1029, 2
        %v1081 = vrot.slane %v1030, 2
        %v1082 = vsel %vm1074, %v1080, %v1081
        %v1083 = vrot.slane %v1031, 2
        %v1084 = vsel %vm1074, %v1081, %v1083
        %v1085 = vrot.slane %v1032, 2
        %v1086 = vrot.slane %v1033, 2
        %v1087 = vsel %vm1074, %v1085, %v1086
        %v1088 = vrot.slane %v1034, 2
        %v1089 = vsel %vm1074, %v1086, %v1088
        %v1090 = vrot.slane %v1035, 2
        %v1091 = vrot.slane %v1036, 2
        %v1092 = vsel %vm1074, %v1090, %v1091
        %v1093 = vrot.slane %v1037, 2
        %v1094 = vsel %vm1074, %v1091, %v1093
        %v1095 = vrot.slane %v1038, 2
        %v1096 = vrot.slane %v1039, 2
        %v1097 = vsel %vm1074, %v1095, %v1096
        %v1098 = vrot.slane %v1040, 2
        %v1099 = vsel %vm1074, %v1096, %v1098
        %v1100 = vrot.slane %v1041, 2
        %v1101 = vrot.slane %v1042, 2
        %v1102 = vsel %vm1074, %v1100, %v1101
        %v1103 = vrot.slane %v1043, 2
        %v1104 = vsel %vm1074, %v1101, %v1103
        %v1105 = vrot.slane %v1044, 2
        %v1106 = vrot.slane %v1045, 2
        %v1107 = vsel %vm1074, %v1105, %v1106
        %v1108 = vrot.slane %v1046, 2
        %v1109 = vsel %vm1074, %v1106, %v1108
        %v1110 = vrot.slane %v1047, 2
        %v1111 = vrot.slane %v1048, 2
        %v1112 = vsel %vm1074, %v1110, %v1111
        %v1113 = vrot.slane %v1049, 2
        %v1114 = vsel %vm1074, %v1111, %v1113
        %v1131 = vadd.f32 %v1008, %v1077
        %v1132 = vadd.f32 %v1009, %v1079
        %v1133 = vadd.f32 %v1010, %v1082
        %v1134 = vadd.f32 %v1011, %v1084
        %v1135 = vadd.f32 %v1012, %v1087
        %v1136 = vadd.f32 %v1013, %v1089
        %v1137 = vadd.f32 %v1014, %v1092
        %v1138 = vadd.f32 %v1015, %v1094
        %v1139 = vadd.f32 %v1016, %v1097
        %v1140 = vadd.f32 %v1017, %v1099
        %v1141 = vadd.f32 %v1018, %v1102
        %v1142 = vadd.f32 %v1019, %v1104
        %v1143 = vadd.f32 %v1020, %v1107
        %v1144 = vadd.f32 %v1021, %v1109
        %v1145 = vadd.f32 %v1022, %v1112
        %v1146 = vadd.f32 %v1023, %v1114
        %v1147 = vld [vmem:[%s3 + $0x5] sm:$0x1]
        %v1148 = vperm.slane %v1147, 0
        %v1149 = vmul.f32 %v528, %v1148
        %v1150 = vmul.f32 %v529, %v1148
        %v1151 = vmul.f32 %v530, %v1148
        %v1152 = vmul.f32 %v531, %v1148
        %v1153 = vmul.f32 %v532, %v1148
        %v1154 = vmul.f32 %v533, %v1148
        %v1155 = vmul.f32 %v534, %v1148
        %v1156 = vmul.f32 %v535, %v1148
        %v1157 = vmul.f32 %v536, %v1148
        %v1158 = vmul.f32 %v537, %v1148
        %v1159 = vmul.f32 %v538, %v1148
        %v1160 = vmul.f32 %v539, %v1148
        %v1161 = vmul.f32 %v540, %v1148
        %v1162 = vmul.f32 %v541, %v1148
        %v1163 = vmul.f32 %v542, %v1148
        %v1164 = vmul.f32 %v543, %v1148
        %v1165 = vmul.f32 %v544, %v1148
        %v1166 = vmul.f32 %v545, %v1148
        %v1167 = vmul.f32 %v546, %v1148
        %v1168 = vmul.f32 %v547, %v1148
        %v1169 = vmul.f32 %v548, %v1148
        %v1170 = vmul.f32 %v549, %v1148
        %v1171 = vmul.f32 %v550, %v1148
        %v1172 = vmul.f32 %v551, %v1148
        %v1197 = vrot.slane %v1149, 2
        %v1198 = vrot.slane %v1150, 2
        %v1199 = vsel %vm1074, %v1197, %v1198
        %v1200 = vrot.slane %v1151, 2
        %v1201 = vsel %vm1074, %v1198, %v1200
        %v1202 = vrot.slane %v1152, 2
        %v1203 = vrot.slane %v1153, 2
        %v1204 = vsel %vm1074, %v1202, %v1203
        %v1205 = vrot.slane %v1154, 2
        %v1206 = vsel %vm1074, %v1203, %v1205
        %v1207 = vrot.slane %v1155, 2
        %v1208 = vrot.slane %v1156, 2
        %v1209 = vsel %vm1074, %v1207, %v1208
        %v1210 = vrot.slane %v1157, 2
        %v1211 = vsel %vm1074, %v1208, %v1210
        %v1212 = vrot.slane %v1158, 2
        %v1213 = vrot.slane %v1159, 2
        %v1214 = vsel %vm1074, %v1212, %v1213
        %v1215 = vrot.slane %v1160, 2
        %v1216 = vsel %vm1074, %v1213, %v1215
        %v1217 = vrot.slane %v1161, 2
        %v1218 = vrot.slane %v1162, 2
        %v1219 = vsel %vm1074, %v1217, %v1218
        %v1220 = vrot.slane %v1163, 2
        %v1221 = vsel %vm1074, %v1218, %v1220
        %v1222 = vrot.slane %v1164, 2
        %v1223 = vrot.slane %v1165, 2
        %v1224 = vsel %vm1074, %v1222, %v1223
        %v1225 = vrot.slane %v1166, 2
        %v1226 = vsel %vm1074, %v1223, %v1225
        %v1227 = vrot.slane %v1167, 2
        %v1228 = vrot.slane %v1168, 2
        %v1229 = vsel %vm1074, %v1227, %v1228
        %v1230 = vrot.slane %v1169, 2
        %v1231 = vsel %vm1074, %v1228, %v1230
        %v1232 = vrot.slane %v1170, 2
        %v1233 = vrot.slane %v1171, 2
        %v1234 = vsel %vm1074, %v1232, %v1233
        %v1235 = vrot.slane %v1172, 2
        %v1236 = vsel %vm1074, %v1233, %v1235
        %v1253 = vadd.f32 %v1131, %v1199
        %v1254 = vadd.f32 %v1132, %v1201
        %v1255 = vadd.f32 %v1133, %v1204
        %v1256 = vadd.f32 %v1134, %v1206
        %v1257 = vadd.f32 %v1135, %v1209
        %v1258 = vadd.f32 %v1136, %v1211
        %v1259 = vadd.f32 %v1137, %v1214
        %v1260 = vadd.f32 %v1138, %v1216
        %v1261 = vadd.f32 %v1139, %v1219
        %v1262 = vadd.f32 %v1140, %v1221
        %v1263 = vadd.f32 %v1141, %v1224
        %v1264 = vadd.f32 %v1142, %v1226
        %v1265 = vadd.f32 %v1143, %v1229
        %v1266 = vadd.f32 %v1144, %v1231
        %v1267 = vadd.f32 %v1145, %v1234
        %v1268 = vadd.f32 %v1146, %v1236
        %v1269 = vld [vmem:[%s3 + $0x8] sm:$0x1]
        %v1270 = vperm.slane %v1269, 0
        %v1271 = vmul.f32 %v531, %v1270
        %v1272 = vmul.f32 %v532, %v1270
        %v1273 = vmul.f32 %v533, %v1270
        %v1274 = vmul.f32 %v534, %v1270
        %v1275 = vmul.f32 %v535, %v1270
        %v1276 = vmul.f32 %v536, %v1270
        %v1277 = vmul.f32 %v537, %v1270
        %v1278 = vmul.f32 %v538, %v1270
        %v1279 = vmul.f32 %v539, %v1270
        %v1280 = vmul.f32 %v540, %v1270
        %v1281 = vmul.f32 %v541, %v1270
        %v1282 = vmul.f32 %v542, %v1270
        %v1283 = vmul.f32 %v543, %v1270
        %v1284 = vmul.f32 %v544, %v1270
        %v1285 = vmul.f32 %v545, %v1270
        %v1286 = vmul.f32 %v546, %v1270
        %v1287 = vmul.f32 %v547, %v1270
        %v1288 = vmul.f32 %v548, %v1270
        %v1289 = vmul.f32 %v549, %v1270
        %v1290 = vmul.f32 %v550, %v1270
        %v1291 = vmul.f32 %v551, %v1270
        %v1292 = vmul.f32 %v552, %v1270
        %v1293 = vmul.f32 %v553, %v1270
        %v1294 = vmul.f32 %v554, %v1270
        %v1319 = vrot.slane %v1271, 2
        %v1320 = vrot.slane %v1272, 2
        %v1321 = vsel %vm1074, %v1319, %v1320
        %v1322 = vrot.slane %v1273, 2
        %v1323 = vsel %vm1074, %v1320, %v1322
        %v1324 = vrot.slane %v1274, 2
        %v1325 = vrot.slane %v1275, 2
        %v1326 = vsel %vm1074, %v1324, %v1325
        %v1327 = vrot.slane %v1276, 2
        %v1328 = vsel %vm1074, %v1325, %v1327
        %v1329 = vrot.slane %v1277, 2
        %v1330 = vrot.slane %v1278, 2
        %v1331 = vsel %vm1074, %v1329, %v1330
        %v1332 = vrot.slane %v1279, 2
        %v1333 = vsel %vm1074, %v1330, %v1332
        %v1334 = vrot.slane %v1280, 2
        %v1335 = vrot.slane %v1281, 2
        %v1336 = vsel %vm1074, %v1334, %v1335
        %v1337 = vrot.slane %v1282, 2
        %v1338 = vsel %vm1074, %v1335, %v1337
        %v1339 = vrot.slane %v1283, 2
        %v1340 = vrot.slane %v1284, 2
        %v1341 = vsel %vm1074, %v1339, %v1340
        %v1342 = vrot.slane %v1285, 2
        %v1343 = vsel %vm1074, %v1340, %v1342
        %v1344 = vrot.slane %v1286, 2
        %v1345 = vrot.slane %v1287, 2
        %v1346 = vsel %vm1074, %v1344, %v1345
        %v1347 = vrot.slane %v1288, 2
        %v1348 = vsel %vm1074, %v1345, %v1347
        %v1349 = vrot.slane %v1289, 2
        %v1350 = vrot.slane %v1290, 2
        %v1351 = vsel %vm1074, %v1349, %v1350
        %v1352 = vrot.slane %v1291, 2
        %v1353 = vsel %vm1074, %v1350, %v1352
        %v1354 = vrot.slane %v1292, 2
        %v1355 = vrot.slane %v1293, 2
        %v1356 = vsel %vm1074, %v1354, %v1355
        %v1357 = vrot.slane %v1294, 2
        %v1358 = vsel %vm1074, %v1355, %v1357
        %v1375 = vadd.f32 %v1253, %v1321
        %v1376 = vadd.f32 %v1254, %v1323
        %v1377 = vadd.f32 %v1255, %v1326
        %v1378 = vadd.f32 %v1256, %v1328
        %v1379 = vadd.f32 %v1257, %v1331
        %v1380 = vadd.f32 %v1258, %v1333
        %v1381 = vadd.f32 %v1259, %v1336
        %v1382 = vadd.f32 %v1260, %v1338
        %v1383 = vadd.f32 %v1261, %v1341
        %v1384 = vadd.f32 %v1262, %v1343
        %v1385 = vadd.f32 %v1263, %v1346
        %v1386 = vadd.f32 %v1264, %v1348
        %v1387 = vadd.f32 %v1265, %v1351
        %v1388 = vadd.f32 %v1266, %v1353
        %v1389 = vadd.f32 %v1267, %v1356
        %v1390 = vadd.f32 %v1268, %v1358
        %v1391 = vld [vmem:[%s4] sm:$0x1]
        %v1393 = vperm.slane %v1391, 0
        %v1395 = vadd.f32 %v1375, %v1393
        %v1396 = vadd.f32 %v1376, %v1393
        %v1397 = vadd.f32 %v1377, %v1393
        %v1398 = vadd.f32 %v1378, %v1393
        %v1399 = vadd.f32 %v1379, %v1393
        %v1400 = vadd.f32 %v1380, %v1393
        %v1401 = vadd.f32 %v1381, %v1393
        %v1402 = vadd.f32 %v1382, %v1393
        %v1403 = vadd.f32 %v1383, %v1393
        %v1404 = vadd.f32 %v1384, %v1393
        %v1405 = vadd.f32 %v1385, %v1393
        %v1406 = vadd.f32 %v1386, %v1393
        %v1407 = vadd.f32 %v1387, %v1393
        %v1408 = vadd.f32 %v1388, %v1393
        %v1409 = vadd.f32 %v1389, %v1393
        %v1410 = vadd.f32 %v1390, %v1393
        %v1411 = vmax.f32 %v1395, 0.0
        %v1412 = vmax.f32 %v1396, 0.0
        %v1413 = vmax.f32 %v1397, 0.0
        %v1414 = vmax.f32 %v1398, 0.0
        %v1415 = vmax.f32 %v1399, 0.0
        %v1416 = vmax.f32 %v1400, 0.0
        %v1417 = vmax.f32 %v1401, 0.0
        %v1418 = vmax.f32 %v1402, 0.0
        %v1419 = vmax.f32 %v1403, 0.0
        %v1420 = vmax.f32 %v1404, 0.0
        %v1421 = vmax.f32 %v1405, 0.0
        %v1422 = vmax.f32 %v1406, 0.0
        %v1423 = vmax.f32 %v1407, 0.0
        %v1424 = vmax.f32 %v1408, 0.0
        %v1425 = vmax.f32 %v1409, 0.0
        %v1426 = vmax.f32 %v1410, 0.0
        %vm1443 = vcmask 1040384
        %v1444 = vrot.slane %v1411, 7
        %v1445 = vrot.slane %v1412, 7
        %v1446 = vsel %vm1443, %v1444, %v1445
        %v1447 = vrot.slane %v1413, 7
        %v1448 = vrot.slane %v1414, 7
        %v1449 = vsel %vm1443, %v1447, %v1448
        %v1450 = vrot.slane %v1415, 7
        %v1451 = vrot.slane %v1416, 7
        %v1452 = vsel %vm1443, %v1450, %v1451
        %v1453 = vrot.slane %v1417, 7
        %v1454 = vrot.slane %v1418, 7
        %v1455 = vsel %vm1443, %v1453, %v1454
        %v1456 = vrot.slane %v1419, 7
        %v1457 = vrot.slane %v1420, 7
        %v1458 = vsel %vm1443, %v1456, %v1457
        %v1459 = vrot.slane %v1421, 7
        %v1460 = vrot.slane %v1422, 7
        %v1461 = vsel %vm1443, %v1459, %v1460
        %v1462 = vrot.slane %v1423, 7
        %v1463 = vrot.slane %v1424, 7
        %v1464 = vsel %vm1443, %v1462, %v1463
        %v1465 = vrot.slane %v1425, 7
        %v1466 = vrot.slane %v1426, 7
        %v1467 = vsel %vm1443, %v1465, %v1466
        %v1484 = vadd.f32 %v381, %v1444
        %v1485 = vadd.f32 %v382, %v1446
        %v1486 = vadd.f32 %v383, %v1447
        %v1487 = vadd.f32 %v384, %v1449
        %v1488 = vadd.f32 %v385, %v1450
        %v1489 = vadd.f32 %v386, %v1452
        %v1490 = vadd.f32 %v387, %v1453
        %v1491 = vadd.f32 %v388, %v1455
        %v1492 = vadd.f32 %v389, %v1456
        %v1493 = vadd.f32 %v390, %v1458
        %v1494 = vadd.f32 %v391, %v1459
        %v1495 = vadd.f32 %v392, %v1461
        %v1496 = vadd.f32 %v393, %v1462
        %v1497 = vadd.f32 %v394, %v1464
        %v1498 = vadd.f32 %v395, %v1465
        %v1499 = vadd.f32 %v396, %v1467
        %s1500 = scalar_lea.vmem [#allocation3], 128
        %v1501 = vld [vmem:[%s1500] sm:$0xff]
        %v1502 = vld [vmem:[%s1500 + $0x8] sm:$0xff]
        %v1503 = vld [vmem:[%s1500 + $0x10] sm:$0xff]
        %v1504 = vld [vmem:[%s1500 + $0x18] sm:$0xff]
        %v1505 = vld [vmem:[%s1500 + $0x20] sm:$0xff]
        %v1506 = vld [vmem:[%s1500 + $0x28] sm:$0xff]
        %v1507 = vld [vmem:[%s1500 + $0x30] sm:$0xff]
        %v1508 = vld [vmem:[%s1500 + $0x38] sm:$0xff]
        %v1509 = vld [vmem:[%s1500 + $0x40] sm:$0xff]
        %v1510 = vld [vmem:[%s1500 + $0x48] sm:$0xff]
        %v1511 = vld [vmem:[%s1500 + $0x50] sm:$0xff]
        %v1512 = vld [vmem:[%s1500 + $0x58] sm:$0xff]
        %v1513 = vld [vmem:[%s1500 + $0x60] sm:$0xff]
        %v1514 = vld [vmem:[%s1500 + $0x68] sm:$0xff]
        %v1515 = vld [vmem:[%s1500 + $0x70] sm:$0xff]
        %v1516 = vld [vmem:[%s1500 + $0x78] sm:$0xff]
        %s1517 = scalar_lea.vmem %s2, 1
        %v1518 = vld [vmem:[%s1517] sm:$0x1]
        %v1520 = vperm.slane %v1518, 0
        %1522 = vmatpush.msra.mxu0 %v1516
        %1523 = vmatpush.msra.mxu0 %v1515
        %1524 = vmatpush.msra.mxu0 %v1514
        %1525 = vmatpush.msra.mxu0 %v1513
        %1526 = vmatpush.msra.mxu0 %v1512
        %1527 = vmatpush.msra.mxu0 %v1511
        %1528 = vmatpush.msra.mxu0 %v1510
        %1529 = vmatpush.msra.mxu0 %v1509
        %1530 = vmatpush.msra.mxu0 %v1508
        %1531 = vmatpush.msra.mxu0 %v1507
        %1532 = vmatpush.msra.mxu0 %v1506
        %1533 = vmatpush.msra.mxu0 %v1505
        %1534 = vmatpush.msra.mxu0 %v1504
        %1535 = vmatpush.msra.mxu0 %v1503
        %1536 = vmatpush.msra.mxu0 %v1502
        %1537 = vmatpush.msra.mxu0 %v1501
        %1538 = vmatmul.f32.gmra.mxu0 %v1411
        %v1539 = vpop.f32.mrf.mxu0
        %v1540 = vadd.f32 %v1520, %v1539
        %1541 = vmatmul.f32.gmra.mxu0 %v1412
        %v1542 = vpop.f32.mrf.mxu0
        %v1543 = vadd.f32 %v1520, %v1542
        %1544 = vmatmul.f32.gmra.mxu0 %v1413
        %v1545 = vpop.f32.mrf.mxu0
        %v1546 = vadd.f32 %v1520, %v1545
        %1547 = vmatmul.f32.gmra.mxu0 %v1414
        %v1548 = vpop.f32.mrf.mxu0
        %v1549 = vadd.f32 %v1520, %v1548
        %1550 = vmatmul.f32.gmra.mxu0 %v1415
        %v1551 = vpop.f32.mrf.mxu0
        %v1552 = vadd.f32 %v1520, %v1551
        %1553 = vmatmul.f32.gmra.mxu0 %v1416
        %v1554 = vpop.f32.mrf.mxu0
        %v1555 = vadd.f32 %v1520, %v1554
        %1556 = vmatmul.f32.gmra.mxu0 %v1417
        %v1557 = vpop.f32.mrf.mxu0
        %v1558 = vadd.f32 %v1520, %v1557
        %1559 = vmatmul.f32.gmra.mxu0 %v1418
        %v1560 = vpop.f32.mrf.mxu0
        %v1561 = vadd.f32 %v1520, %v1560
        %1562 = vmatmul.f32.gmra.mxu0 %v1419
        %v1563 = vpop.f32.mrf.mxu0
        %v1564 = vadd.f32 %v1520, %v1563
        %1565 = vmatmul.f32.gmra.mxu0 %v1420
        %v1566 = vpop.f32.mrf.mxu0
        %v1567 = vadd.f32 %v1520, %v1566
        %1568 = vmatmul.f32.gmra.mxu0 %v1421
        %v1569 = vpop.f32.mrf.mxu0
        %v1570 = vadd.f32 %v1520, %v1569
        %1571 = vmatmul.f32.gmra.mxu0 %v1422
        %v1572 = vpop.f32.mrf.mxu0
        %v1573 = vadd.f32 %v1520, %v1572
        %1574 = vmatmul.f32.gmra.mxu0 %v1423
        %v1575 = vpop.f32.mrf.mxu0
        %v1576 = vadd.f32 %v1520, %v1575
        %1577 = vmatmul.f32.gmra.mxu0 %v1424
        %v1578 = vpop.f32.mrf.mxu0
        %v1579 = vadd.f32 %v1520, %v1578
        %1580 = vmatmul.f32.gmra.mxu0 %v1425
        %v1581 = vpop.f32.mrf.mxu0
        %v1582 = vadd.f32 %v1520, %v1581
        %1583 = vmatmul.f32.gmra.mxu0 %v1426
        %v1584 = vpop.f32.mrf.mxu0
        %v1585 = vadd.f32 %v1520, %v1584
        %1586 = vdwg.mxu0
        %vm1587 = vcmp.ge.s32.totalorder %v379, 3
        %vm1588 = vcmp.ge.s32.totalorder %v380, 3
        %vm1589 = vcmp.lt.s32.totalorder %v379, 11
        %vm1590 = vcmp.lt.s32.totalorder %v380, 11
        %vm1591 = vmand %vm1587, %vm1589
        %vm1592 = vmand %vm1588, %vm1590
        %v1593 = vsel %vm1591, 1, 0
        %v1594 = vsel %vm1592, 1, 0
        %vm1595 = vcmp.eq.s32.totalorder %v1593, 1
        %vm1596 = vcmp.eq.s32.totalorder %v1594, 1
        %v1597 = vsel %vm1595, %v1540, 0.0
        %v1598 = vsel %vm1596, %v1543, 0.0
        %v1599 = vsel %vm1595, %v1546, 0.0
        %v1600 = vsel %vm1596, %v1549, 0.0
        %v1601 = vsel %vm1595, %v1552, 0.0
        %v1602 = vsel %vm1596, %v1555, 0.0
        %v1603 = vsel %vm1595, %v1558, 0.0
        %v1604 = vsel %vm1596, %v1561, 0.0
        %v1605 = vsel %vm1595, %v1564, 0.0
        %v1606 = vsel %vm1596, %v1567, 0.0
        %v1607 = vsel %vm1595, %v1570, 0.0
        %v1608 = vsel %vm1596, %v1573, 0.0
        %v1609 = vsel %vm1595, %v1576, 0.0
        %v1610 = vsel %vm1596, %v1579, 0.0
        %v1611 = vsel %vm1595, %v1582, 0.0
        %v1612 = vsel %vm1596, %v1585, 0.0
        %1613 = vst [vmem:[%s508] sm:$0xff] %v1597
        %1614 = vst [vmem:[%s508 + $0x8] sm:$0xff] %v1598
        %1615 = vst [vmem:[%s508 + $0x18] sm:$0xff] %v1599
        %1616 = vst [vmem:[%s508 + $0x20] sm:$0xff] %v1600
        %1617 = vst [vmem:[%s508 + $0x30] sm:$0xff] %v1601
        %1618 = vst [vmem:[%s508 + $0x38] sm:$0xff] %v1602
        %1619 = vst [vmem:[%s508 + $0x48] sm:$0xff] %v1603
        %1620 = vst [vmem:[%s508 + $0x50] sm:$0xff] %v1604
        %1621 = vst [vmem:[%s508 + $0x60] sm:$0xff] %v1605
        %1622 = vst [vmem:[%s508 + $0x68] sm:$0xff] %v1606
        %1623 = vst [vmem:[%s508 + $0x78] sm:$0xff] %v1607
        %1624 = vst [vmem:[%s508 + $0x80] sm:$0xff] %v1608
        %1625 = vst [vmem:[%s508 + $0x90] sm:$0xff] %v1609
        %1626 = vst [vmem:[%s508 + $0x98] sm:$0xff] %v1610
        %1627 = vst [vmem:[%s508 + $0xa8] sm:$0xff] %v1611
        %1628 = vst [vmem:[%s508 + $0xb0] sm:$0xff] %v1612
        %v1629 = vld [vmem:[#allocation2] sm:$0xff]
        %v1630 = vld [vmem:[#allocation2 + $0x8] sm:$0xff]
        %v1631 = vld [vmem:[#allocation2 + $0x10] sm:$0xff]
        %v1632 = vld [vmem:[#allocation2 + $0x18] sm:$0xff]
        %v1633 = vld [vmem:[#allocation2 + $0x20] sm:$0xff]
        %v1634 = vld [vmem:[#allocation2 + $0x28] sm:$0xff]
        %v1635 = vld [vmem:[#allocation2 + $0x30] sm:$0xff]
        %v1636 = vld [vmem:[#allocation2 + $0x38] sm:$0xff]
        %v1637 = vld [vmem:[#allocation2 + $0x40] sm:$0xff]
        %v1638 = vld [vmem:[#allocation2 + $0x48] sm:$0xff]
        %v1639 = vld [vmem:[#allocation2 + $0x50] sm:$0xff]
        %v1640 = vld [vmem:[#allocation2 + $0x58] sm:$0xff]
        %v1641 = vld [vmem:[#allocation2 + $0x60] sm:$0xff]
        %v1642 = vld [vmem:[#allocation2 + $0x68] sm:$0xff]
        %v1643 = vld [vmem:[#allocation2 + $0x70] sm:$0xff]
        %v1644 = vld [vmem:[#allocation2 + $0x78] sm:$0xff]
        %v1645 = vld [vmem:[#allocation2 + $0x80] sm:$0xff]
        %v1646 = vld [vmem:[#allocation2 + $0x88] sm:$0xff]
        %v1647 = vld [vmem:[#allocation2 + $0x90] sm:$0xff]
        %v1648 = vld [vmem:[#allocation2 + $0x98] sm:$0xff]
        %v1649 = vld [vmem:[#allocation2 + $0xa0] sm:$0xff]
        %v1650 = vld [vmem:[#allocation2 + $0xa8] sm:$0xff]
        %v1651 = vld [vmem:[#allocation2 + $0xb0] sm:$0xff]
        %v1652 = vld [vmem:[#allocation2 + $0xb8] sm:$0xff]
        %v1653 = vld [vmem:[#allocation2 + $0xc0] sm:$0xff]
        %v1654 = vld [vmem:[#allocation2 + $0xc8] sm:$0xff]
        %v1655 = vld [vmem:[#allocation2 + $0xd0] sm:$0xff]
        %v1656 = vld [vmem:[#allocation2 + $0xd8] sm:$0xff]
        %v1657 = vld [vmem:[#allocation2 + $0xe0] sm:$0xff]
        %v1658 = vld [vmem:[#allocation2 + $0xe8] sm:$0xff]
        %s1659 = scalar_lea.vmem %s3, 16
        %v1660 = vld [vmem:[%s1659] sm:$0x1]
        %v1661 = vperm.slane %v1660, 0
        %v1662 = vmul.f32 %v1629, %v1661
        %v1663 = vmul.f32 %v1630, %v1661
        %v1664 = vmul.f32 %v1632, %v1661
        %v1665 = vmul.f32 %v1633, %v1661
        %v1666 = vmul.f32 %v1635, %v1661
        %v1667 = vmul.f32 %v1636, %v1661
        %v1668 = vmul.f32 %v1638, %v1661
        %v1669 = vmul.f32 %v1639, %v1661
        %v1670 = vmul.f32 %v1641, %v1661
        %v1671 = vmul.f32 %v1642, %v1661
        %v1672 = vmul.f32 %v1644, %v1661
        %v1673 = vmul.f32 %v1645, %v1661
        %v1674 = vmul.f32 %v1647, %v1661
        %v1675 = vmul.f32 %v1648, %v1661
        %v1676 = vmul.f32 %v1650, %v1661
        %v1677 = vmul.f32 %v1651, %v1661
        %v1678 = vadd.f32 %v1662, 0.0
        %v1679 = vadd.f32 %v1663, 0.0
        %v1680 = vadd.f32 %v1664, 0.0
        %v1681 = vadd.f32 %v1665, 0.0
        %v1682 = vadd.f32 %v1666, 0.0
        %v1683 = vadd.f32 %v1667, 0.0
        %v1684 = vadd.f32 %v1668, 0.0
        %v1685 = vadd.f32 %v1669, 0.0
        %v1686 = vadd.f32 %v1670, 0.0
        %v1687 = vadd.f32 %v1671, 0.0
        %v1688 = vadd.f32 %v1672, 0.0
        %v1689 = vadd.f32 %v1673, 0.0
        %v1690 = vadd.f32 %v1674, 0.0
        %v1691 = vadd.f32 %v1675, 0.0
        %v1692 = vadd.f32 %v1676, 0.0
        %v1693 = vadd.f32 %v1677, 0.0
        %v1694 = vld [vmem:[%s1659 + $0x3] sm:$0x1]
        %v1695 = vperm.slane %v1694, 0
        %v1696 = vmul.f32 %v1632, %v1695
        %v1697 = vmul.f32 %v1633, %v1695
        %v1698 = vmul.f32 %v1635, %v1695
        %v1699 = vmul.f32 %v1636, %v1695
        %v1700 = vmul.f32 %v1638, %v1695
        %v1701 = vmul.f32 %v1639, %v1695
        %v1702 = vmul.f32 %v1641, %v1695
        %v1703 = vmul.f32 %v1642, %v1695
        %v1704 = vmul.f32 %v1644, %v1695
        %v1705 = vmul.f32 %v1645, %v1695
        %v1706 = vmul.f32 %v1647, %v1695
        %v1707 = vmul.f32 %v1648, %v1695
        %v1708 = vmul.f32 %v1650, %v1695
        %v1709 = vmul.f32 %v1651, %v1695
        %v1710 = vmul.f32 %v1653, %v1695
        %v1711 = vmul.f32 %v1654, %v1695
        %v1712 = vadd.f32 %v1678, %v1696
        %v1713 = vadd.f32 %v1679, %v1697
        %v1714 = vadd.f32 %v1680, %v1698
        %v1715 = vadd.f32 %v1681, %v1699
        %v1716 = vadd.f32 %v1682, %v1700
        %v1717 = vadd.f32 %v1683, %v1701
        %v1718 = vadd.f32 %v1684, %v1702
        %v1719 = vadd.f32 %v1685, %v1703
        %v1720 = vadd.f32 %v1686, %v1704
        %v1721 = vadd.f32 %v1687, %v1705
        %v1722 = vadd.f32 %v1688, %v1706
        %v1723 = vadd.f32 %v1689, %v1707
        %v1724 = vadd.f32 %v1690, %v1708
        %v1725 = vadd.f32 %v1691, %v1709
        %v1726 = vadd.f32 %v1692, %v1710
        %v1727 = vadd.f32 %v1693, %v1711
        %v1728 = vld [vmem:[%s1659 + $0x6] sm:$0x1]
        %v1729 = vperm.slane %v1728, 0
        %v1730 = vmul.f32 %v1635, %v1729
        %v1731 = vmul.f32 %v1636, %v1729
        %v1732 = vmul.f32 %v1638, %v1729
        %v1733 = vmul.f32 %v1639, %v1729
        %v1734 = vmul.f32 %v1641, %v1729
        %v1735 = vmul.f32 %v1642, %v1729
        %v1736 = vmul.f32 %v1644, %v1729
        %v1737 = vmul.f32 %v1645, %v1729
        %v1738 = vmul.f32 %v1647, %v1729
        %v1739 = vmul.f32 %v1648, %v1729
        %v1740 = vmul.f32 %v1650, %v1729
        %v1741 = vmul.f32 %v1651, %v1729
        %v1742 = vmul.f32 %v1653, %v1729
        %v1743 = vmul.f32 %v1654, %v1729
        %v1744 = vmul.f32 %v1656, %v1729
        %v1745 = vmul.f32 %v1657, %v1729
        %v1746 = vadd.f32 %v1712, %v1730
        %v1747 = vadd.f32 %v1713, %v1731
        %v1748 = vadd.f32 %v1714, %v1732
        %v1749 = vadd.f32 %v1715, %v1733
        %v1750 = vadd.f32 %v1716, %v1734
        %v1751 = vadd.f32 %v1717, %v1735
        %v1752 = vadd.f32 %v1718, %v1736
        %v1753 = vadd.f32 %v1719, %v1737
        %v1754 = vadd.f32 %v1720, %v1738
        %v1755 = vadd.f32 %v1721, %v1739
        %v1756 = vadd.f32 %v1722, %v1740
        %v1757 = vadd.f32 %v1723, %v1741
        %v1758 = vadd.f32 %v1724, %v1742
        %v1759 = vadd.f32 %v1725, %v1743
        %v1760 = vadd.f32 %v1726, %v1744
        %v1761 = vadd.f32 %v1727, %v1745
        %v1762 = vld [vmem:[%s1659 + $0x1] sm:$0x1]
        %v1763 = vperm.slane %v1762, 0
        %v1764 = vmul.f32 %v1629, %v1763
        %v1765 = vmul.f32 %v1630, %v1763
        %v1766 = vmul.f32 %v1631, %v1763
        %v1767 = vmul.f32 %v1632, %v1763
        %v1768 = vmul.f32 %v1633, %v1763
        %v1769 = vmul.f32 %v1634, %v1763
        %v1770 = vmul.f32 %v1635, %v1763
        %v1771 = vmul.f32 %v1636, %v1763
        %v1772 = vmul.f32 %v1637, %v1763
        %v1773 = vmul.f32 %v1638, %v1763
        %v1774 = vmul.f32 %v1639, %v1763
        %v1775 = vmul.f32 %v1640, %v1763
        %v1776 = vmul.f32 %v1641, %v1763
        %v1777 = vmul.f32 %v1642, %v1763
        %v1778 = vmul.f32 %v1643, %v1763
        %v1779 = vmul.f32 %v1644, %v1763
        %v1780 = vmul.f32 %v1645, %v1763
        %v1781 = vmul.f32 %v1646, %v1763
        %v1782 = vmul.f32 %v1647, %v1763
        %v1783 = vmul.f32 %v1648, %v1763
        %v1784 = vmul.f32 %v1649, %v1763
        %v1785 = vmul.f32 %v1650, %v1763
        %v1786 = vmul.f32 %v1651, %v1763
        %v1787 = vmul.f32 %v1652, %v1763
        %v1812 = vrot.slane %v1764, 1
        %v1813 = vrot.slane %v1765, 1
        %v1814 = vsel %vm707, %v1812, %v1813
        %v1815 = vrot.slane %v1766, 1
        %v1816 = vsel %vm707, %v1813, %v1815
        %v1817 = vrot.slane %v1767, 1
        %v1818 = vrot.slane %v1768, 1
        %v1819 = vsel %vm707, %v1817, %v1818
        %v1820 = vrot.slane %v1769, 1
        %v1821 = vsel %vm707, %v1818, %v1820
        %v1822 = vrot.slane %v1770, 1
        %v1823 = vrot.slane %v1771, 1
        %v1824 = vsel %vm707, %v1822, %v1823
        %v1825 = vrot.slane %v1772, 1
        %v1826 = vsel %vm707, %v1823, %v1825
        %v1827 = vrot.slane %v1773, 1
        %v1828 = vrot.slane %v1774, 1
        %v1829 = vsel %vm707, %v1827, %v1828
        %v1830 = vrot.slane %v1775, 1
        %v1831 = vsel %vm707, %v1828, %v1830
        %v1832 = vrot.slane %v1776, 1
        %v1833 = vrot.slane %v1777, 1
        %v1834 = vsel %vm707, %v1832, %v1833
        %v1835 = vrot.slane %v1778, 1
        %v1836 = vsel %vm707, %v1833, %v1835
        %v1837 = vrot.slane %v1779, 1
        %v1838 = vrot.slane %v1780, 1
        %v1839 = vsel %vm707, %v1837, %v1838
        %v1840 = vrot.slane %v1781, 1
        %v1841 = vsel %vm707, %v1838, %v1840
        %v1842 = vrot.slane %v1782, 1
        %v1843 = vrot.slane %v1783, 1
        %v1844 = vsel %vm707, %v1842, %v1843
        %v1845 = vrot.slane %v1784, 1
        %v1846 = vsel %vm707, %v1843, %v1845
        %v1847 = vrot.slane %v1785, 1
        %v1848 = vrot.slane %v1786, 1
        %v1849 = vsel %vm707, %v1847, %v1848
        %v1850 = vrot.slane %v1787, 1
        %v1851 = vsel %vm707, %v1848, %v1850
        %v1868 = vadd.f32 %v1746, %v1814
        %v1869 = vadd.f32 %v1747, %v1816
        %v1870 = vadd.f32 %v1748, %v1819
        %v1871 = vadd.f32 %v1749, %v1821
        %v1872 = vadd.f32 %v1750, %v1824
        %v1873 = vadd.f32 %v1751, %v1826
        %v1874 = vadd.f32 %v1752, %v1829
        %v1875 = vadd.f32 %v1753, %v1831
        %v1876 = vadd.f32 %v1754, %v1834
        %v1877 = vadd.f32 %v1755, %v1836
        %v1878 = vadd.f32 %v1756, %v1839
        %v1879 = vadd.f32 %v1757, %v1841
        %v1880 = vadd.f32 %v1758, %v1844
        %v1881 = vadd.f32 %v1759, %v1846
        %v1882 = vadd.f32 %v1760, %v1849
        %v1883 = vadd.f32 %v1761, %v1851
        %v1884 = vld [vmem:[%s1659 + $0x4] sm:$0x1]
        %v1885 = vperm.slane %v1884, 0
        %v1886 = vmul.f32 %v1632, %v1885
        %v1887 = vmul.f32 %v1633, %v1885
        %v1888 = vmul.f32 %v1634, %v1885
        %v1889 = vmul.f32 %v1635, %v1885
        %v1890 = vmul.f32 %v1636, %v1885
        %v1891 = vmul.f32 %v1637, %v1885
        %v1892 = vmul.f32 %v1638, %v1885
        %v1893 = vmul.f32 %v1639, %v1885
        %v1894 = vmul.f32 %v1640, %v1885
        %v1895 = vmul.f32 %v1641, %v1885
        %v1896 = vmul.f32 %v1642, %v1885
        %v1897 = vmul.f32 %v1643, %v1885
        %v1898 = vmul.f32 %v1644, %v1885
        %v1899 = vmul.f32 %v1645, %v1885
        %v1900 = vmul.f32 %v1646, %v1885
        %v1901 = vmul.f32 %v1647, %v1885
        %v1902 = vmul.f32 %v1648, %v1885
        %v1903 = vmul.f32 %v1649, %v1885
        %v1904 = vmul.f32 %v1650, %v1885
        %v1905 = vmul.f32 %v1651, %v1885
        %v1906 = vmul.f32 %v1652, %v1885
        %v1907 = vmul.f32 %v1653, %v1885
        %v1908 = vmul.f32 %v1654, %v1885
        %v1909 = vmul.f32 %v1655, %v1885
        %v1934 = vrot.slane %v1886, 1
        %v1935 = vrot.slane %v1887, 1
        %v1936 = vsel %vm707, %v1934, %v1935
        %v1937 = vrot.slane %v1888, 1
        %v1938 = vsel %vm707, %v1935, %v1937
        %v1939 = vrot.slane %v1889, 1
        %v1940 = vrot.slane %v1890, 1
        %v1941 = vsel %vm707, %v1939, %v1940
        %v1942 = vrot.slane %v1891, 1
        %v1943 = vsel %vm707, %v1940, %v1942
        %v1944 = vrot.slane %v1892, 1
        %v1945 = vrot.slane %v1893, 1
        %v1946 = vsel %vm707, %v1944, %v1945
        %v1947 = vrot.slane %v1894, 1
        %v1948 = vsel %vm707, %v1945, %v1947
        %v1949 = vrot.slane %v1895, 1
        %v1950 = vrot.slane %v1896, 1
        %v1951 = vsel %vm707, %v1949, %v1950
        %v1952 = vrot.slane %v1897, 1
        %v1953 = vsel %vm707, %v1950, %v1952
        %v1954 = vrot.slane %v1898, 1
        %v1955 = vrot.slane %v1899, 1
        %v1956 = vsel %vm707, %v1954, %v1955
        %v1957 = vrot.slane %v1900, 1
        %v1958 = vsel %vm707, %v1955, %v1957
        %v1959 = vrot.slane %v1901, 1
        %v1960 = vrot.slane %v1902, 1
        %v1961 = vsel %vm707, %v1959, %v1960
        %v1962 = vrot.slane %v1903, 1
        %v1963 = vsel %vm707, %v1960, %v1962
        %v1964 = vrot.slane %v1904, 1
        %v1965 = vrot.slane %v1905, 1
        %v1966 = vsel %vm707, %v1964, %v1965
        %v1967 = vrot.slane %v1906, 1
        %v1968 = vsel %vm707, %v1965, %v1967
        %v1969 = vrot.slane %v1907, 1
        %v1970 = vrot.slane %v1908, 1
        %v1971 = vsel %vm707, %v1969, %v1970
        %v1972 = vrot.slane %v1909, 1
        %v1973 = vsel %vm707, %v1970, %v1972
        %v1990 = vadd.f32 %v1868, %v1936
        %v1991 = vadd.f32 %v1869, %v1938
        %v1992 = vadd.f32 %v1870, %v1941
        %v1993 = vadd.f32 %v1871, %v1943
        %v1994 = vadd.f32 %v1872, %v1946
        %v1995 = vadd.f32 %v1873, %v1948
        %v1996 = vadd.f32 %v1874, %v1951
        %v1997 = vadd.f32 %v1875, %v1953
        %v1998 = vadd.f32 %v1876, %v1956
        %v1999 = vadd.f32 %v1877, %v1958
        %v2000 = vadd.f32 %v1878, %v1961
        %v2001 = vadd.f32 %v1879, %v1963
        %v2002 = vadd.f32 %v1880, %v1966
        %v2003 = vadd.f32 %v1881, %v1968
        %v2004 = vadd.f32 %v1882, %v1971
        %v2005 = vadd.f32 %v1883, %v1973
        %v2006 = vld [vmem:[%s1659 + $0x7] sm:$0x1]
        %v2007 = vperm.slane %v2006, 0
        %v2008 = vmul.f32 %v1635, %v2007
        %v2009 = vmul.f32 %v1636, %v2007
        %v2010 = vmul.f32 %v1637, %v2007
        %v2011 = vmul.f32 %v1638, %v2007
        %v2012 = vmul.f32 %v1639, %v2007
        %v2013 = vmul.f32 %v1640, %v2007
        %v2014 = vmul.f32 %v1641, %v2007
        %v2015 = vmul.f32 %v1642, %v2007
        %v2016 = vmul.f32 %v1643, %v2007
        %v2017 = vmul.f32 %v1644, %v2007
        %v2018 = vmul.f32 %v1645, %v2007
        %v2019 = vmul.f32 %v1646, %v2007
        %v2020 = vmul.f32 %v1647, %v2007
        %v2021 = vmul.f32 %v1648, %v2007
        %v2022 = vmul.f32 %v1649, %v2007
        %v2023 = vmul.f32 %v1650, %v2007
        %v2024 = vmul.f32 %v1651, %v2007
        %v2025 = vmul.f32 %v1652, %v2007
        %v2026 = vmul.f32 %v1653, %v2007
        %v2027 = vmul.f32 %v1654, %v2007
        %v2028 = vmul.f32 %v1655, %v2007
        %v2029 = vmul.f32 %v1656, %v2007
        %v2030 = vmul.f32 %v1657, %v2007
        %v2031 = vmul.f32 %v1658, %v2007
        %v2056 = vrot.slane %v2008, 1
        %v2057 = vrot.slane %v2009, 1
        %v2058 = vsel %vm707, %v2056, %v2057
        %v2059 = vrot.slane %v2010, 1
        %v2060 = vsel %vm707, %v2057, %v2059
        %v2061 = vrot.slane %v2011, 1
        %v2062 = vrot.slane %v2012, 1
        %v2063 = vsel %vm707, %v2061, %v2062
        %v2064 = vrot.slane %v2013, 1
        %v2065 = vsel %vm707, %v2062, %v2064
        %v2066 = vrot.slane %v2014, 1
        %v2067 = vrot.slane %v2015, 1
        %v2068 = vsel %vm707, %v2066, %v2067
        %v2069 = vrot.slane %v2016, 1
        %v2070 = vsel %vm707, %v2067, %v2069
        %v2071 = vrot.slane %v2017, 1
        %v2072 = vrot.slane %v2018, 1
        %v2073 = vsel %vm707, %v2071, %v2072
        %v2074 = vrot.slane %v2019, 1
        %v2075 = vsel %vm707, %v2072, %v2074
        %v2076 = vrot.slane %v2020, 1
        %v2077 = vrot.slane %v2021, 1
        %v2078 = vsel %vm707, %v2076, %v2077
        %v2079 = vrot.slane %v2022, 1
        %v2080 = vsel %vm707, %v2077, %v2079
        %v2081 = vrot.slane %v2023, 1
        %v2082 = vrot.slane %v2024, 1
        %v2083 = vsel %vm707, %v2081, %v2082
        %v2084 = vrot.slane %v2025, 1
        %v2085 = vsel %vm707, %v2082, %v2084
        %v2086 = vrot.slane %v2026, 1
        %v2087 = vrot.slane %v2027, 1
        %v2088 = vsel %vm707, %v2086, %v2087
        %v2089 = vrot.slane %v2028, 1
        %v2090 = vsel %vm707, %v2087, %v2089
        %v2091 = vrot.slane %v2029, 1
        %v2092 = vrot.slane %v2030, 1
        %v2093 = vsel %vm707, %v2091, %v2092
        %v2094 = vrot.slane %v2031, 1
        %v2095 = vsel %vm707, %v2092, %v2094
        %v2112 = vadd.f32 %v1990, %v2058
        %v2113 = vadd.f32 %v1991, %v2060
        %v2114 = vadd.f32 %v1992, %v2063
        %v2115 = vadd.f32 %v1993, %v2065
        %v2116 = vadd.f32 %v1994, %v2068
        %v2117 = vadd.f32 %v1995, %v2070
        %v2118 = vadd.f32 %v1996, %v2073
        %v2119 = vadd.f32 %v1997, %v2075
        %v2120 = vadd.f32 %v1998, %v2078
        %v2121 = vadd.f32 %v1999, %v2080
        %v2122 = vadd.f32 %v2000, %v2083
        %v2123 = vadd.f32 %v2001, %v2085
        %v2124 = vadd.f32 %v2002, %v2088
        %v2125 = vadd.f32 %v2003, %v2090
        %v2126 = vadd.f32 %v2004, %v2093
        %v2127 = vadd.f32 %v2005, %v2095
        %v2128 = vld [vmem:[%s1659 + $0x2] sm:$0x1]
        %v2129 = vperm.slane %v2128, 0
        %v2130 = vmul.f32 %v1629, %v2129
        %v2131 = vmul.f32 %v1630, %v2129
        %v2132 = vmul.f32 %v1631, %v2129
        %v2133 = vmul.f32 %v1632, %v2129
        %v2134 = vmul.f32 %v1633, %v2129
        %v2135 = vmul.f32 %v1634, %v2129
        %v2136 = vmul.f32 %v1635, %v2129
        %v2137 = vmul.f32 %v1636, %v2129
        %v2138 = vmul.f32 %v1637, %v2129
        %v2139 = vmul.f32 %v1638, %v2129
        %v2140 = vmul.f32 %v1639, %v2129
        %v2141 = vmul.f32 %v1640, %v2129
        %v2142 = vmul.f32 %v1641, %v2129
        %v2143 = vmul.f32 %v1642, %v2129
        %v2144 = vmul.f32 %v1643, %v2129
        %v2145 = vmul.f32 %v1644, %v2129
        %v2146 = vmul.f32 %v1645, %v2129
        %v2147 = vmul.f32 %v1646, %v2129
        %v2148 = vmul.f32 %v1647, %v2129
        %v2149 = vmul.f32 %v1648, %v2129
        %v2150 = vmul.f32 %v1649, %v2129
        %v2151 = vmul.f32 %v1650, %v2129
        %v2152 = vmul.f32 %v1651, %v2129
        %v2153 = vmul.f32 %v1652, %v2129
        %v2178 = vrot.slane %v2130, 2
        %v2179 = vrot.slane %v2131, 2
        %v2180 = vsel %vm1074, %v2178, %v2179
        %v2181 = vrot.slane %v2132, 2
        %v2182 = vsel %vm1074, %v2179, %v2181
        %v2183 = vrot.slane %v2133, 2
        %v2184 = vrot.slane %v2134, 2
        %v2185 = vsel %vm1074, %v2183, %v2184
        %v2186 = vrot.slane %v2135, 2
        %v2187 = vsel %vm1074, %v2184, %v2186
        %v2188 = vrot.slane %v2136, 2
        %v2189 = vrot.slane %v2137, 2
        %v2190 = vsel %vm1074, %v2188, %v2189
        %v2191 = vrot.slane %v2138, 2
        %v2192 = vsel %vm1074, %v2189, %v2191
        %v2193 = vrot.slane %v2139, 2
        %v2194 = vrot.slane %v2140, 2
        %v2195 = vsel %vm1074, %v2193, %v2194
        %v2196 = vrot.slane %v2141, 2
        %v2197 = vsel %vm1074, %v2194, %v2196
        %v2198 = vrot.slane %v2142, 2
        %v2199 = vrot.slane %v2143, 2
        %v2200 = vsel %vm1074, %v2198, %v2199
        %v2201 = vrot.slane %v2144, 2
        %v2202 = vsel %vm1074, %v2199, %v2201
        %v2203 = vrot.slane %v2145, 2
        %v2204 = vrot.slane %v2146, 2
        %v2205 = vsel %vm1074, %v2203, %v2204
        %v2206 = vrot.slane %v2147, 2
        %v2207 = vsel %vm1074, %v2204, %v2206
        %v2208 = vrot.slane %v2148, 2
        %v2209 = vrot.slane %v2149, 2
        %v2210 = vsel %vm1074, %v2208, %v2209
        %v2211 = vrot.slane %v2150, 2
        %v2212 = vsel %vm1074, %v2209, %v2211
        %v2213 = vrot.slane %v2151, 2
        %v2214 = vrot.slane %v2152, 2
        %v2215 = vsel %vm1074, %v2213, %v2214
        %v2216 = vrot.slane %v2153, 2
        %v2217 = vsel %vm1074, %v2214, %v2216
        %v2234 = vadd.f32 %v2112, %v2180
        %v2235 = vadd.f32 %v2113, %v2182
        %v2236 = vadd.f32 %v2114, %v2185
        %v2237 = vadd.f32 %v2115, %v2187
        %v2238 = vadd.f32 %v2116, %v2190
        %v2239 = vadd.f32 %v2117, %v2192
        %v2240 = vadd.f32 %v2118, %v2195
        %v2241 = vadd.f32 %v2119, %v2197
        %v2242 = vadd.f32 %v2120, %v2200
        %v2243 = vadd.f32 %v2121, %v2202
        %v2244 = vadd.f32 %v2122, %v2205
        %v2245 = vadd.f32 %v2123, %v2207
        %v2246 = vadd.f32 %v2124, %v2210
        %v2247 = vadd.f32 %v2125, %v2212
        %v2248 = vadd.f32 %v2126, %v2215
        %v2249 = vadd.f32 %v2127, %v2217
        %v2250 = vld [vmem:[%s1659 + $0x5] sm:$0x1]
        %v2251 = vperm.slane %v2250, 0
        %v2252 = vmul.f32 %v1632, %v2251
        %v2253 = vmul.f32 %v1633, %v2251
        %v2254 = vmul.f32 %v1634, %v2251
        %v2255 = vmul.f32 %v1635, %v2251
        %v2256 = vmul.f32 %v1636, %v2251
        %v2257 = vmul.f32 %v1637, %v2251
        %v2258 = vmul.f32 %v1638, %v2251
        %v2259 = vmul.f32 %v1639, %v2251
        %v2260 = vmul.f32 %v1640, %v2251
        %v2261 = vmul.f32 %v1641, %v2251
        %v2262 = vmul.f32 %v1642, %v2251
        %v2263 = vmul.f32 %v1643, %v2251
        %v2264 = vmul.f32 %v1644, %v2251
        %v2265 = vmul.f32 %v1645, %v2251
        %v2266 = vmul.f32 %v1646, %v2251
        %v2267 = vmul.f32 %v1647, %v2251
        %v2268 = vmul.f32 %v1648, %v2251
        %v2269 = vmul.f32 %v1649, %v2251
        %v2270 = vmul.f32 %v1650, %v2251
        %v2271 = vmul.f32 %v1651, %v2251
        %v2272 = vmul.f32 %v1652, %v2251
        %v2273 = vmul.f32 %v1653, %v2251
        %v2274 = vmul.f32 %v1654, %v2251
        %v2275 = vmul.f32 %v1655, %v2251
        %v2300 = vrot.slane %v2252, 2
        %v2301 = vrot.slane %v2253, 2
        %v2302 = vsel %vm1074, %v2300, %v2301
        %v2303 = vrot.slane %v2254, 2
        %v2304 = vsel %vm1074, %v2301, %v2303
        %v2305 = vrot.slane %v2255, 2
        %v2306 = vrot.slane %v2256, 2
        %v2307 = vsel %vm1074, %v2305, %v2306
        %v2308 = vrot.slane %v2257, 2
        %v2309 = vsel %vm1074, %v2306, %v2308
        %v2310 = vrot.slane %v2258, 2
        %v2311 = vrot.slane %v2259, 2
        %v2312 = vsel %vm1074, %v2310, %v2311
        %v2313 = vrot.slane %v2260, 2
        %v2314 = vsel %vm1074, %v2311, %v2313
        %v2315 = vrot.slane %v2261, 2
        %v2316 = vrot.slane %v2262, 2
        %v2317 = vsel %vm1074, %v2315, %v2316
        %v2318 = vrot.slane %v2263, 2
        %v2319 = vsel %vm1074, %v2316, %v2318
        %v2320 = vrot.slane %v2264, 2
        %v2321 = vrot.slane %v2265, 2
        %v2322 = vsel %vm1074, %v2320, %v2321
        %v2323 = vrot.slane %v2266, 2
        %v2324 = vsel %vm1074, %v2321, %v2323
        %v2325 = vrot.slane %v2267, 2
        %v2326 = vrot.slane %v2268, 2
        %v2327 = vsel %vm1074, %v2325, %v2326
        %v2328 = vrot.slane %v2269, 2
        %v2329 = vsel %vm1074, %v2326, %v2328
        %v2330 = vrot.slane %v2270, 2
        %v2331 = vrot.slane %v2271, 2
        %v2332 = vsel %vm1074, %v2330, %v2331
        %v2333 = vrot.slane %v2272, 2
        %v2334 = vsel %vm1074, %v2331, %v2333
        %v2335 = vrot.slane %v2273, 2
        %v2336 = vrot.slane %v2274, 2
        %v2337 = vsel %vm1074, %v2335, %v2336
        %v2338 = vrot.slane %v2275, 2
        %v2339 = vsel %vm1074, %v2336, %v2338
        %v2356 = vadd.f32 %v2234, %v2302
        %v2357 = vadd.f32 %v2235, %v2304
        %v2358 = vadd.f32 %v2236, %v2307
        %v2359 = vadd.f32 %v2237, %v2309
        %v2360 = vadd.f32 %v2238, %v2312
        %v2361 = vadd.f32 %v2239, %v2314
        %v2362 = vadd.f32 %v2240, %v2317
        %v2363 = vadd.f32 %v2241, %v2319
        %v2364 = vadd.f32 %v2242, %v2322
        %v2365 = vadd.f32 %v2243, %v2324
        %v2366 = vadd.f32 %v2244, %v2327
        %v2367 = vadd.f32 %v2245, %v2329
        %v2368 = vadd.f32 %v2246, %v2332
        %v2369 = vadd.f32 %v2247, %v2334
        %v2370 = vadd.f32 %v2248, %v2337
        %v2371 = vadd.f32 %v2249, %v2339
        %v2372 = vld [vmem:[%s1659 + $0x8] sm:$0x1]
        %v2373 = vperm.slane %v2372, 0
        %v2374 = vmul.f32 %v1635, %v2373
        %v2375 = vmul.f32 %v1636, %v2373
        %v2376 = vmul.f32 %v1637, %v2373
        %v2377 = vmul.f32 %v1638, %v2373
        %v2378 = vmul.f32 %v1639, %v2373
        %v2379 = vmul.f32 %v1640, %v2373
        %v2380 = vmul.f32 %v1641, %v2373
        %v2381 = vmul.f32 %v1642, %v2373
        %v2382 = vmul.f32 %v1643, %v2373
        %v2383 = vmul.f32 %v1644, %v2373
        %v2384 = vmul.f32 %v1645, %v2373
        %v2385 = vmul.f32 %v1646, %v2373
        %v2386 = vmul.f32 %v1647, %v2373
        %v2387 = vmul.f32 %v1648, %v2373
        %v2388 = vmul.f32 %v1649, %v2373
        %v2389 = vmul.f32 %v1650, %v2373
        %v2390 = vmul.f32 %v1651, %v2373
        %v2391 = vmul.f32 %v1652, %v2373
        %v2392 = vmul.f32 %v1653, %v2373
        %v2393 = vmul.f32 %v1654, %v2373
        %v2394 = vmul.f32 %v1655, %v2373
        %v2395 = vmul.f32 %v1656, %v2373
        %v2396 = vmul.f32 %v1657, %v2373
        %v2397 = vmul.f32 %v1658, %v2373
        %v2422 = vrot.slane %v2374, 2
        %v2423 = vrot.slane %v2375, 2
        %v2424 = vsel %vm1074, %v2422, %v2423
        %v2425 = vrot.slane %v2376, 2
        %v2426 = vsel %vm1074, %v2423, %v2425
        %v2427 = vrot.slane %v2377, 2
        %v2428 = vrot.slane %v2378, 2
        %v2429 = vsel %vm1074, %v2427, %v2428
        %v2430 = vrot.slane %v2379, 2
        %v2431 = vsel %vm1074, %v2428, %v2430
        %v2432 = vrot.slane %v2380, 2
        %v2433 = vrot.slane %v2381, 2
        %v2434 = vsel %vm1074, %v2432, %v2433
        %v2435 = vrot.slane %v2382, 2
        %v2436 = vsel %vm1074, %v2433, %v2435
        %v2437 = vrot.slane %v2383, 2
        %v2438 = vrot.slane %v2384, 2
        %v2439 = vsel %vm1074, %v2437, %v2438
        %v2440 = vrot.slane %v2385, 2
        %v2441 = vsel %vm1074, %v2438, %v2440
        %v2442 = vrot.slane %v2386, 2
        %v2443 = vrot.slane %v2387, 2
        %v2444 = vsel %vm1074, %v2442, %v2443
        %v2445 = vrot.slane %v2388, 2
        %v2446 = vsel %vm1074, %v2443, %v2445
        %v2447 = vrot.slane %v2389, 2
        %v2448 = vrot.slane %v2390, 2
        %v2449 = vsel %vm1074, %v2447, %v2448
        %v2450 = vrot.slane %v2391, 2
        %v2451 = vsel %vm1074, %v2448, %v2450
        %v2452 = vrot.slane %v2392, 2
        %v2453 = vrot.slane %v2393, 2
        %v2454 = vsel %vm1074, %v2452, %v2453
        %v2455 = vrot.slane %v2394, 2
        %v2456 = vsel %vm1074, %v2453, %v2455
        %v2457 = vrot.slane %v2395, 2
        %v2458 = vrot.slane %v2396, 2
        %v2459 = vsel %vm1074, %v2457, %v2458
        %v2460 = vrot.slane %v2397, 2
        %v2461 = vsel %vm1074, %v2458, %v2460
        %v2478 = vadd.f32 %v2356, %v2424
        %v2479 = vadd.f32 %v2357, %v2426
        %v2480 = vadd.f32 %v2358, %v2429
        %v2481 = vadd.f32 %v2359, %v2431
        %v2482 = vadd.f32 %v2360, %v2434
        %v2483 = vadd.f32 %v2361, %v2436
        %v2484 = vadd.f32 %v2362, %v2439
        %v2485 = vadd.f32 %v2363, %v2441
        %v2486 = vadd.f32 %v2364, %v2444
        %v2487 = vadd.f32 %v2365, %v2446
        %v2488 = vadd.f32 %v2366, %v2449
        %v2489 = vadd.f32 %v2367, %v2451
        %v2490 = vadd.f32 %v2368, %v2454
        %v2491 = vadd.f32 %v2369, %v2456
        %v2492 = vadd.f32 %v2370, %v2459
        %v2493 = vadd.f32 %v2371, %v2461
        %s2494 = scalar_lea.vmem %s4, 1
        %v2495 = vld [vmem:[%s2494] sm:$0x1]
        %v2497 = vperm.slane %v2495, 0
        %v2499 = vadd.f32 %v2478, %v2497
        %v2500 = vadd.f32 %v2479, %v2497
        %v2501 = vadd.f32 %v2480, %v2497
        %v2502 = vadd.f32 %v2481, %v2497
        %v2503 = vadd.f32 %v2482, %v2497
        %v2504 = vadd.f32 %v2483, %v2497
        %v2505 = vadd.f32 %v2484, %v2497
        %v2506 = vadd.f32 %v2485, %v2497
        %v2507 = vadd.f32 %v2486, %v2497
        %v2508 = vadd.f32 %v2487, %v2497
        %v2509 = vadd.f32 %v2488, %v2497
        %v2510 = vadd.f32 %v2489, %v2497
        %v2511 = vadd.f32 %v2490, %v2497
        %v2512 = vadd.f32 %v2491, %v2497
        %v2513 = vadd.f32 %v2492, %v2497
        %v2514 = vadd.f32 %v2493, %v2497
        %v2515 = vmax.f32 %v2499, 0.0
        %v2516 = vmax.f32 %v2500, 0.0
        %v2517 = vmax.f32 %v2501, 0.0
        %v2518 = vmax.f32 %v2502, 0.0
        %v2519 = vmax.f32 %v2503, 0.0
        %v2520 = vmax.f32 %v2504, 0.0
        %v2521 = vmax.f32 %v2505, 0.0
        %v2522 = vmax.f32 %v2506, 0.0
        %v2523 = vmax.f32 %v2507, 0.0
        %v2524 = vmax.f32 %v2508, 0.0
        %v2525 = vmax.f32 %v2509, 0.0
        %v2526 = vmax.f32 %v2510, 0.0
        %v2527 = vmax.f32 %v2511, 0.0
        %v2528 = vmax.f32 %v2512, 0.0
        %v2529 = vmax.f32 %v2513, 0.0
        %v2530 = vmax.f32 %v2514, 0.0
        %vm2547 = vcmask 1041408
        %v2548 = vrot.slane %v2515, 6
        %v2549 = vrot.slane %v2516, 6
        %v2550 = vsel %vm2547, %v2548, %v2549
        %v2551 = vrot.slane %v2517, 6
        %v2552 = vrot.slane %v2518, 6
        %v2553 = vsel %vm2547, %v2551, %v2552
        %v2554 = vrot.slane %v2519, 6
        %v2555 = vrot.slane %v2520, 6
        %v2556 = vsel %vm2547, %v2554, %v2555
        %v2557 = vrot.slane %v2521, 6
        %v2558 = vrot.slane %v2522, 6
        %v2559 = vsel %vm2547, %v2557, %v2558
        %v2560 = vrot.slane %v2523, 6
        %v2561 = vrot.slane %v2524, 6
        %v2562 = vsel %vm2547, %v2560, %v2561
        %v2563 = vrot.slane %v2525, 6
        %v2564 = vrot.slane %v2526, 6
        %v2565 = vsel %vm2547, %v2563, %v2564
        %v2566 = vrot.slane %v2527, 6
        %v2567 = vrot.slane %v2528, 6
        %v2568 = vsel %vm2547, %v2566, %v2567
        %v2569 = vrot.slane %v2529, 6
        %v2570 = vrot.slane %v2530, 6
        %v2571 = vsel %vm2547, %v2569, %v2570
        %v2588 = vadd.f32 %v1484, %v2548
        %v2589 = vadd.f32 %v1485, %v2550
        %v2590 = vadd.f32 %v1486, %v2551
        %v2591 = vadd.f32 %v1487, %v2553
        %v2592 = vadd.f32 %v1488, %v2554
        %v2593 = vadd.f32 %v1489, %v2556
        %v2594 = vadd.f32 %v1490, %v2557
        %v2595 = vadd.f32 %v1491, %v2559
        %v2596 = vadd.f32 %v1492, %v2560
        %v2597 = vadd.f32 %v1493, %v2562
        %v2598 = vadd.f32 %v1494, %v2563
        %v2599 = vadd.f32 %v1495, %v2565
        %v2600 = vadd.f32 %v1496, %v2566
        %v2601 = vadd.f32 %v1497, %v2568
        %v2602 = vadd.f32 %v1498, %v2569
        %v2603 = vadd.f32 %v1499, %v2571
        %s2604 = scalar_lea.vmem [#allocation3], 256
        %v2605 = vld [vmem:[%s2604] sm:$0xff]
        %v2606 = vld [vmem:[%s2604 + $0x8] sm:$0xff]
        %v2607 = vld [vmem:[%s2604 + $0x10] sm:$0xff]
        %v2608 = vld [vmem:[%s2604 + $0x18] sm:$0xff]
        %v2609 = vld [vmem:[%s2604 + $0x20] sm:$0xff]
        %v2610 = vld [vmem:[%s2604 + $0x28] sm:$0xff]
        %v2611 = vld [vmem:[%s2604 + $0x30] sm:$0xff]
        %v2612 = vld [vmem:[%s2604 + $0x38] sm:$0xff]
        %v2613 = vld [vmem:[%s2604 + $0x40] sm:$0xff]
        %v2614 = vld [vmem:[%s2604 + $0x48] sm:$0xff]
        %v2615 = vld [vmem:[%s2604 + $0x50] sm:$0xff]
        %v2616 = vld [vmem:[%s2604 + $0x58] sm:$0xff]
        %v2617 = vld [vmem:[%s2604 + $0x60] sm:$0xff]
        %v2618 = vld [vmem:[%s2604 + $0x68] sm:$0xff]
        %v2619 = vld [vmem:[%s2604 + $0x70] sm:$0xff]
        %v2620 = vld [vmem:[%s2604 + $0x78] sm:$0xff]
        %s2621 = scalar_lea.vmem %s2, 2
        %v2622 = vld [vmem:[%s2621] sm:$0x1]
        %v2624 = vperm.slane %v2622, 0
        %2626 = vmatpush.msra.mxu0 %v2620
        %2627 = vmatpush.msra.mxu0 %v2619
        %2628 = vmatpush.msra.mxu0 %v2618
        %2629 = vmatpush.msra.mxu0 %v2617
        %2630 = vmatpush.msra.mxu0 %v2616
        %2631 = vmatpush.msra.mxu0 %v2615
        %2632 = vmatpush.msra.mxu0 %v2614
        %2633 = vmatpush.msra.mxu0 %v2613
        %2634 = vmatpush.msra.mxu0 %v2612
        %2635 = vmatpush.msra.mxu0 %v2611
        %2636 = vmatpush.msra.mxu0 %v2610
        %2637 = vmatpush.msra.mxu0 %v2609
        %2638 = vmatpush.msra.mxu0 %v2608
        %2639 = vmatpush.msra.mxu0 %v2607
        %2640 = vmatpush.msra.mxu0 %v2606
        %2641 = vmatpush.msra.mxu0 %v2605
        %2642 = vmatmul.f32.gmra.mxu0 %v2515
        %v2643 = vpop.f32.mrf.mxu0
        %v2644 = vadd.f32 %v2624, %v2643
        %2645 = vmatmul.f32.gmra.mxu0 %v2516
        %v2646 = vpop.f32.mrf.mxu0
        %v2647 = vadd.f32 %v2624, %v2646
        %2648 = vmatmul.f32.gmra.mxu0 %v2517
        %v2649 = vpop.f32.mrf.mxu0
        %v2650 = vadd.f32 %v2624, %v2649
        %2651 = vmatmul.f32.gmra.mxu0 %v2518
        %v2652 = vpop.f32.mrf.mxu0
        %v2653 = vadd.f32 %v2624, %v2652
        %2654 = vmatmul.f32.gmra.mxu0 %v2519
        %v2655 = vpop.f32.mrf.mxu0
        %v2656 = vadd.f32 %v2624, %v2655
        %2657 = vmatmul.f32.gmra.mxu0 %v2520
        %v2658 = vpop.f32.mrf.mxu0
        %v2659 = vadd.f32 %v2624, %v2658
        %2660 = vmatmul.f32.gmra.mxu0 %v2521
        %v2661 = vpop.f32.mrf.mxu0
        %v2662 = vadd.f32 %v2624, %v2661
        %2663 = vmatmul.f32.gmra.mxu0 %v2522
        %v2664 = vpop.f32.mrf.mxu0
        %v2665 = vadd.f32 %v2624, %v2664
        %2666 = vmatmul.f32.gmra.mxu0 %v2523
        %v2667 = vpop.f32.mrf.mxu0
        %v2668 = vadd.f32 %v2624, %v2667
        %2669 = vmatmul.f32.gmra.mxu0 %v2524
        %v2670 = vpop.f32.mrf.mxu0
        %v2671 = vadd.f32 %v2624, %v2670
        %2672 = vmatmul.f32.gmra.mxu0 %v2525
        %v2673 = vpop.f32.mrf.mxu0
        %v2674 = vadd.f32 %v2624, %v2673
        %2675 = vmatmul.f32.gmra.mxu0 %v2526
        %v2676 = vpop.f32.mrf.mxu0
        %v2677 = vadd.f32 %v2624, %v2676
        %2678 = vmatmul.f32.gmra.mxu0 %v2527
        %v2679 = vpop.f32.mrf.mxu0
        %v2680 = vadd.f32 %v2624, %v2679
        %2681 = vmatmul.f32.gmra.mxu0 %v2528
        %v2682 = vpop.f32.mrf.mxu0
        %v2683 = vadd.f32 %v2624, %v2682
        %2684 = vmatmul.f32.gmra.mxu0 %v2529
        %v2685 = vpop.f32.mrf.mxu0
        %v2686 = vadd.f32 %v2624, %v2685
        %2687 = vmatmul.f32.gmra.mxu0 %v2530
        %v2688 = vpop.f32.mrf.mxu0
        %v2689 = vadd.f32 %v2624, %v2688
        %2690 = vdwg.mxu0
        %vm2691 = vcmp.ge.s32.totalorder %v379, 2
        %vm2692 = vcmp.ge.s32.totalorder %v380, 2
        %vm2693 = vcmp.lt.s32.totalorder %v379, 10
        %vm2694 = vcmp.lt.s32.totalorder %v380, 10
        %vm2695 = vmand %vm2691, %vm2693
        %vm2696 = vmand %vm2692, %vm2694
        %v2697 = vsel %vm2695, 1, 0
        %v2698 = vsel %vm2696, 1, 0
        %vm2699 = vcmp.eq.s32.totalorder %v2697, 1
        %vm2700 = vcmp.eq.s32.totalorder %v2698, 1
        %v2701 = vsel %vm2699, %v2644, 0.0
        %v2702 = vsel %vm2700, %v2647, 0.0
        %v2703 = vsel %vm2699, %v2650, 0.0
        %v2704 = vsel %vm2700, %v2653, 0.0
        %v2705 = vsel %vm2699, %v2656, 0.0
        %v2706 = vsel %vm2700, %v2659, 0.0
        %v2707 = vsel %vm2699, %v2662, 0.0
        %v2708 = vsel %vm2700, %v2665, 0.0
        %v2709 = vsel %vm2699, %v2668, 0.0
        %v2710 = vsel %vm2700, %v2671, 0.0
        %v2711 = vsel %vm2699, %v2674, 0.0
        %v2712 = vsel %vm2700, %v2677, 0.0
        %v2713 = vsel %vm2699, %v2680, 0.0
        %v2714 = vsel %vm2700, %v2683, 0.0
        %v2715 = vsel %vm2699, %v2686, 0.0
        %v2716 = vsel %vm2700, %v2689, 0.0
        %2717 = vst [vmem:[%s508] sm:$0xff] %v2701
        %2718 = vst [vmem:[%s508 + $0x8] sm:$0xff] %v2702
        %2719 = vst [vmem:[%s508 + $0x18] sm:$0xff] %v2703
        %2720 = vst [vmem:[%s508 + $0x20] sm:$0xff] %v2704
        %2721 = vst [vmem:[%s508 + $0x30] sm:$0xff] %v2705
        %2722 = vst [vmem:[%s508 + $0x38] sm:$0xff] %v2706
        %2723 = vst [vmem:[%s508 + $0x48] sm:$0xff] %v2707
        %2724 = vst [vmem:[%s508 + $0x50] sm:$0xff] %v2708
        %2725 = vst [vmem:[%s508 + $0x60] sm:$0xff] %v2709
        %2726 = vst [vmem:[%s508 + $0x68] sm:$0xff] %v2710
        %2727 = vst [vmem:[%s508 + $0x78] sm:$0xff] %v2711
        %2728 = vst [vmem:[%s508 + $0x80] sm:$0xff] %v2712
        %2729 = vst [vmem:[%s508 + $0x90] sm:$0xff] %v2713
        %2730 = vst [vmem:[%s508 + $0x98] sm:$0xff] %v2714
        %2731 = vst [vmem:[%s508 + $0xa8] sm:$0xff] %v2715
        %2732 = vst [vmem:[%s508 + $0xb0] sm:$0xff] %v2716
        %v2733 = vld [vmem:[#allocation2] sm:$0xff]
        %v2734 = vld [vmem:[#allocation2 + $0x8] sm:$0xff]
        %v2735 = vld [vmem:[#allocation2 + $0x10] sm:$0xff]
        %v2736 = vld [vmem:[#allocation2 + $0x18] sm:$0xff]
        %v2737 = vld [vmem:[#allocation2 + $0x20] sm:$0xff]
        %v2738 = vld [vmem:[#allocation2 + $0x28] sm:$0xff]
        %v2739 = vld [vmem:[#allocation2 + $0x30] sm:$0xff]
        %v2740 = vld [vmem:[#allocation2 + $0x38] sm:$0xff]
        %v2741 = vld [vmem:[#allocation2 + $0x40] sm:$0xff]
        %v2742 = vld [vmem:[#allocation2 + $0x48] sm:$0xff]
        %v2743 = vld [vmem:[#allocation2 + $0x50] sm:$0xff]
        %v2744 = vld [vmem:[#allocation2 + $0x58] sm:$0xff]
        %v2745 = vld [vmem:[#allocation2 + $0x60] sm:$0xff]
        %v2746 = vld [vmem:[#allocation2 + $0x68] sm:$0xff]
        %v2747 = vld [vmem:[#allocation2 + $0x70] sm:$0xff]
        %v2748 = vld [vmem:[#allocation2 + $0x78] sm:$0xff]
        %v2749 = vld [vmem:[#allocation2 + $0x80] sm:$0xff]
        %v2750 = vld [vmem:[#allocation2 + $0x88] sm:$0xff]
        %v2751 = vld [vmem:[#allocation2 + $0x90] sm:$0xff]
        %v2752 = vld [vmem:[#allocation2 + $0x98] sm:$0xff]
        %v2753 = vld [vmem:[#allocation2 + $0xa0] sm:$0xff]
        %v2754 = vld [vmem:[#allocation2 + $0xa8] sm:$0xff]
        %v2755 = vld [vmem:[#allocation2 + $0xb0] sm:$0xff]
        %v2756 = vld [vmem:[#allocation2 + $0xb8] sm:$0xff]
        %v2757 = vld [vmem:[#allocation2 + $0xc0] sm:$0xff]
        %v2758 = vld [vmem:[#allocation2 + $0xc8] sm:$0xff]
        %v2759 = vld [vmem:[#allocation2 + $0xd0] sm:$0xff]
        %v2760 = vld [vmem:[#allocation2 + $0xd8] sm:$0xff]
        %v2761 = vld [vmem:[#allocation2 + $0xe0] sm:$0xff]
        %v2762 = vld [vmem:[#allocation2 + $0xe8] sm:$0xff]
        %s2763 = scalar_lea.vmem %s3, 32
        %v2764 = vld [vmem:[%s2763] sm:$0x1]
        %v2765 = vperm.slane %v2764, 0
        %v2766 = vmul.f32 %v2733, %v2765
        %v2767 = vmul.f32 %v2734, %v2765
        %v2768 = vmul.f32 %v2736, %v2765
        %v2769 = vmul.f32 %v2737, %v2765
        %v2770 = vmul.f32 %v2739, %v2765
        %v2771 = vmul.f32 %v2740, %v2765
        %v2772 = vmul.f32 %v2742, %v2765
        %v2773 = vmul.f32 %v2743, %v2765
        %v2774 = vmul.f32 %v2745, %v2765
        %v2775 = vmul.f32 %v2746, %v2765
        %v2776 = vmul.f32 %v2748, %v2765
        %v2777 = vmul.f32 %v2749, %v2765
        %v2778 = vmul.f32 %v2751, %v2765
        %v2779 = vmul.f32 %v2752, %v2765
        %v2780 = vmul.f32 %v2754, %v2765
        %v2781 = vmul.f32 %v2755, %v2765
        %v2782 = vadd.f32 %v2766, 0.0
        %v2783 = vadd.f32 %v2767, 0.0
        %v2784 = vadd.f32 %v2768, 0.0
        %v2785 = vadd.f32 %v2769, 0.0
        %v2786 = vadd.f32 %v2770, 0.0
        %v2787 = vadd.f32 %v2771, 0.0
        %v2788 = vadd.f32 %v2772, 0.0
        %v2789 = vadd.f32 %v2773, 0.0
        %v2790 = vadd.f32 %v2774, 0.0
        %v2791 = vadd.f32 %v2775, 0.0
        %v2792 = vadd.f32 %v2776, 0.0
        %v2793 = vadd.f32 %v2777, 0.0
        %v2794 = vadd.f32 %v2778, 0.0
        %v2795 = vadd.f32 %v2779, 0.0
        %v2796 = vadd.f32 %v2780, 0.0
        %v2797 = vadd.f32 %v2781, 0.0
        %v2798 = vld [vmem:[%s2763 + $0x3] sm:$0x1]
        %v2799 = vperm.slane %v2798, 0
        %v2800 = vmul.f32 %v2736, %v2799
        %v2801 = vmul.f32 %v2737, %v2799
        %v2802 = vmul.f32 %v2739, %v2799
        %v2803 = vmul.f32 %v2740, %v2799
        %v2804 = vmul.f32 %v2742, %v2799
        %v2805 = vmul.f32 %v2743, %v2799
        %v2806 = vmul.f32 %v2745, %v2799
        %v2807 = vmul.f32 %v2746, %v2799
        %v2808 = vmul.f32 %v2748, %v2799
        %v2809 = vmul.f32 %v2749, %v2799
        %v2810 = vmul.f32 %v2751, %v2799
        %v2811 = vmul.f32 %v2752, %v2799
        %v2812 = vmul.f32 %v2754, %v2799
        %v2813 = vmul.f32 %v2755, %v2799
        %v2814 = vmul.f32 %v2757, %v2799
        %v2815 = vmul.f32 %v2758, %v2799
        %v2816 = vadd.f32 %v2782, %v2800
        %v2817 = vadd.f32 %v2783, %v2801
        %v2818 = vadd.f32 %v2784, %v2802
        %v2819 = vadd.f32 %v2785, %v2803
        %v2820 = vadd.f32 %v2786, %v2804
        %v2821 = vadd.f32 %v2787, %v2805
        %v2822 = vadd.f32 %v2788, %v2806
        %v2823 = vadd.f32 %v2789, %v2807
        %v2824 = vadd.f32 %v2790, %v2808
        %v2825 = vadd.f32 %v2791, %v2809
        %v2826 = vadd.f32 %v2792, %v2810
        %v2827 = vadd.f32 %v2793, %v2811
        %v2828 = vadd.f32 %v2794, %v2812
        %v2829 = vadd.f32 %v2795, %v2813
        %v2830 = vadd.f32 %v2796, %v2814
        %v2831 = vadd.f32 %v2797, %v2815
        %v2832 = vld [vmem:[%s2763 + $0x6] sm:$0x1]
        %v2833 = vperm.slane %v2832, 0
        %v2834 = vmul.f32 %v2739, %v2833
        %v2835 = vmul.f32 %v2740, %v2833
        %v2836 = vmul.f32 %v2742, %v2833
        %v2837 = vmul.f32 %v2743, %v2833
        %v2838 = vmul.f32 %v2745, %v2833
        %v2839 = vmul.f32 %v2746, %v2833
        %v2840 = vmul.f32 %v2748, %v2833
        %v2841 = vmul.f32 %v2749, %v2833
        %v2842 = vmul.f32 %v2751, %v2833
        %v2843 = vmul.f32 %v2752, %v2833
        %v2844 = vmul.f32 %v2754, %v2833
        %v2845 = vmul.f32 %v2755, %v2833
        %v2846 = vmul.f32 %v2757, %v2833
        %v2847 = vmul.f32 %v2758, %v2833
        %v2848 = vmul.f32 %v2760, %v2833
        %v2849 = vmul.f32 %v2761, %v2833
        %v2850 = vadd.f32 %v2816, %v2834
        %v2851 = vadd.f32 %v2817, %v2835
        %v2852 = vadd.f32 %v2818, %v2836
        %v2853 = vadd.f32 %v2819, %v2837
        %v2854 = vadd.f32 %v2820, %v2838
        %v2855 = vadd.f32 %v2821, %v2839
        %v2856 = vadd.f32 %v2822, %v2840
        %v2857 = vadd.f32 %v2823, %v2841
        %v2858 = vadd.f32 %v2824, %v2842
        %v2859 = vadd.f32 %v2825, %v2843
        %v2860 = vadd.f32 %v2826, %v2844
        %v2861 = vadd.f32 %v2827, %v2845
        %v2862 = vadd.f32 %v2828, %v2846
        %v2863 = vadd.f32 %v2829, %v2847
        %v2864 = vadd.f32 %v2830, %v2848
        %v2865 = vadd.f32 %v2831, %v2849
        %v2866 = vld [vmem:[%s2763 + $0x1] sm:$0x1]
        %v2867 = vperm.slane %v2866, 0
        %v2868 = vmul.f32 %v2733, %v2867
        %v2869 = vmul.f32 %v2734, %v2867
        %v2870 = vmul.f32 %v2735, %v2867
        %v2871 = vmul.f32 %v2736, %v2867
        %v2872 = vmul.f32 %v2737, %v2867
        %v2873 = vmul.f32 %v2738, %v2867
        %v2874 = vmul.f32 %v2739, %v2867
        %v2875 = vmul.f32 %v2740, %v2867
        %v2876 = vmul.f32 %v2741, %v2867
        %v2877 = vmul.f32 %v2742, %v2867
        %v2878 = vmul.f32 %v2743, %v2867
        %v2879 = vmul.f32 %v2744, %v2867
        %v2880 = vmul.f32 %v2745, %v2867
        %v2881 = vmul.f32 %v2746, %v2867
        %v2882 = vmul.f32 %v2747, %v2867
        %v2883 = vmul.f32 %v2748, %v2867
        %v2884 = vmul.f32 %v2749, %v2867
        %v2885 = vmul.f32 %v2750, %v2867
        %v2886 = vmul.f32 %v2751, %v2867
        %v2887 = vmul.f32 %v2752, %v2867
        %v2888 = vmul.f32 %v2753, %v2867
        %v2889 = vmul.f32 %v2754, %v2867
        %v2890 = vmul.f32 %v2755, %v2867
        %v2891 = vmul.f32 %v2756, %v2867
        %v2916 = vrot.slane %v2868, 1
        %v2917 = vrot.slane %v2869, 1
        %v2918 = vsel %vm707, %v2916, %v2917
        %v2919 = vrot.slane %v2870, 1
        %v2920 = vsel %vm707, %v2917, %v2919
        %v2921 = vrot.slane %v2871, 1
        %v2922 = vrot.slane %v2872, 1
        %v2923 = vsel %vm707, %v2921, %v2922
        %v2924 = vrot.slane %v2873, 1
        %v2925 = vsel %vm707, %v2922, %v2924
        %v2926 = vrot.slane %v2874, 1
        %v2927 = vrot.slane %v2875, 1
        %v2928 = vsel %vm707, %v2926, %v2927
        %v2929 = vrot.slane %v2876, 1
        %v2930 = vsel %vm707, %v2927, %v2929
        %v2931 = vrot.slane %v2877, 1
        %v2932 = vrot.slane %v2878, 1
        %v2933 = vsel %vm707, %v2931, %v2932
        %v2934 = vrot.slane %v2879, 1
        %v2935 = vsel %vm707, %v2932, %v2934
        %v2936 = vrot.slane %v2880, 1
        %v2937 = vrot.slane %v2881, 1
        %v2938 = vsel %vm707, %v2936, %v2937
        %v2939 = vrot.slane %v2882, 1
        %v2940 = vsel %vm707, %v2937, %v2939
        %v2941 = vrot.slane %v2883, 1
        %v2942 = vrot.slane %v2884, 1
        %v2943 = vsel %vm707, %v2941, %v2942
        %v2944 = vrot.slane %v2885, 1
        %v2945 = vsel %vm707, %v2942, %v2944
        %v2946 = vrot.slane %v2886, 1
        %v2947 = vrot.slane %v2887, 1
        %v2948 = vsel %vm707, %v2946, %v2947
        %v2949 = vrot.slane %v2888, 1
        %v2950 = vsel %vm707, %v2947, %v2949
        %v2951 = vrot.slane %v2889, 1
        %v2952 = vrot.slane %v2890, 1
        %v2953 = vsel %vm707, %v2951, %v2952
        %v2954 = vrot.slane %v2891, 1
        %v2955 = vsel %vm707, %v2952, %v2954
        %v2972 = vadd.f32 %v2850, %v2918
        %v2973 = vadd.f32 %v2851, %v2920
        %v2974 = vadd.f32 %v2852, %v2923
        %v2975 = vadd.f32 %v2853, %v2925
        %v2976 = vadd.f32 %v2854, %v2928
        %v2977 = vadd.f32 %v2855, %v2930
        %v2978 = vadd.f32 %v2856, %v2933
        %v2979 = vadd.f32 %v2857, %v2935
        %v2980 = vadd.f32 %v2858, %v2938
        %v2981 = vadd.f32 %v2859, %v2940
        %v2982 = vadd.f32 %v2860, %v2943
        %v2983 = vadd.f32 %v2861, %v2945
        %v2984 = vadd.f32 %v2862, %v2948
        %v2985 = vadd.f32 %v2863, %v2950
        %v2986 = vadd.f32 %v2864, %v2953
        %v2987 = vadd.f32 %v2865, %v2955
        %v2988 = vld [vmem:[%s2763 + $0x4] sm:$0x1]
        %v2989 = vperm.slane %v2988, 0
        %v2990 = vmul.f32 %v2736, %v2989
        %v2991 = vmul.f32 %v2737, %v2989
        %v2992 = vmul.f32 %v2738, %v2989
        %v2993 = vmul.f32 %v2739, %v2989
        %v2994 = vmul.f32 %v2740, %v2989
        %v2995 = vmul.f32 %v2741, %v2989
        %v2996 = vmul.f32 %v2742, %v2989
        %v2997 = vmul.f32 %v2743, %v2989
        %v2998 = vmul.f32 %v2744, %v2989
        %v2999 = vmul.f32 %v2745, %v2989
        %v3000 = vmul.f32 %v2746, %v2989
        %v3001 = vmul.f32 %v2747, %v2989
        %v3002 = vmul.f32 %v2748, %v2989
        %v3003 = vmul.f32 %v2749, %v2989
        %v3004 = vmul.f32 %v2750, %v2989
        %v3005 = vmul.f32 %v2751, %v2989
        %v3006 = vmul.f32 %v2752, %v2989
        %v3007 = vmul.f32 %v2753, %v2989
        %v3008 = vmul.f32 %v2754, %v2989
        %v3009 = vmul.f32 %v2755, %v2989
        %v3010 = vmul.f32 %v2756, %v2989
        %v3011 = vmul.f32 %v2757, %v2989
        %v3012 = vmul.f32 %v2758, %v2989
        %v3013 = vmul.f32 %v2759, %v2989
        %v3038 = vrot.slane %v2990, 1
        %v3039 = vrot.slane %v2991, 1
        %v3040 = vsel %vm707, %v3038, %v3039
        %v3041 = vrot.slane %v2992, 1
        %v3042 = vsel %vm707, %v3039, %v3041
        %v3043 = vrot.slane %v2993, 1
        %v3044 = vrot.slane %v2994, 1
        %v3045 = vsel %vm707, %v3043, %v3044
        %v3046 = vrot.slane %v2995, 1
        %v3047 = vsel %vm707, %v3044, %v3046
        %v3048 = vrot.slane %v2996, 1
        %v3049 = vrot.slane %v2997, 1
        %v3050 = vsel %vm707, %v3048, %v3049
        %v3051 = vrot.slane %v2998, 1
        %v3052 = vsel %vm707, %v3049, %v3051
        %v3053 = vrot.slane %v2999, 1
        %v3054 = vrot.slane %v3000, 1
        %v3055 = vsel %vm707, %v3053, %v3054
        %v3056 = vrot.slane %v3001, 1
        %v3057 = vsel %vm707, %v3054, %v3056
        %v3058 = vrot.slane %v3002, 1
        %v3059 = vrot.slane %v3003, 1
        %v3060 = vsel %vm707, %v3058, %v3059
        %v3061 = vrot.slane %v3004, 1
        %v3062 = vsel %vm707, %v3059, %v3061
        %v3063 = vrot.slane %v3005, 1
        %v3064 = vrot.slane %v3006, 1
        %v3065 = vsel %vm707, %v3063, %v3064
        %v3066 = vrot.slane %v3007, 1
        %v3067 = vsel %vm707, %v3064, %v3066
        %v3068 = vrot.slane %v3008, 1
        %v3069 = vrot.slane %v3009, 1
        %v3070 = vsel %vm707, %v3068, %v3069
        %v3071 = vrot.slane %v3010, 1
        %v3072 = vsel %vm707, %v3069, %v3071
        %v3073 = vrot.slane %v3011, 1
        %v3074 = vrot.slane %v3012, 1
        %v3075 = vsel %vm707, %v3073, %v3074
        %v3076 = vrot.slane %v3013, 1
        %v3077 = vsel %vm707, %v3074, %v3076
        %v3094 = vadd.f32 %v2972, %v3040
        %v3095 = vadd.f32 %v2973, %v3042
        %v3096 = vadd.f32 %v2974, %v3045
        %v3097 = vadd.f32 %v2975, %v3047
        %v3098 = vadd.f32 %v2976, %v3050
        %v3099 = vadd.f32 %v2977, %v3052
        %v3100 = vadd.f32 %v2978, %v3055
        %v3101 = vadd.f32 %v2979, %v3057
        %v3102 = vadd.f32 %v2980, %v3060
        %v3103 = vadd.f32 %v2981, %v3062
        %v3104 = vadd.f32 %v2982, %v3065
        %v3105 = vadd.f32 %v2983, %v3067
        %v3106 = vadd.f32 %v2984, %v3070
        %v3107 = vadd.f32 %v2985, %v3072
        %v3108 = vadd.f32 %v2986, %v3075
        %v3109 = vadd.f32 %v2987, %v3077
        %v3110 = vld [vmem:[%s2763 + $0x7] sm:$0x1]
        %v3111 = vperm.slane %v3110, 0
        %v3112 = vmul.f32 %v2739, %v3111
        %v3113 = vmul.f32 %v2740, %v3111
        %v3114 = vmul.f32 %v2741, %v3111
        %v3115 = vmul.f32 %v2742, %v3111
        %v3116 = vmul.f32 %v2743, %v3111
        %v3117 = vmul.f32 %v2744, %v3111
        %v3118 = vmul.f32 %v2745, %v3111
        %v3119 = vmul.f32 %v2746, %v3111
        %v3120 = vmul.f32 %v2747, %v3111
        %v3121 = vmul.f32 %v2748, %v3111
        %v3122 = vmul.f32 %v2749, %v3111
        %v3123 = vmul.f32 %v2750, %v3111
        %v3124 = vmul.f32 %v2751, %v3111
        %v3125 = vmul.f32 %v2752, %v3111
        %v3126 = vmul.f32 %v2753, %v3111
        %v3127 = vmul.f32 %v2754, %v3111
        %v3128 = vmul.f32 %v2755, %v3111
        %v3129 = vmul.f32 %v2756, %v3111
        %v3130 = vmul.f32 %v2757, %v3111
        %v3131 = vmul.f32 %v2758, %v3111
        %v3132 = vmul.f32 %v2759, %v3111
        %v3133 = vmul.f32 %v2760, %v3111
        %v3134 = vmul.f32 %v2761, %v3111
        %v3135 = vmul.f32 %v2762, %v3111
        %v3160 = vrot.slane %v3112, 1
        %v3161 = vrot.slane %v3113, 1
        %v3162 = vsel %vm707, %v3160, %v3161
        %v3163 = vrot.slane %v3114, 1
        %v3164 = vsel %vm707, %v3161, %v3163
        %v3165 = vrot.slane %v3115, 1
        %v3166 = vrot.slane %v3116, 1
        %v3167 = vsel %vm707, %v3165, %v3166
        %v3168 = vrot.slane %v3117, 1
        %v3169 = vsel %vm707, %v3166, %v3168
        %v3170 = vrot.slane %v3118, 1
        %v3171 = vrot.slane %v3119, 1
        %v3172 = vsel %vm707, %v3170, %v3171
        %v3173 = vrot.slane %v3120, 1
        %v3174 = vsel %vm707, %v3171, %v3173
        %v3175 = vrot.slane %v3121, 1
        %v3176 = vrot.slane %v3122, 1
        %v3177 = vsel %vm707, %v3175, %v3176
        %v3178 = vrot.slane %v3123, 1
        %v3179 = vsel %vm707, %v3176, %v3178
        %v3180 = vrot.slane %v3124, 1
        %v3181 = vrot.slane %v3125, 1
        %v3182 = vsel %vm707, %v3180, %v3181
        %v3183 = vrot.slane %v3126, 1
        %v3184 = vsel %vm707, %v3181, %v3183
        %v3185 = vrot.slane %v3127, 1
        %v3186 = vrot.slane %v3128, 1
        %v3187 = vsel %vm707, %v3185, %v3186
        %v3188 = vrot.slane %v3129, 1
        %v3189 = vsel %vm707, %v3186, %v3188
        %v3190 = vrot.slane %v3130, 1
        %v3191 = vrot.slane %v3131, 1
        %v3192 = vsel %vm707, %v3190, %v3191
        %v3193 = vrot.slane %v3132, 1
        %v3194 = vsel %vm707, %v3191, %v3193
        %v3195 = vrot.slane %v3133, 1
        %v3196 = vrot.slane %v3134, 1
        %v3197 = vsel %vm707, %v3195, %v3196
        %v3198 = vrot.slane %v3135, 1
        %v3199 = vsel %vm707, %v3196, %v3198
        %v3216 = vadd.f32 %v3094, %v3162
        %v3217 = vadd.f32 %v3095, %v3164
        %v3218 = vadd.f32 %v3096, %v3167
        %v3219 = vadd.f32 %v3097, %v3169
        %v3220 = vadd.f32 %v3098, %v3172
        %v3221 = vadd.f32 %v3099, %v3174
        %v3222 = vadd.f32 %v3100, %v3177
        %v3223 = vadd.f32 %v3101, %v3179
        %v3224 = vadd.f32 %v3102, %v3182
        %v3225 = vadd.f32 %v3103, %v3184
        %v3226 = vadd.f32 %v3104, %v3187
        %v3227 = vadd.f32 %v3105, %v3189
        %v3228 = vadd.f32 %v3106, %v3192
        %v3229 = vadd.f32 %v3107, %v3194
        %v3230 = vadd.f32 %v3108, %v3197
        %v3231 = vadd.f32 %v3109, %v3199
        %v3232 = vld [vmem:[%s2763 + $0x2] sm:$0x1]
        %v3233 = vperm.slane %v3232, 0
        %v3234 = vmul.f32 %v2733, %v3233
        %v3235 = vmul.f32 %v2734, %v3233
        %v3236 = vmul.f32 %v2735, %v3233
        %v3237 = vmul.f32 %v2736, %v3233
        %v3238 = vmul.f32 %v2737, %v3233
        %v3239 = vmul.f32 %v2738, %v3233
        %v3240 = vmul.f32 %v2739, %v3233
        %v3241 = vmul.f32 %v2740, %v3233
        %v3242 = vmul.f32 %v2741, %v3233
        %v3243 = vmul.f32 %v2742, %v3233
        %v3244 = vmul.f32 %v2743, %v3233
        %v3245 = vmul.f32 %v2744, %v3233
        %v3246 = vmul.f32 %v2745, %v3233
        %v3247 = vmul.f32 %v2746, %v3233
        %v3248 = vmul.f32 %v2747, %v3233
        %v3249 = vmul.f32 %v2748, %v3233
        %v3250 = vmul.f32 %v2749, %v3233
        %v3251 = vmul.f32 %v2750, %v3233
        %v3252 = vmul.f32 %v2751, %v3233
        %v3253 = vmul.f32 %v2752, %v3233
        %v3254 = vmul.f32 %v2753, %v3233
        %v3255 = vmul.f32 %v2754, %v3233
        %v3256 = vmul.f32 %v2755, %v3233
        %v3257 = vmul.f32 %v2756, %v3233
        %v3282 = vrot.slane %v3234, 2
        %v3283 = vrot.slane %v3235, 2
        %v3284 = vsel %vm1074, %v3282, %v3283
        %v3285 = vrot.slane %v3236, 2
        %v3286 = vsel %vm1074, %v3283, %v3285
        %v3287 = vrot.slane %v3237, 2
        %v3288 = vrot.slane %v3238, 2
        %v3289 = vsel %vm1074, %v3287, %v3288
        %v3290 = vrot.slane %v3239, 2
        %v3291 = vsel %vm1074, %v3288, %v3290
        %v3292 = vrot.slane %v3240, 2
        %v3293 = vrot.slane %v3241, 2
        %v3294 = vsel %vm1074, %v3292, %v3293
        %v3295 = vrot.slane %v3242, 2
        %v3296 = vsel %vm1074, %v3293, %v3295
        %v3297 = vrot.slane %v3243, 2
        %v3298 = vrot.slane %v3244, 2
        %v3299 = vsel %vm1074, %v3297, %v3298
        %v3300 = vrot.slane %v3245, 2
        %v3301 = vsel %vm1074, %v3298, %v3300
        %v3302 = vrot.slane %v3246, 2
        %v3303 = vrot.slane %v3247, 2
        %v3304 = vsel %vm1074, %v3302, %v3303
        %v3305 = vrot.slane %v3248, 2
        %v3306 = vsel %vm1074, %v3303, %v3305
        %v3307 = vrot.slane %v3249, 2
        %v3308 = vrot.slane %v3250, 2
        %v3309 = vsel %vm1074, %v3307, %v3308
        %v3310 = vrot.slane %v3251, 2
        %v3311 = vsel %vm1074, %v3308, %v3310
        %v3312 = vrot.slane %v3252, 2
        %v3313 = vrot.slane %v3253, 2
        %v3314 = vsel %vm1074, %v3312, %v3313
        %v3315 = vrot.slane %v3254, 2
        %v3316 = vsel %vm1074, %v3313, %v3315
        %v3317 = vrot.slane %v3255, 2
        %v3318 = vrot.slane %v3256, 2
        %v3319 = vsel %vm1074, %v3317, %v3318
        %v3320 = vrot.slane %v3257, 2
        %v3321 = vsel %vm1074, %v3318, %v3320
        %v3338 = vadd.f32 %v3216, %v3284
        %v3339 = vadd.f32 %v3217, %v3286
        %v3340 = vadd.f32 %v3218, %v3289
        %v3341 = vadd.f32 %v3219, %v3291
        %v3342 = vadd.f32 %v3220, %v3294
        %v3343 = vadd.f32 %v3221, %v3296
        %v3344 = vadd.f32 %v3222, %v3299
        %v3345 = vadd.f32 %v3223, %v3301
        %v3346 = vadd.f32 %v3224, %v3304
        %v3347 = vadd.f32 %v3225, %v3306
        %v3348 = vadd.f32 %v3226, %v3309
        %v3349 = vadd.f32 %v3227, %v3311
        %v3350 = vadd.f32 %v3228, %v3314
        %v3351 = vadd.f32 %v3229, %v3316
        %v3352 = vadd.f32 %v3230, %v3319
        %v3353 = vadd.f32 %v3231, %v3321
        %v3354 = vld [vmem:[%s2763 + $0x5] sm:$0x1]
        %v3355 = vperm.slane %v3354, 0
        %v3356 = vmul.f32 %v2736, %v3355
        %v3357 = vmul.f32 %v2737, %v3355
        %v3358 = vmul.f32 %v2738, %v3355
        %v3359 = vmul.f32 %v2739, %v3355
        %v3360 = vmul.f32 %v2740, %v3355
        %v3361 = vmul.f32 %v2741, %v3355
        %v3362 = vmul.f32 %v2742, %v3355
        %v3363 = vmul.f32 %v2743, %v3355
        %v3364 = vmul.f32 %v2744, %v3355
        %v3365 = vmul.f32 %v2745, %v3355
        %v3366 = vmul.f32 %v2746, %v3355
        %v3367 = vmul.f32 %v2747, %v3355
        %v3368 = vmul.f32 %v2748, %v3355
        %v3369 = vmul.f32 %v2749, %v3355
        %v3370 = vmul.f32 %v2750, %v3355
        %v3371 = vmul.f32 %v2751, %v3355
        %v3372 = vmul.f32 %v2752, %v3355
        %v3373 = vmul.f32 %v2753, %v3355
        %v3374 = vmul.f32 %v2754, %v3355
        %v3375 = vmul.f32 %v2755, %v3355
        %v3376 = vmul.f32 %v2756, %v3355
        %v3377 = vmul.f32 %v2757, %v3355
        %v3378 = vmul.f32 %v2758, %v3355
        %v3379 = vmul.f32 %v2759, %v3355
        %v3404 = vrot.slane %v3356, 2
        %v3405 = vrot.slane %v3357, 2
        %v3406 = vsel %vm1074, %v3404, %v3405
        %v3407 = vrot.slane %v3358, 2
        %v3408 = vsel %vm1074, %v3405, %v3407
        %v3409 = vrot.slane %v3359, 2
        %v3410 = vrot.slane %v3360, 2
        %v3411 = vsel %vm1074, %v3409, %v3410
        %v3412 = vrot.slane %v3361, 2
        %v3413 = vsel %vm1074, %v3410, %v3412
        %v3414 = vrot.slane %v3362, 2
        %v3415 = vrot.slane %v3363, 2
        %v3416 = vsel %vm1074, %v3414, %v3415
        %v3417 = vrot.slane %v3364, 2
        %v3418 = vsel %vm1074, %v3415, %v3417
        %v3419 = vrot.slane %v3365, 2
        %v3420 = vrot.slane %v3366, 2
        %v3421 = vsel %vm1074, %v3419, %v3420
        %v3422 = vrot.slane %v3367, 2
        %v3423 = vsel %vm1074, %v3420, %v3422
        %v3424 = vrot.slane %v3368, 2
        %v3425 = vrot.slane %v3369, 2
        %v3426 = vsel %vm1074, %v3424, %v3425
        %v3427 = vrot.slane %v3370, 2
        %v3428 = vsel %vm1074, %v3425, %v3427
        %v3429 = vrot.slane %v3371, 2
        %v3430 = vrot.slane %v3372, 2
        %v3431 = vsel %vm1074, %v3429, %v3430
        %v3432 = vrot.slane %v3373, 2
        %v3433 = vsel %vm1074, %v3430, %v3432
        %v3434 = vrot.slane %v3374, 2
        %v3435 = vrot.slane %v3375, 2
        %v3436 = vsel %vm1074, %v3434, %v3435
        %v3437 = vrot.slane %v3376, 2
        %v3438 = vsel %vm1074, %v3435, %v3437
        %v3439 = vrot.slane %v3377, 2
        %v3440 = vrot.slane %v3378, 2
        %v3441 = vsel %vm1074, %v3439, %v3440
        %v3442 = vrot.slane %v3379, 2
        %v3443 = vsel %vm1074, %v3440, %v3442
        %v3460 = vadd.f32 %v3338, %v3406
        %v3461 = vadd.f32 %v3339, %v3408
        %v3462 = vadd.f32 %v3340, %v3411
        %v3463 = vadd.f32 %v3341, %v3413
        %v3464 = vadd.f32 %v3342, %v3416
        %v3465 = vadd.f32 %v3343, %v3418
        %v3466 = vadd.f32 %v3344, %v3421
        %v3467 = vadd.f32 %v3345, %v3423
        %v3468 = vadd.f32 %v3346, %v3426
        %v3469 = vadd.f32 %v3347, %v3428
        %v3470 = vadd.f32 %v3348, %v3431
        %v3471 = vadd.f32 %v3349, %v3433
        %v3472 = vadd.f32 %v3350, %v3436
        %v3473 = vadd.f32 %v3351, %v3438
        %v3474 = vadd.f32 %v3352, %v3441
        %v3475 = vadd.f32 %v3353, %v3443
        %v3476 = vld [vmem:[%s2763 + $0x8] sm:$0x1]
        %v3477 = vperm.slane %v3476, 0
        %v3478 = vmul.f32 %v2739, %v3477
        %v3479 = vmul.f32 %v2740, %v3477
        %v3480 = vmul.f32 %v2741, %v3477
        %v3481 = vmul.f32 %v2742, %v3477
        %v3482 = vmul.f32 %v2743, %v3477
        %v3483 = vmul.f32 %v2744, %v3477
        %v3484 = vmul.f32 %v2745, %v3477
        %v3485 = vmul.f32 %v2746, %v3477
        %v3486 = vmul.f32 %v2747, %v3477
        %v3487 = vmul.f32 %v2748, %v3477
        %v3488 = vmul.f32 %v2749, %v3477
        %v3489 = vmul.f32 %v2750, %v3477
        %v3490 = vmul.f32 %v2751, %v3477
        %v3491 = vmul.f32 %v2752, %v3477
        %v3492 = vmul.f32 %v2753, %v3477
        %v3493 = vmul.f32 %v2754, %v3477
        %v3494 = vmul.f32 %v2755, %v3477
        %v3495 = vmul.f32 %v2756, %v3477
        %v3496 = vmul.f32 %v2757, %v3477
        %v3497 = vmul.f32 %v2758, %v3477
        %v3498 = vmul.f32 %v2759, %v3477
        %v3499 = vmul.f32 %v2760, %v3477
        %v3500 = vmul.f32 %v2761, %v3477
        %v3501 = vmul.f32 %v2762, %v3477
        %v3526 = vrot.slane %v3478, 2
        %v3527 = vrot.slane %v3479, 2
        %v3528 = vsel %vm1074, %v3526, %v3527
        %v3529 = vrot.slane %v3480, 2
        %v3530 = vsel %vm1074, %v3527, %v3529
        %v3531 = vrot.slane %v3481, 2
        %v3532 = vrot.slane %v3482, 2
        %v3533 = vsel %vm1074, %v3531, %v3532
        %v3534 = vrot.slane %v3483, 2
        %v3535 = vsel %vm1074, %v3532, %v3534
        %v3536 = vrot.slane %v3484, 2
        %v3537 = vrot.slane %v3485, 2
        %v3538 = vsel %vm1074, %v3536, %v3537
        %v3539 = vrot.slane %v3486, 2
        %v3540 = vsel %vm1074, %v3537, %v3539
        %v3541 = vrot.slane %v3487, 2
        %v3542 = vrot.slane %v3488, 2
        %v3543 = vsel %vm1074, %v3541, %v3542
        %v3544 = vrot.slane %v3489, 2
        %v3545 = vsel %vm1074, %v3542, %v3544
        %v3546 = vrot.slane %v3490, 2
        %v3547 = vrot.slane %v3491, 2
        %v3548 = vsel %vm1074, %v3546, %v3547
        %v3549 = vrot.slane %v3492, 2
        %v3550 = vsel %vm1074, %v3547, %v3549
        %v3551 = vrot.slane %v3493, 2
        %v3552 = vrot.slane %v3494, 2
        %v3553 = vsel %vm1074, %v3551, %v3552
        %v3554 = vrot.slane %v3495, 2
        %v3555 = vsel %vm1074, %v3552, %v3554
        %v3556 = vrot.slane %v3496, 2
        %v3557 = vrot.slane %v3497, 2
        %v3558 = vsel %vm1074, %v3556, %v3557
        %v3559 = vrot.slane %v3498, 2
        %v3560 = vsel %vm1074, %v3557, %v3559
        %v3561 = vrot.slane %v3499, 2
        %v3562 = vrot.slane %v3500, 2
        %v3563 = vsel %vm1074, %v3561, %v3562
        %v3564 = vrot.slane %v3501, 2
        %v3565 = vsel %vm1074, %v3562, %v3564
        %v3582 = vadd.f32 %v3460, %v3528
        %v3583 = vadd.f32 %v3461, %v3530
        %v3584 = vadd.f32 %v3462, %v3533
        %v3585 = vadd.f32 %v3463, %v3535
        %v3586 = vadd.f32 %v3464, %v3538
        %v3587 = vadd.f32 %v3465, %v3540
        %v3588 = vadd.f32 %v3466, %v3543
        %v3589 = vadd.f32 %v3467, %v3545
        %v3590 = vadd.f32 %v3468, %v3548
        %v3591 = vadd.f32 %v3469, %v3550
        %v3592 = vadd.f32 %v3470, %v3553
        %v3593 = vadd.f32 %v3471, %v3555
        %v3594 = vadd.f32 %v3472, %v3558
        %v3595 = vadd.f32 %v3473, %v3560
        %v3596 = vadd.f32 %v3474, %v3563
        %v3597 = vadd.f32 %v3475, %v3565
        %s3598 = scalar_lea.vmem %s4, 2
        %v3599 = vld [vmem:[%s3598] sm:$0x1]
        %v3601 = vperm.slane %v3599, 0
        %v3603 = vadd.f32 %v3582, %v3601
        %v3604 = vadd.f32 %v3583, %v3601
        %v3605 = vadd.f32 %v3584, %v3601
        %v3606 = vadd.f32 %v3585, %v3601
        %v3607 = vadd.f32 %v3586, %v3601
        %v3608 = vadd.f32 %v3587, %v3601
        %v3609 = vadd.f32 %v3588, %v3601
        %v3610 = vadd.f32 %v3589, %v3601
        %v3611 = vadd.f32 %v3590, %v3601
        %v3612 = vadd.f32 %v3591, %v3601
        %v3613 = vadd.f32 %v3592, %v3601
        %v3614 = vadd.f32 %v3593, %v3601
        %v3615 = vadd.f32 %v3594, %v3601
        %v3616 = vadd.f32 %v3595, %v3601
        %v3617 = vadd.f32 %v3596, %v3601
        %v3618 = vadd.f32 %v3597, %v3601
        %v3619 = vmax.f32 %v3603, 0.0
        %v3620 = vmax.f32 %v3604, 0.0
        %v3621 = vmax.f32 %v3605, 0.0
        %v3622 = vmax.f32 %v3606, 0.0
        %v3623 = vmax.f32 %v3607, 0.0
        %v3624 = vmax.f32 %v3608, 0.0
        %v3625 = vmax.f32 %v3609, 0.0
        %v3626 = vmax.f32 %v3610, 0.0
        %v3627 = vmax.f32 %v3611, 0.0
        %v3628 = vmax.f32 %v3612, 0.0
        %v3629 = vmax.f32 %v3613, 0.0
        %v3630 = vmax.f32 %v3614, 0.0
        %v3631 = vmax.f32 %v3615, 0.0
        %v3632 = vmax.f32 %v3616, 0.0
        %v3633 = vmax.f32 %v3617, 0.0
        %v3634 = vmax.f32 %v3618, 0.0
        %vm3651 = vcmask 1042432
        %v3652 = vrot.slane %v3619, 5
        %v3653 = vrot.slane %v3620, 5
        %v3654 = vsel %vm3651, %v3652, %v3653
        %v3655 = vrot.slane %v3621, 5
        %v3656 = vrot.slane %v3622, 5
        %v3657 = vsel %vm3651, %v3655, %v3656
        %v3658 = vrot.slane %v3623, 5
        %v3659 = vrot.slane %v3624, 5
        %v3660 = vsel %vm3651, %v3658, %v3659
        %v3661 = vrot.slane %v3625, 5
        %v3662 = vrot.slane %v3626, 5
        %v3663 = vsel %vm3651, %v3661, %v3662
        %v3664 = vrot.slane %v3627, 5
        %v3665 = vrot.slane %v3628, 5
        %v3666 = vsel %vm3651, %v3664, %v3665
        %v3667 = vrot.slane %v3629, 5
        %v3668 = vrot.slane %v3630, 5
        %v3669 = vsel %vm3651, %v3667, %v3668
        %v3670 = vrot.slane %v3631, 5
        %v3671 = vrot.slane %v3632, 5
        %v3672 = vsel %vm3651, %v3670, %v3671
        %v3673 = vrot.slane %v3633, 5
        %v3674 = vrot.slane %v3634, 5
        %v3675 = vsel %vm3651, %v3673, %v3674
        %v3692 = vadd.f32 %v2588, %v3652
        %v3693 = vadd.f32 %v2589, %v3654
        %v3694 = vadd.f32 %v2590, %v3655
        %v3695 = vadd.f32 %v2591, %v3657
        %v3696 = vadd.f32 %v2592, %v3658
        %v3697 = vadd.f32 %v2593, %v3660
        %v3698 = vadd.f32 %v2594, %v3661
        %v3699 = vadd.f32 %v2595, %v3663
        %v3700 = vadd.f32 %v2596, %v3664
        %v3701 = vadd.f32 %v2597, %v3666
        %v3702 = vadd.f32 %v2598, %v3667
        %v3703 = vadd.f32 %v2599, %v3669
        %v3704 = vadd.f32 %v2600, %v3670
        %v3705 = vadd.f32 %v2601, %v3672
        %v3706 = vadd.f32 %v2602, %v3673
        %v3707 = vadd.f32 %v2603, %v3675
        %s3708 = scalar_lea.vmem [#allocation3], 384
        %v3709 = vld [vmem:[%s3708] sm:$0xff]
        %v3710 = vld [vmem:[%s3708 + $0x8] sm:$0xff]
        %v3711 = vld [vmem:[%s3708 + $0x10] sm:$0xff]
        %v3712 = vld [vmem:[%s3708 + $0x18] sm:$0xff]
        %v3713 = vld [vmem:[%s3708 + $0x20] sm:$0xff]
        %v3714 = vld [vmem:[%s3708 + $0x28] sm:$0xff]
        %v3715 = vld [vmem:[%s3708 + $0x30] sm:$0xff]
        %v3716 = vld [vmem:[%s3708 + $0x38] sm:$0xff]
        %v3717 = vld [vmem:[%s3708 + $0x40] sm:$0xff]
        %v3718 = vld [vmem:[%s3708 + $0x48] sm:$0xff]
        %v3719 = vld [vmem:[%s3708 + $0x50] sm:$0xff]
        %v3720 = vld [vmem:[%s3708 + $0x58] sm:$0xff]
        %v3721 = vld [vmem:[%s3708 + $0x60] sm:$0xff]
        %v3722 = vld [vmem:[%s3708 + $0x68] sm:$0xff]
        %v3723 = vld [vmem:[%s3708 + $0x70] sm:$0xff]
        %v3724 = vld [vmem:[%s3708 + $0x78] sm:$0xff]
        %s3725 = scalar_lea.vmem %s2, 3
        %v3726 = vld [vmem:[%s3725] sm:$0x1]
        %v3728 = vperm.slane %v3726, 0
        %3730 = vmatpush.msra.mxu0 %v3724
        %3731 = vmatpush.msra.mxu0 %v3723
        %3732 = vmatpush.msra.mxu0 %v3722
        %3733 = vmatpush.msra.mxu0 %v3721
        %3734 = vmatpush.msra.mxu0 %v3720
        %3735 = vmatpush.msra.mxu0 %v3719
        %3736 = vmatpush.msra.mxu0 %v3718
        %3737 = vmatpush.msra.mxu0 %v3717
        %3738 = vmatpush.msra.mxu0 %v3716
        %3739 = vmatpush.msra.mxu0 %v3715
        %3740 = vmatpush.msra.mxu0 %v3714
        %3741 = vmatpush.msra.mxu0 %v3713
        %3742 = vmatpush.msra.mxu0 %v3712
        %3743 = vmatpush.msra.mxu0 %v3711
        %3744 = vmatpush.msra.mxu0 %v3710
        %3745 = vmatpush.msra.mxu0 %v3709
        %3746 = vmatmul.f32.gmra.mxu0 %v3619
        %v3747 = vpop.f32.mrf.mxu0
        %v3748 = vadd.f32 %v3728, %v3747
        %3749 = vmatmul.f32.gmra.mxu0 %v3620
        %v3750 = vpop.f32.mrf.mxu0
        %v3751 = vadd.f32 %v3728, %v3750
        %3752 = vmatmul.f32.gmra.mxu0 %v3621
        %v3753 = vpop.f32.mrf.mxu0
        %v3754 = vadd.f32 %v3728, %v3753
        %3755 = vmatmul.f32.gmra.mxu0 %v3622
        %v3756 = vpop.f32.mrf.mxu0
        %v3757 = vadd.f32 %v3728, %v3756
        %3758 = vmatmul.f32.gmra.mxu0 %v3623
        %v3759 = vpop.f32.mrf.mxu0
        %v3760 = vadd.f32 %v3728, %v3759
        %3761 = vmatmul.f32.gmra.mxu0 %v3624
        %v3762 = vpop.f32.mrf.mxu0
        %v3763 = vadd.f32 %v3728, %v3762
        %3764 = vmatmul.f32.gmra.mxu0 %v3625
        %v3765 = vpop.f32.mrf.mxu0
        %v3766 = vadd.f32 %v3728, %v3765
        %3767 = vmatmul.f32.gmra.mxu0 %v3626
        %v3768 = vpop.f32.mrf.mxu0
        %v3769 = vadd.f32 %v3728, %v3768
        %3770 = vmatmul.f32.gmra.mxu0 %v3627
        %v3771 = vpop.f32.mrf.mxu0
        %v3772 = vadd.f32 %v3728, %v3771
        %3773 = vmatmul.f32.gmra.mxu0 %v3628
        %v3774 = vpop.f32.mrf.mxu0
        %v3775 = vadd.f32 %v3728, %v3774
        %3776 = vmatmul.f32.gmra.mxu0 %v3629
        %v3777 = vpop.f32.mrf.mxu0
        %v3778 = vadd.f32 %v3728, %v3777
        %3779 = vmatmul.f32.gmra.mxu0 %v3630
        %v3780 = vpop.f32.mrf.mxu0
        %v3781 = vadd.f32 %v3728, %v3780
        %3782 = vmatmul.f32.gmra.mxu0 %v3631
        %v3783 = vpop.f32.mrf.mxu0
        %v3784 = vadd.f32 %v3728, %v3783
        %3785 = vmatmul.f32.gmra.mxu0 %v3632
        %v3786 = vpop.f32.mrf.mxu0
        %v3787 = vadd.f32 %v3728, %v3786
        %3788 = vmatmul.f32.gmra.mxu0 %v3633
        %v3789 = vpop.f32.mrf.mxu0
        %v3790 = vadd.f32 %v3728, %v3789
        %3791 = vmatmul.f32.gmra.mxu0 %v3634
        %v3792 = vpop.f32.mrf.mxu0
        %v3793 = vadd.f32 %v3728, %v3792
        %3794 = vdwg.mxu0
        %vm3795 = vcmp.ge.s32.totalorder %v379, 1
        %vm3796 = vcmp.ge.s32.totalorder %v380, 1
        %vm3797 = vcmp.lt.s32.totalorder %v379, 9
        %vm3798 = vcmp.lt.s32.totalorder %v380, 9
        %vm3799 = vmand %vm3795, %vm3797
        %vm3800 = vmand %vm3796, %vm3798
        %v3801 = vsel %vm3799, 1, 0
        %v3802 = vsel %vm3800, 1, 0
        %vm3803 = vcmp.eq.s32.totalorder %v3801, 1
        %vm3804 = vcmp.eq.s32.totalorder %v3802, 1
        %v3805 = vsel %vm3803, %v3748, 0.0
        %v3806 = vsel %vm3804, %v3751, 0.0
        %v3807 = vsel %vm3803, %v3754, 0.0
        %v3808 = vsel %vm3804, %v3757, 0.0
        %v3809 = vsel %vm3803, %v3760, 0.0
        %v3810 = vsel %vm3804, %v3763, 0.0
        %v3811 = vsel %vm3803, %v3766, 0.0
        %v3812 = vsel %vm3804, %v3769, 0.0
        %v3813 = vsel %vm3803, %v3772, 0.0
        %v3814 = vsel %vm3804, %v3775, 0.0
        %v3815 = vsel %vm3803, %v3778, 0.0
        %v3816 = vsel %vm3804, %v3781, 0.0
        %v3817 = vsel %vm3803, %v3784, 0.0
        %v3818 = vsel %vm3804, %v3787, 0.0
        %v3819 = vsel %vm3803, %v3790, 0.0
        %v3820 = vsel %vm3804, %v3793, 0.0
        %3821 = vst [vmem:[%s508] sm:$0xff] %v3805
        %3822 = vst [vmem:[%s508 + $0x8] sm:$0xff] %v3806
        %3823 = vst [vmem:[%s508 + $0x18] sm:$0xff] %v3807
        %3824 = vst [vmem:[%s508 + $0x20] sm:$0xff] %v3808
        %3825 = vst [vmem:[%s508 + $0x30] sm:$0xff] %v3809
        %3826 = vst [vmem:[%s508 + $0x38] sm:$0xff] %v3810
        %3827 = vst [vmem:[%s508 + $0x48] sm:$0xff] %v3811
        %3828 = vst [vmem:[%s508 + $0x50] sm:$0xff] %v3812
        %3829 = vst [vmem:[%s508 + $0x60] sm:$0xff] %v3813
        %3830 = vst [vmem:[%s508 + $0x68] sm:$0xff] %v3814
        %3831 = vst [vmem:[%s508 + $0x78] sm:$0xff] %v3815
        %3832 = vst [vmem:[%s508 + $0x80] sm:$0xff] %v3816
        %3833 = vst [vmem:[%s508 + $0x90] sm:$0xff] %v3817
        %3834 = vst [vmem:[%s508 + $0x98] sm:$0xff] %v3818
        %3835 = vst [vmem:[%s508 + $0xa8] sm:$0xff] %v3819
        %3836 = vst [vmem:[%s508 + $0xb0] sm:$0xff] %v3820
        %v3837 = vld [vmem:[#allocation2] sm:$0xff]
        %v3838 = vld [vmem:[#allocation2 + $0x8] sm:$0xff]
        %v3839 = vld [vmem:[#allocation2 + $0x18] sm:$0xff]
        %v3840 = vld [vmem:[#allocation2 + $0x20] sm:$0xff]
        %v3841 = vld [vmem:[#allocation2 + $0x30] sm:$0xff]
        %v3842 = vld [vmem:[#allocation2 + $0x38] sm:$0xff]
        %v3843 = vld [vmem:[#allocation2 + $0x48] sm:$0xff]
        %v3844 = vld [vmem:[#allocation2 + $0x50] sm:$0xff]
        %v3845 = vld [vmem:[#allocation2 + $0x60] sm:$0xff]
        %v3846 = vld [vmem:[#allocation2 + $0x68] sm:$0xff]
        %v3847 = vld [vmem:[#allocation2 + $0x78] sm:$0xff]
        %v3848 = vld [vmem:[#allocation2 + $0x80] sm:$0xff]
        %v3849 = vld [vmem:[#allocation2 + $0x90] sm:$0xff]
        %v3850 = vld [vmem:[#allocation2 + $0x98] sm:$0xff]
        %v3851 = vld [vmem:[#allocation2 + $0xa8] sm:$0xff]
        %v3852 = vld [vmem:[#allocation2 + $0xb0] sm:$0xff]
        %v3853 = vld [vmem:[#allocation2 + $0xc0] sm:$0xff]
        %v3854 = vld [vmem:[#allocation2 + $0xc8] sm:$0xff]
        %v3855 = vld [vmem:[#allocation2 + $0xd8] sm:$0xff]
        %v3856 = vld [vmem:[#allocation2 + $0xe0] sm:$0xff]
        %s3857 = scalar_lea.vmem %s3, 48
        %v3858 = vld [vmem:[%s3857] sm:$0x1]
        %v3859 = vperm.slane %v3858, 0
        %v3860 = vmul.f32 %v3837, %v3859
        %v3861 = vmul.f32 %v3839, %v3859
        %v3862 = vmul.f32 %v3841, %v3859
        %v3863 = vmul.f32 %v3843, %v3859
        %v3864 = vmul.f32 %v3845, %v3859
        %v3865 = vmul.f32 %v3847, %v3859
        %v3866 = vmul.f32 %v3849, %v3859
        %v3867 = vmul.f32 %v3851, %v3859
        %v3868 = vadd.f32 %v3860, 0.0
        %v3869 = vadd.f32 %v3861, 0.0
        %v3870 = vadd.f32 %v3862, 0.0
        %v3871 = vadd.f32 %v3863, 0.0
        %v3872 = vadd.f32 %v3864, 0.0
        %v3873 = vadd.f32 %v3865, 0.0
        %v3874 = vadd.f32 %v3866, 0.0
        %v3875 = vadd.f32 %v3867, 0.0
        %v3876 = vld [vmem:[%s3857 + $0x3] sm:$0x1]
        %v3877 = vperm.slane %v3876, 0
        %v3878 = vmul.f32 %v3839, %v3877
        %v3879 = vmul.f32 %v3841, %v3877
        %v3880 = vmul.f32 %v3843, %v3877
        %v3881 = vmul.f32 %v3845, %v3877
        %v3882 = vmul.f32 %v3847, %v3877
        %v3883 = vmul.f32 %v3849, %v3877
        %v3884 = vmul.f32 %v3851, %v3877
        %v3885 = vmul.f32 %v3853, %v3877
        %v3886 = vadd.f32 %v3868, %v3878
        %v3887 = vadd.f32 %v3869, %v3879
        %v3888 = vadd.f32 %v3870, %v3880
        %v3889 = vadd.f32 %v3871, %v3881
        %v3890 = vadd.f32 %v3872, %v3882
        %v3891 = vadd.f32 %v3873, %v3883
        %v3892 = vadd.f32 %v3874, %v3884
        %v3893 = vadd.f32 %v3875, %v3885
        %v3894 = vld [vmem:[%s3857 + $0x6] sm:$0x1]
        %v3895 = vperm.slane %v3894, 0
        %v3896 = vmul.f32 %v3841, %v3895
        %v3897 = vmul.f32 %v3843, %v3895
        %v3898 = vmul.f32 %v3845, %v3895
        %v3899 = vmul.f32 %v3847, %v3895
        %v3900 = vmul.f32 %v3849, %v3895
        %v3901 = vmul.f32 %v3851, %v3895
        %v3902 = vmul.f32 %v3853, %v3895
        %v3903 = vmul.f32 %v3855, %v3895
        %v3904 = vadd.f32 %v3886, %v3896
        %v3905 = vadd.f32 %v3887, %v3897
        %v3906 = vadd.f32 %v3888, %v3898
        %v3907 = vadd.f32 %v3889, %v3899
        %v3908 = vadd.f32 %v3890, %v3900
        %v3909 = vadd.f32 %v3891, %v3901
        %v3910 = vadd.f32 %v3892, %v3902
        %v3911 = vadd.f32 %v3893, %v3903
        %v3912 = vld [vmem:[%s3857 + $0x1] sm:$0x1]
        %v3913 = vperm.slane %v3912, 0
        %v3914 = vmul.f32 %v3837, %v3913
        %v3915 = vmul.f32 %v3838, %v3913
        %v3916 = vmul.f32 %v3839, %v3913
        %v3917 = vmul.f32 %v3840, %v3913
        %v3918 = vmul.f32 %v3841, %v3913
        %v3919 = vmul.f32 %v3842, %v3913
        %v3920 = vmul.f32 %v3843, %v3913
        %v3921 = vmul.f32 %v3844, %v3913
        %v3922 = vmul.f32 %v3845, %v3913
        %v3923 = vmul.f32 %v3846, %v3913
        %v3924 = vmul.f32 %v3847, %v3913
        %v3925 = vmul.f32 %v3848, %v3913
        %v3926 = vmul.f32 %v3849, %v3913
        %v3927 = vmul.f32 %v3850, %v3913
        %v3928 = vmul.f32 %v3851, %v3913
        %v3929 = vmul.f32 %v3852, %v3913
        %v3946 = vrot.slane %v3914, 1
        %v3947 = vrot.slane %v3915, 1
        %v3948 = vsel %vm707, %v3946, %v3947
        %v3949 = vrot.slane %v3916, 1
        %v3950 = vrot.slane %v3917, 1
        %v3951 = vsel %vm707, %v3949, %v3950
        %v3952 = vrot.slane %v3918, 1
        %v3953 = vrot.slane %v3919, 1
        %v3954 = vsel %vm707, %v3952, %v3953
        %v3955 = vrot.slane %v3920, 1
        %v3956 = vrot.slane %v3921, 1
        %v3957 = vsel %vm707, %v3955, %v3956
        %v3958 = vrot.slane %v3922, 1
        %v3959 = vrot.slane %v3923, 1
        %v3960 = vsel %vm707, %v3958, %v3959
        %v3961 = vrot.slane %v3924, 1
        %v3962 = vrot.slane %v3925, 1
        %v3963 = vsel %vm707, %v3961, %v3962
        %v3964 = vrot.slane %v3926, 1
        %v3965 = vrot.slane %v3927, 1
        %v3966 = vsel %vm707, %v3964, %v3965
        %v3967 = vrot.slane %v3928, 1
        %v3968 = vrot.slane %v3929, 1
        %v3969 = vsel %vm707, %v3967, %v3968
        %v3978 = vadd.f32 %v3904, %v3948
        %v3979 = vadd.f32 %v3905, %v3951
        %v3980 = vadd.f32 %v3906, %v3954
        %v3981 = vadd.f32 %v3907, %v3957
        %v3982 = vadd.f32 %v3908, %v3960
        %v3983 = vadd.f32 %v3909, %v3963
        %v3984 = vadd.f32 %v3910, %v3966
        %v3985 = vadd.f32 %v3911, %v3969
        %v3986 = vld [vmem:[%s3857 + $0x4] sm:$0x1]
        %v3987 = vperm.slane %v3986, 0
        %v3988 = vmul.f32 %v3839, %v3987
        %v3989 = vmul.f32 %v3840, %v3987
        %v3990 = vmul.f32 %v3841, %v3987
        %v3991 = vmul.f32 %v3842, %v3987
        %v3992 = vmul.f32 %v3843, %v3987
        %v3993 = vmul.f32 %v3844, %v3987
        %v3994 = vmul.f32 %v3845, %v3987
        %v3995 = vmul.f32 %v3846, %v3987
        %v3996 = vmul.f32 %v3847, %v3987
        %v3997 = vmul.f32 %v3848, %v3987
        %v3998 = vmul.f32 %v3849, %v3987
        %v3999 = vmul.f32 %v3850, %v3987
        %v4000 = vmul.f32 %v3851, %v3987
        %v4001 = vmul.f32 %v3852, %v3987
        %v4002 = vmul.f32 %v3853, %v3987
        %v4003 = vmul.f32 %v3854, %v3987
        %v4020 = vrot.slane %v3988, 1
        %v4021 = vrot.slane %v3989, 1
        %v4022 = vsel %vm707, %v4020, %v4021
        %v4023 = vrot.slane %v3990, 1
        %v4024 = vrot.slane %v3991, 1
        %v4025 = vsel %vm707, %v4023, %v4024
        %v4026 = vrot.slane %v3992, 1
        %v4027 = vrot.slane %v3993, 1
        %v4028 = vsel %vm707, %v4026, %v4027
        %v4029 = vrot.slane %v3994, 1
        %v4030 = vrot.slane %v3995, 1
        %v4031 = vsel %vm707, %v4029, %v4030
        %v4032 = vrot.slane %v3996, 1
        %v4033 = vrot.slane %v3997, 1
        %v4034 = vsel %vm707, %v4032, %v4033
        %v4035 = vrot.slane %v3998, 1
        %v4036 = vrot.slane %v3999, 1
        %v4037 = vsel %vm707, %v4035, %v4036
        %v4038 = vrot.slane %v4000, 1
        %v4039 = vrot.slane %v4001, 1
        %v4040 = vsel %vm707, %v4038, %v4039
        %v4041 = vrot.slane %v4002, 1
        %v4042 = vrot.slane %v4003, 1
        %v4043 = vsel %vm707, %v4041, %v4042
        %v4052 = vadd.f32 %v3978, %v4022
        %v4053 = vadd.f32 %v3979, %v4025
        %v4054 = vadd.f32 %v3980, %v4028
        %v4055 = vadd.f32 %v3981, %v4031
        %v4056 = vadd.f32 %v3982, %v4034
        %v4057 = vadd.f32 %v3983, %v4037
        %v4058 = vadd.f32 %v3984, %v4040
        %v4059 = vadd.f32 %v3985, %v4043
        %v4060 = vld [vmem:[%s3857 + $0x7] sm:$0x1]
        %v4061 = vperm.slane %v4060, 0
        %v4062 = vmul.f32 %v3841, %v4061
        %v4063 = vmul.f32 %v3842, %v4061
        %v4064 = vmul.f32 %v3843, %v4061
        %v4065 = vmul.f32 %v3844, %v4061
        %v4066 = vmul.f32 %v3845, %v4061
        %v4067 = vmul.f32 %v3846, %v4061
        %v4068 = vmul.f32 %v3847, %v4061
        %v4069 = vmul.f32 %v3848, %v4061
        %v4070 = vmul.f32 %v3849, %v4061
        %v4071 = vmul.f32 %v3850, %v4061
        %v4072 = vmul.f32 %v3851, %v4061
        %v4073 = vmul.f32 %v3852, %v4061
        %v4074 = vmul.f32 %v3853, %v4061
        %v4075 = vmul.f32 %v3854, %v4061
        %v4076 = vmul.f32 %v3855, %v4061
        %v4077 = vmul.f32 %v3856, %v4061
        %v4094 = vrot.slane %v4062, 1
        %v4095 = vrot.slane %v4063, 1
        %v4096 = vsel %vm707, %v4094, %v4095
        %v4097 = vrot.slane %v4064, 1
        %v4098 = vrot.slane %v4065, 1
        %v4099 = vsel %vm707, %v4097, %v4098
        %v4100 = vrot.slane %v4066, 1
        %v4101 = vrot.slane %v4067, 1
        %v4102 = vsel %vm707, %v4100, %v4101
        %v4103 = vrot.slane %v4068, 1
        %v4104 = vrot.slane %v4069, 1
        %v4105 = vsel %vm707, %v4103, %v4104
        %v4106 = vrot.slane %v4070, 1
        %v4107 = vrot.slane %v4071, 1
        %v4108 = vsel %vm707, %v4106, %v4107
        %v4109 = vrot.slane %v4072, 1
        %v4110 = vrot.slane %v4073, 1
        %v4111 = vsel %vm707, %v4109, %v4110
        %v4112 = vrot.slane %v4074, 1
        %v4113 = vrot.slane %v4075, 1
        %v4114 = vsel %vm707, %v4112, %v4113
        %v4115 = vrot.slane %v4076, 1
        %v4116 = vrot.slane %v4077, 1
        %v4117 = vsel %vm707, %v4115, %v4116
        %v4126 = vadd.f32 %v4052, %v4096
        %v4127 = vadd.f32 %v4053, %v4099
        %v4128 = vadd.f32 %v4054, %v4102
        %v4129 = vadd.f32 %v4055, %v4105
        %v4130 = vadd.f32 %v4056, %v4108
        %v4131 = vadd.f32 %v4057, %v4111
        %v4132 = vadd.f32 %v4058, %v4114
        %v4133 = vadd.f32 %v4059, %v4117
        %v4134 = vld [vmem:[%s3857 + $0x2] sm:$0x1]
        %v4135 = vperm.slane %v4134, 0
        %v4136 = vmul.f32 %v3837, %v4135
        %v4137 = vmul.f32 %v3838, %v4135
        %v4138 = vmul.f32 %v3839, %v4135
        %v4139 = vmul.f32 %v3840, %v4135
        %v4140 = vmul.f32 %v3841, %v4135
        %v4141 = vmul.f32 %v3842, %v4135
        %v4142 = vmul.f32 %v3843, %v4135
        %v4143 = vmul.f32 %v3844, %v4135
        %v4144 = vmul.f32 %v3845, %v4135
        %v4145 = vmul.f32 %v3846, %v4135
        %v4146 = vmul.f32 %v3847, %v4135
        %v4147 = vmul.f32 %v3848, %v4135
        %v4148 = vmul.f32 %v3849, %v4135
        %v4149 = vmul.f32 %v3850, %v4135
        %v4150 = vmul.f32 %v3851, %v4135
        %v4151 = vmul.f32 %v3852, %v4135
        %v4168 = vrot.slane %v4136, 2
        %v4169 = vrot.slane %v4137, 2
        %v4170 = vsel %vm1074, %v4168, %v4169
        %v4171 = vrot.slane %v4138, 2
        %v4172 = vrot.slane %v4139, 2
        %v4173 = vsel %vm1074, %v4171, %v4172
        %v4174 = vrot.slane %v4140, 2
        %v4175 = vrot.slane %v4141, 2
        %v4176 = vsel %vm1074, %v4174, %v4175
        %v4177 = vrot.slane %v4142, 2
        %v4178 = vrot.slane %v4143, 2
        %v4179 = vsel %vm1074, %v4177, %v4178
        %v4180 = vrot.slane %v4144, 2
        %v4181 = vrot.slane %v4145, 2
        %v4182 = vsel %vm1074, %v4180, %v4181
        %v4183 = vrot.slane %v4146, 2
        %v4184 = vrot.slane %v4147, 2
        %v4185 = vsel %vm1074, %v4183, %v4184
        %v4186 = vrot.slane %v4148, 2
        %v4187 = vrot.slane %v4149, 2
        %v4188 = vsel %vm1074, %v4186, %v4187
        %v4189 = vrot.slane %v4150, 2
        %v4190 = vrot.slane %v4151, 2
        %v4191 = vsel %vm1074, %v4189, %v4190
        %v4200 = vadd.f32 %v4126, %v4170
        %v4201 = vadd.f32 %v4127, %v4173
        %v4202 = vadd.f32 %v4128, %v4176
        %v4203 = vadd.f32 %v4129, %v4179
        %v4204 = vadd.f32 %v4130, %v4182
        %v4205 = vadd.f32 %v4131, %v4185
        %v4206 = vadd.f32 %v4132, %v4188
        %v4207 = vadd.f32 %v4133, %v4191
        %v4208 = vld [vmem:[%s3857 + $0x5] sm:$0x1]
        %v4209 = vperm.slane %v4208, 0
        %v4210 = vmul.f32 %v3839, %v4209
        %v4211 = vmul.f32 %v3840, %v4209
        %v4212 = vmul.f32 %v3841, %v4209
        %v4213 = vmul.f32 %v3842, %v4209
        %v4214 = vmul.f32 %v3843, %v4209
        %v4215 = vmul.f32 %v3844, %v4209
        %v4216 = vmul.f32 %v3845, %v4209
        %v4217 = vmul.f32 %v3846, %v4209
        %v4218 = vmul.f32 %v3847, %v4209
        %v4219 = vmul.f32 %v3848, %v4209
        %v4220 = vmul.f32 %v3849, %v4209
        %v4221 = vmul.f32 %v3850, %v4209
        %v4222 = vmul.f32 %v3851, %v4209
        %v4223 = vmul.f32 %v3852, %v4209
        %v4224 = vmul.f32 %v3853, %v4209
        %v4225 = vmul.f32 %v3854, %v4209
        %v4242 = vrot.slane %v4210, 2
        %v4243 = vrot.slane %v4211, 2
        %v4244 = vsel %vm1074, %v4242, %v4243
        %v4245 = vrot.slane %v4212, 2
        %v4246 = vrot.slane %v4213, 2
        %v4247 = vsel %vm1074, %v4245, %v4246
        %v4248 = vrot.slane %v4214, 2
        %v4249 = vrot.slane %v4215, 2
        %v4250 = vsel %vm1074, %v4248, %v4249
        %v4251 = vrot.slane %v4216, 2
        %v4252 = vrot.slane %v4217, 2
        %v4253 = vsel %vm1074, %v4251, %v4252
        %v4254 = vrot.slane %v4218, 2
        %v4255 = vrot.slane %v4219, 2
        %v4256 = vsel %vm1074, %v4254, %v4255
        %v4257 = vrot.slane %v4220, 2
        %v4258 = vrot.slane %v4221, 2
        %v4259 = vsel %vm1074, %v4257, %v4258
        %v4260 = vrot.slane %v4222, 2
        %v4261 = vrot.slane %v4223, 2
        %v4262 = vsel %vm1074, %v4260, %v4261
        %v4263 = vrot.slane %v4224, 2
        %v4264 = vrot.slane %v4225, 2
        %v4265 = vsel %vm1074, %v4263, %v4264
        %v4274 = vadd.f32 %v4200, %v4244
        %v4275 = vadd.f32 %v4201, %v4247
        %v4276 = vadd.f32 %v4202, %v4250
        %v4277 = vadd.f32 %v4203, %v4253
        %v4278 = vadd.f32 %v4204, %v4256
        %v4279 = vadd.f32 %v4205, %v4259
        %v4280 = vadd.f32 %v4206, %v4262
        %v4281 = vadd.f32 %v4207, %v4265
        %v4282 = vld [vmem:[%s3857 + $0x8] sm:$0x1]
        %v4283 = vperm.slane %v4282, 0
        %v4284 = vmul.f32 %v3841, %v4283
        %v4285 = vmul.f32 %v3842, %v4283
        %v4286 = vmul.f32 %v3843, %v4283
        %v4287 = vmul.f32 %v3844, %v4283
        %v4288 = vmul.f32 %v3845, %v4283
        %v4289 = vmul.f32 %v3846, %v4283
        %v4290 = vmul.f32 %v3847, %v4283
        %v4291 = vmul.f32 %v3848, %v4283
        %v4292 = vmul.f32 %v3849, %v4283
        %v4293 = vmul.f32 %v3850, %v4283
        %v4294 = vmul.f32 %v3851, %v4283
        %v4295 = vmul.f32 %v3852, %v4283
        %v4296 = vmul.f32 %v3853, %v4283
        %v4297 = vmul.f32 %v3854, %v4283
        %v4298 = vmul.f32 %v3855, %v4283
        %v4299 = vmul.f32 %v3856, %v4283
        %v4316 = vrot.slane %v4284, 2
        %v4317 = vrot.slane %v4285, 2
        %v4318 = vsel %vm1074, %v4316, %v4317
        %v4319 = vrot.slane %v4286, 2
        %v4320 = vrot.slane %v4287, 2
        %v4321 = vsel %vm1074, %v4319, %v4320
        %v4322 = vrot.slane %v4288, 2
        %v4323 = vrot.slane %v4289, 2
        %v4324 = vsel %vm1074, %v4322, %v4323
        %v4325 = vrot.slane %v4290, 2
        %v4326 = vrot.slane %v4291, 2
        %v4327 = vsel %vm1074, %v4325, %v4326
        %v4328 = vrot.slane %v4292, 2
        %v4329 = vrot.slane %v4293, 2
        %v4330 = vsel %vm1074, %v4328, %v4329
        %v4331 = vrot.slane %v4294, 2
        %v4332 = vrot.slane %v4295, 2
        %v4333 = vsel %vm1074, %v4331, %v4332
        %v4334 = vrot.slane %v4296, 2
        %v4335 = vrot.slane %v4297, 2
        %v4336 = vsel %vm1074, %v4334, %v4335
        %v4337 = vrot.slane %v4298, 2
        %v4338 = vrot.slane %v4299, 2
        %v4339 = vsel %vm1074, %v4337, %v4338
        %v4348 = vadd.f32 %v4274, %v4318
        %v4349 = vadd.f32 %v4275, %v4321
        %v4350 = vadd.f32 %v4276, %v4324
        %v4351 = vadd.f32 %v4277, %v4327
        %v4352 = vadd.f32 %v4278, %v4330
        %v4353 = vadd.f32 %v4279, %v4333
        %v4354 = vadd.f32 %v4280, %v4336
        %v4355 = vadd.f32 %v4281, %v4339
        %s4356 = scalar_lea.vmem %s4, 3
        %v4357 = vld [vmem:[%s4356] sm:$0x1]
        %v4359 = vperm.slane %v4357, 0
        %v4361 = vadd.f32 %v4348, %v4359
        %v4362 = vadd.f32 %v4349, %v4359
        %v4363 = vadd.f32 %v4350, %v4359
        %v4364 = vadd.f32 %v4351, %v4359
        %v4365 = vadd.f32 %v4352, %v4359
        %v4366 = vadd.f32 %v4353, %v4359
        %v4367 = vadd.f32 %v4354, %v4359
        %v4368 = vadd.f32 %v4355, %v4359
        %v4369 = vmax.f32 %v4361, 0.0
        %v4370 = vmax.f32 %v4362, 0.0
        %v4371 = vmax.f32 %v4363, 0.0
        %v4372 = vmax.f32 %v4364, 0.0
        %v4373 = vmax.f32 %v4365, 0.0
        %v4374 = vmax.f32 %v4366, 0.0
        %v4375 = vmax.f32 %v4367, 0.0
        %v4376 = vmax.f32 %v4368, 0.0
        %v4385 = vrot.slane %v4369, 4
        %v4386 = vrot.slane %v4370, 4
        %v4387 = vrot.slane %v4371, 4
        %v4388 = vrot.slane %v4372, 4
        %v4389 = vrot.slane %v4373, 4
        %v4390 = vrot.slane %v4374, 4
        %v4391 = vrot.slane %v4375, 4
        %v4392 = vrot.slane %v4376, 4
        %v4401 = vadd.f32 %v3692, %v4385
        %v4402 = vadd.f32 %v3693, %v4385
        %v4403 = vadd.f32 %v3694, %v4386
        %v4404 = vadd.f32 %v3695, %v4386
        %v4405 = vadd.f32 %v3696, %v4387
        %v4406 = vadd.f32 %v3697, %v4387
        %v4407 = vadd.f32 %v3698, %v4388
        %v4408 = vadd.f32 %v3699, %v4388
        %v4409 = vadd.f32 %v3700, %v4389
        %v4410 = vadd.f32 %v3701, %v4389
        %v4411 = vadd.f32 %v3702, %v4390
        %v4412 = vadd.f32 %v3703, %v4390
        %v4413 = vadd.f32 %v3704, %v4391
        %v4414 = vadd.f32 %v3705, %v4391
        %v4415 = vadd.f32 %v3706, %v4392
        %v4416 = vadd.f32 %v3707, %v4392
        %vm4433 = vcmask 1043456
        %v4434 = vrot.slane %v4401, 4
        %v4435 = vrot.slane %v4402, 4
        %v4436 = vsel %vm4433, %v4434, %v4435
        %v4437 = vrot.slane %v4403, 4
        %v4438 = vrot.slane %v4404, 4
        %v4439 = vsel %vm4433, %v4437, %v4438
        %v4440 = vrot.slane %v4405, 4
        %v4441 = vrot.slane %v4406, 4
        %v4442 = vsel %vm4433, %v4440, %v4441
        %v4443 = vrot.slane %v4407, 4
        %v4444 = vrot.slane %v4408, 4
        %v4445 = vsel %vm4433, %v4443, %v4444
        %v4446 = vrot.slane %v4409, 4
        %v4447 = vrot.slane %v4410, 4
        %v4448 = vsel %vm4433, %v4446, %v4447
        %v4449 = vrot.slane %v4411, 4
        %v4450 = vrot.slane %v4412, 4
        %v4451 = vsel %vm4433, %v4449, %v4450
        %v4452 = vrot.slane %v4413, 4
        %v4453 = vrot.slane %v4414, 4
        %v4454 = vsel %vm4433, %v4452, %v4453
        %v4455 = vrot.slane %v4415, 4
        %v4456 = vrot.slane %v4416, 4
        %v4457 = vsel %vm4433, %v4455, %v4456
        %v4466 = vld [vmem:[%s5] sm:$0xff]
        %v4467 = vld [vmem:[%s5 + $0x8] sm:$0xff]
        %v4468 = vld [vmem:[%s5 + $0x10] sm:$0xff]
        %v4469 = vld [vmem:[%s5 + $0x18] sm:$0xff]
        %v4470 = vld [vmem:[%s5 + $0x20] sm:$0xff]
        %v4471 = vld [vmem:[%s5 + $0x28] sm:$0xff]
        %v4472 = vld [vmem:[%s5 + $0x30] sm:$0xff]
        %v4473 = vld [vmem:[%s5 + $0x38] sm:$0xff]
        %v4474 = vld [vmem:[%s5 + $0x40] sm:$0xff]
        %v4475 = vld [vmem:[%s5 + $0x48] sm:$0xff]
        %v4476 = vld [vmem:[%s5 + $0x50] sm:$0xff]
        %v4477 = vld [vmem:[%s5 + $0x58] sm:$0xff]
        %v4478 = vld [vmem:[%s5 + $0x60] sm:$0xff]
        %v4479 = vld [vmem:[%s5 + $0x68] sm:$0xff]
        %v4480 = vld [vmem:[%s5 + $0x70] sm:$0xff]
        %v4481 = vld [vmem:[%s5 + $0x78] sm:$0xff]
        %v4482 = vld [vmem:[%s6] sm:$0x1]
        %v4484 = vperm.slane %v4482, 0
        %4486 = vmatpush.msra.mxu0 %v4481
        %4487 = vmatpush.msra.mxu0 %v4480
        %4488 = vmatpush.msra.mxu0 %v4479
        %4489 = vmatpush.msra.mxu0 %v4478
        %4490 = vmatpush.msra.mxu0 %v4477
        %4491 = vmatpush.msra.mxu0 %v4476
        %4492 = vmatpush.msra.mxu0 %v4475
        %4493 = vmatpush.msra.mxu0 %v4474
        %4494 = vmatpush.msra.mxu0 %v4473
        %4495 = vmatpush.msra.mxu0 %v4472
        %4496 = vmatpush.msra.mxu0 %v4471
        %4497 = vmatpush.msra.mxu0 %v4470
        %4498 = vmatpush.msra.mxu0 %v4469
        %4499 = vmatpush.msra.mxu0 %v4468
        %4500 = vmatpush.msra.mxu0 %v4467
        %4501 = vmatpush.msra.mxu0 %v4466
        %4502 = vmatmul.f32.gmra.mxu0 %v4436
        %v4503 = vpop.f32.mrf.mxu0
        %v4504 = vadd.f32 %v4484, %v4503
        %4505 = vmatmul.f32.gmra.mxu0 %v4439
        %v4506 = vpop.f32.mrf.mxu0
        %v4507 = vadd.f32 %v4484, %v4506
        %4508 = vmatmul.f32.gmra.mxu0 %v4442
        %v4509 = vpop.f32.mrf.mxu0
        %v4510 = vadd.f32 %v4484, %v4509
        %4511 = vmatmul.f32.gmra.mxu0 %v4445
        %v4512 = vpop.f32.mrf.mxu0
        %v4513 = vadd.f32 %v4484, %v4512
        %4514 = vmatmul.f32.gmra.mxu0 %v4448
        %v4515 = vpop.f32.mrf.mxu0
        %v4516 = vadd.f32 %v4484, %v4515
        %4517 = vmatmul.f32.gmra.mxu0 %v4451
        %v4518 = vpop.f32.mrf.mxu0
        %v4519 = vadd.f32 %v4484, %v4518
        %4520 = vmatmul.f32.gmra.mxu0 %v4454
        %v4521 = vpop.f32.mrf.mxu0
        %v4522 = vadd.f32 %v4484, %v4521
        %4523 = vmatmul.f32.gmra.mxu0 %v4457
        %v4524 = vpop.f32.mrf.mxu0
        %v4525 = vadd.f32 %v4484, %v4524
        %4526 = vdwg.mxu0
        %v4527 = vmax.f32 %v4504, 0.0
        %v4528 = vmax.f32 %v4507, 0.0
        %v4529 = vmax.f32 %v4510, 0.0
        %v4530 = vmax.f32 %v4513, 0.0
        %v4531 = vmax.f32 %v4516, 0.0
        %v4532 = vmax.f32 %v4519, 0.0
        %v4533 = vmax.f32 %v4522, 0.0
        %v4534 = vmax.f32 %v4525, 0.0
        %v4535 = vld [vmem:[%s7] sm:$0xff]
        %v4536 = vld [vmem:[%s7 + $0x8] sm:$0xff]
        %v4537 = vld [vmem:[%s7 + $0x10] sm:$0xff]
        %v4538 = vld [vmem:[%s7 + $0x18] sm:$0xff]
        %v4539 = vld [vmem:[%s7 + $0x20] sm:$0xff]
        %v4540 = vld [vmem:[%s7 + $0x28] sm:$0xff]
        %v4541 = vld [vmem:[%s7 + $0x30] sm:$0xff]
        %v4542 = vld [vmem:[%s7 + $0x38] sm:$0xff]
        %v4543 = vld [vmem:[%s7 + $0x40] sm:$0xff]
        %v4544 = vld [vmem:[%s7 + $0x48] sm:$0xff]
        %v4545 = vld [vmem:[%s7 + $0x50] sm:$0xff]
        %v4546 = vld [vmem:[%s7 + $0x58] sm:$0xff]
        %v4547 = vld [vmem:[%s7 + $0x60] sm:$0xff]
        %v4548 = vld [vmem:[%s7 + $0x68] sm:$0xff]
        %v4549 = vld [vmem:[%s7 + $0x70] sm:$0xff]
        %v4550 = vld [vmem:[%s7 + $0x78] sm:$0xff]
        %v4551 = vld [vmem:[%s8] sm:$0x1]
        %v4553 = vperm.slane %v4551, 0
        %4555 = vmatpush.msra.mxu0 %v4550
        %4556 = vmatpush.msra.mxu0 %v4549
        %4557 = vmatpush.msra.mxu0 %v4548
        %4558 = vmatpush.msra.mxu0 %v4547
        %4559 = vmatpush.msra.mxu0 %v4546
        %4560 = vmatpush.msra.mxu0 %v4545
        %4561 = vmatpush.msra.mxu0 %v4544
        %4562 = vmatpush.msra.mxu0 %v4543
        %4563 = vmatpush.msra.mxu0 %v4542
        %4564 = vmatpush.msra.mxu0 %v4541
        %4565 = vmatpush.msra.mxu0 %v4540
        %4566 = vmatpush.msra.mxu0 %v4539
        %4567 = vmatpush.msra.mxu0 %v4538
        %4568 = vmatpush.msra.mxu0 %v4537
        %4569 = vmatpush.msra.mxu0 %v4536
        %4570 = vmatpush.msra.mxu0 %v4535
        %4571 = vmatmul.f32.gmra.mxu0 %v4527
        %v4572 = vpop.f32.mrf.mxu0
        %v4573 = vadd.f32 %v4553, %v4572
        %4574 = vmatmul.f32.gmra.mxu0 %v4528
        %v4575 = vpop.f32.mrf.mxu0
        %v4576 = vadd.f32 %v4553, %v4575
        %4577 = vmatmul.f32.gmra.mxu0 %v4529
        %v4578 = vpop.f32.mrf.mxu0
        %v4579 = vadd.f32 %v4553, %v4578
        %4580 = vmatmul.f32.gmra.mxu0 %v4530
        %v4581 = vpop.f32.mrf.mxu0
        %v4582 = vadd.f32 %v4553, %v4581
        %4583 = vmatmul.f32.gmra.mxu0 %v4531
        %v4584 = vpop.f32.mrf.mxu0
        %v4585 = vadd.f32 %v4553, %v4584
        %4586 = vmatmul.f32.gmra.mxu0 %v4532
        %v4587 = vpop.f32.mrf.mxu0
        %v4588 = vadd.f32 %v4553, %v4587
        %4589 = vmatmul.f32.gmra.mxu0 %v4533
        %v4590 = vpop.f32.mrf.mxu0
        %v4591 = vadd.f32 %v4553, %v4590
        %4592 = vmatmul.f32.gmra.mxu0 %v4534
        %v4593 = vpop.f32.mrf.mxu0
        %v4594 = vadd.f32 %v4553, %v4593
        %4595 = vdwg.mxu0
        %v4596 = vmax.f32 %v4573, 0.0
        %v4597 = vmax.f32 %v4576, 0.0
        %v4598 = vmax.f32 %v4579, 0.0
        %v4599 = vmax.f32 %v4582, 0.0
        %v4600 = vmax.f32 %v4585, 0.0
        %v4601 = vmax.f32 %v4588, 0.0
        %v4602 = vmax.f32 %v4591, 0.0
        %v4603 = vmax.f32 %v4594, 0.0
        %4604 = vst [vmem:[%s342] sm:$0xff] %v4596
        %4605 = vst [vmem:[%s342 + $0x8] sm:$0xff] %v4597
        %4606 = vst [vmem:[%s342 + $0x10] sm:$0xff] %v4598
        %4607 = vst [vmem:[%s342 + $0x18] sm:$0xff] %v4599
        %4608 = vst [vmem:[%s342 + $0x20] sm:$0xff] %v4600
        %4609 = vst [vmem:[%s342 + $0x28] sm:$0xff] %v4601
        %4610 = vst [vmem:[%s342 + $0x30] sm:$0xff] %v4602
        %4611 = vst [vmem:[%s342 + $0x38] sm:$0xff] %v4603
        %s4612 = sand.u32 %s226, 1
        %s4613 = scalar_lea.sflag [#allocation5], %s4612
        %s4614 = sand.u32 %s226, 1
        %s4615 = smul.addr %s4614, 64
        %s4616 = scalar_lea.vmem [#allocation6], %s4615
        // Predicated region
        $region61: #{hg_block_forward.1} parent=55 // pred_check
          %p4617 = pneg %p236
        $region62: #{hg_block_forward.1} parent=55 // pred_check_branch
          %4619 = sbr.rel (%p4617) target = $region64
        $region63: #{hg_block_forward.1} parent=55 // pred_region
          %4621 = vsyncadd %s4613, 0
          %s4622 = smul.addr %s24, 8
          %s4623 = smul.addr %s4622, 8
          %s4624 = scalar_lea.hbm %s9, %s4623
          %s4625 = sshll.u32 %s4616, 4
          %s4626 = int_to_ptr.vmem [resolvable:$true] %s4625
          %s4627 = sshll.u32 %s4624, 4
          %s4628 = int_to_ptr.hbm [resolvable:$true] %s4627
          %4633 = dma.vmem_to_hbm [thread:$0]  %s4626, 1024, %s4628, %s4613, 128, 128, 8
        $region64: #{hg_block_forward.1} parent=55 // pred_fallthru
          _
      $region56: #{hg_block_forward.1} parent=5 // pred_fallthru
        _
      %p4634 = scmp.le.s32.totalorder 2, %s19
      // Predicated region
      $region65: #{hg_block_forward.1} parent=5 // pred_check
        %p4635 = pneg %p4634
      $region66: #{hg_block_forward.1} parent=5 // pred_check_branch
        %4637 = sbr.rel (%p4635) target = $region68
      $region67: #{hg_block_forward.1} parent=5 // pred_region
        %s4638 = ssub.s32 %s19, 2
        // Predicated region
        $region69: #{hg_block_forward.1} parent=67 // pred_check
          %p4639 = pneg %p242
        $region70: #{hg_block_forward.1} parent=67 // pred_check_branch
          %4641 = sbr.rel (%p4639) target = $region72
        $region71: #{hg_block_forward.1} parent=67 // pred_region
          %s4642 = sand.u32 %s227, 1
          %s4643 = scalar_lea.sflag [#allocation5], %s4642
          %s4644 = sand.u32 %s227, 1
          %s4645 = smul.addr %s4644, 64
          %s4646 = scalar_lea.vmem [#allocation6], %s4645
          %4648 = dma.done %s4643, 1024
        $region72: #{hg_block_forward.1} parent=67 // pred_fallthru
          _
      $region68: #{hg_block_forward.1} parent=5 // pred_fallthru
        _
    $region6: #{hg_block_forward.1} parent=1 // loop_footer
      %s23 = sadd.s32 1, %s19
    $region7: #{hg_block_forward.1} parent=1 // loop_footer_branch
      %18 = sbr.rel target = $region3
    $region8: #{hg_block_forward.1} parent=1 // loop_exit
      _
    %4649 = vsyncpa [#allocation4], 1
    %s4650 = scalar_lea.sflag [#allocation4], 1
    %4651 = vsyncpa %s4650, 1
    %4652 = vsyncpa [#allocation5], 1
    %s4653 = scalar_lea.sflag [#allocation5], 1
    %4654 = vsyncpa %s4653, 1

</llo_original>
